<compile_context>
chip_gen: v6e
topology: v6e:2x2x1
jax: 0.10.0
libtpu: 0.0.40
codegen_flags: <defaults>
</compile_context>

<pallas_src>
import functools

import jax
import jax.numpy as jnp
from jax.experimental import pallas as pl
from jax.experimental.pallas import tpu as pltpu


def _gat_fused_kernel(*refs, num_total_layers, num_heads, head_dims):
    """Entire GAT forward. refs = (neg_bias, h0, [Wflat, A, bias]*L, out)."""
    out_ref = refs[-1]
    nb = refs[0][...]                           # (N, N) additive mask: 0 / -1e30
    h = refs[1][...]                            # (N, Din0) node features
    layer_refs = refs[2:-1]

    for l in range(num_total_layers):
        w_ref = layer_refs[3 * l]               # (Din, heads*Dout)
        a_ref = layer_refs[3 * l + 1]           # (heads*Dout, 2*heads)
        b_ref = layer_refs[3 * l + 2]           # (1, heads*Dout)
        dout = head_dims[l]
        is_last = l == num_total_layers - 1

        # All heads' projections in one MXU matmul.
        Z = jnp.dot(h, w_ref[...], preferred_element_type=jnp.float32)
        # Attention logits for all heads in one MXU matmul: (N, 2*heads).
        scores = jnp.dot(Z, a_ref[...], preferred_element_type=jnp.float32)
        el_t = jnp.transpose(scores[:, :num_heads])      # (heads, N) src scores
        er = scores[:, num_heads:]                       # (N, heads) dst scores

        head_outs = []
        for hh in range(num_heads):
            # e[dst, src] = leaky_relu(er[dst] + el[src], 0.2) + mask_bias
            e = er[:, hh:hh + 1] + el_t[hh:hh + 1, :]    # (N, N)
            e = jnp.where(e >= 0.0, e, 0.2 * e)
            e = e + nb
            # Softmax over sources; self-loops guarantee a live entry per row,
            # so masked entries underflow to exactly 0 after exp.
            m = jnp.max(e, axis=-1, keepdims=True)
            p = jnp.exp(e - m)
            denom = jnp.sum(p, axis=-1, keepdims=True)
            alpha = p * pl.reciprocal(denom, approx=True)
            z_h = Z[:, hh * dout:(hh + 1) * dout]        # (N, Dout)
            head_outs.append(
                jnp.dot(alpha, z_h, preferred_element_type=jnp.float32))

        b_full = b_ref[...]                              # (1, heads*Dout)
        if not is_last:
            # Lane-dense (N, heads*Dout) == torch .flatten(1) layout; ELU.
            rst = jnp.concatenate(head_outs, axis=-1) + b_full
            h = jnp.where(rst > 0.0, rst,
                          jnp.exp(jnp.minimum(rst, 0.0)) - 1.0)
        else:
            # Final layer: mean over heads (bias included), no activation.
            acc = jnp.zeros_like(head_outs[0])
            for hh in range(num_heads):
                acc = acc + head_outs[hh] + b_full[:, hh * dout:(hh + 1) * dout]
            out_ref[...] = acc * (1.0 / num_heads)


def _build_attn_matrix(attn_l, attn_r):
    """Block-diagonal (heads*Dout, 2*heads): cols [0:heads]=attn_l, [heads:]=attn_r."""
    heads, dout = attn_l.shape
    eye = jnp.eye(heads, dtype=attn_l.dtype)
    a_l = (attn_l[:, :, None] * eye[:, None, :]).reshape(heads * dout, heads)
    a_r = (attn_r[:, :, None] * eye[:, None, :]).reshape(heads * dout, heads)
    return jnp.concatenate([a_l, a_r], axis=1)


def gat_forward(adj, nfeat, params, *, num_heads):
    """Mirrors GAT.forward. params: list of (W(h,Din,Dout), attn_l, attn_r, bias)."""
    N = nfeat.shape[0]
    total_layers = len(params)

    # Hoist mask work out of the kernel: additive bias, 0 for edges, -1e30 else.
    neg_bias = jnp.where(adj > 0.0, 0.0, -1e30).astype(jnp.float32)

    flat_inputs = [neg_bias, nfeat.astype(jnp.float32)]
    head_dims = []
    for (W, al, ar, b) in params:
        heads, din, dout = W.shape
        head_dims.append(dout)
        w_flat = jnp.transpose(W, (1, 0, 2)).reshape(din, heads * dout)
        a_mat = _build_attn_matrix(al, ar)
        b_flat = b.reshape(1, heads * dout)
        flat_inputs += [w_flat, a_mat, b_flat]

    out_dim = head_dims[-1]
    kernel = functools.partial(
        _gat_fused_kernel,
        num_total_layers=total_layers,
        num_heads=num_heads,
        head_dims=tuple(head_dims),
    )
    vmem_spec = pl.BlockSpec(memory_space=pltpu.MemorySpace.VMEM)
    return pl.pallas_call(
        kernel,
        out_shape=jax.ShapeDtypeStruct((N, out_dim), jnp.float32),
        in_specs=[vmem_spec] * len(flat_inputs),
        out_specs=vmem_spec,
    )(*flat_inputs)


def init_gat_params(key, in_dim, out_dim, num_hidden, num_layers, num_heads):
    """Deterministic synthetic parameters (xavier-ish normal), DGL layout."""
    dims = [(in_dim, num_hidden)]                           # layer 0
    for _ in range(1, num_layers):
        dims.append((num_hidden * num_heads, num_hidden))   # hidden layers
    dims.append((num_hidden * num_heads, out_dim))          # final layer
    params = []
    for (din, dout) in dims:
        key, kw, kl, kr = jax.random.split(key, 4)
        scale = (2.0 / (din + dout)) ** 0.5
        W = scale * jax.random.normal(kw, (num_heads, din, dout), jnp.float32)
        al = 0.1 * jax.random.normal(kl, (num_heads, dout), jnp.float32)
        ar = 0.1 * jax.random.normal(kr, (num_heads, dout), jnp.float32)
        b = jnp.zeros((num_heads, dout), jnp.float32)
        params.append((W, al, ar, b))
    return params


if __name__ == "__main__":
    # Small, module-consistent shapes.
    N = 32            # number of graph nodes
    in_dim = 16
    num_hidden = 16
    out_dim = 8
    num_layers = 2
    num_heads = 4

    key = jax.random.PRNGKey(0)
    key, k_feat, k_adj, k_par = jax.random.split(key, 4)

    nfeat = jax.random.normal(k_feat, (N, in_dim), jnp.float32)

    # Random directed graph with self-loops; adj[dst, src].
    adj = (jax.random.uniform(k_adj, (N, N)) < 0.25).astype(jnp.float32)
    adj = jnp.maximum(adj, jnp.eye(N, dtype=jnp.float32))

    params = init_gat_params(k_par, in_dim, out_dim, num_hidden,
                             num_layers, num_heads)

    fwd = jax.jit(functools.partial(gat_forward, num_heads=num_heads))
    emb = fwd(adj, nfeat, params)
    emb = jax.block_until_ready(emb)

    assert emb.shape == (N, out_dim), emb.shape
    assert bool(jnp.all(jnp.isfinite(emb)))
    print("KERNEL_OK")
</pallas_src>

<mosaic_0001>
module attributes {stable_mosaic.version = 11 : i64} {
  func.func @_gat_fused_kernel(%arg0: memref<32x32xf32, #tpu.memory_space<vmem>>, %arg1: memref<32x16xf32, #tpu.memory_space<vmem>>, %arg2: memref<16x64xf32, #tpu.memory_space<vmem>>, %arg3: memref<64x8xf32, #tpu.memory_space<vmem>>, %arg4: memref<1x64xf32, #tpu.memory_space<vmem>>, %arg5: memref<64x64xf32, #tpu.memory_space<vmem>>, %arg6: memref<64x8xf32, #tpu.memory_space<vmem>>, %arg7: memref<1x64xf32, #tpu.memory_space<vmem>>, %arg8: memref<64x32xf32, #tpu.memory_space<vmem>>, %arg9: memref<32x8xf32, #tpu.memory_space<vmem>>, %arg10: memref<1x32xf32, #tpu.memory_space<vmem>>, %arg11: memref<32x8xf32, #tpu.memory_space<vmem>>) attributes {dimension_semantics = [], scalar_prefetch = 0 : i64, scratch_operands = 0 : i64, tpu.core_type = #tpu.core_type<tc>} {
    %c0 = arith.constant 0 : index
    %c0_0 = arith.constant 0 : index
    %0 = vector.load %arg0[%c0, %c0_0] : memref<32x32xf32, #tpu.memory_space<vmem>>, vector<32x32xf32>
    %c0_1 = arith.constant 0 : index
    %c0_2 = arith.constant 0 : index
    %1 = vector.load %arg1[%c0_1, %c0_2] : memref<32x16xf32, #tpu.memory_space<vmem>>, vector<32x16xf32>
    %c0_3 = arith.constant 0 : index
    %c0_4 = arith.constant 0 : index
    %2 = vector.load %arg2[%c0_3, %c0_4] : memref<16x64xf32, #tpu.memory_space<vmem>>, vector<16x64xf32>
    %cst = arith.constant dense<0.000000e+00> : vector<32x64xf32>
    %3 = tpu.matmul %1, %2, %cst {dimension_numbers = #tpu.dot_dimension_numbers<[1], [0], [0], [1], [0, 0, 1, 1], [], []>} : vector<32x16xf32>, vector<16x64xf32>, vector<32x64xf32> -> vector<32x64xf32>
    %c0_5 = arith.constant 0 : index
    %c0_6 = arith.constant 0 : index
    %4 = vector.load %arg3[%c0_5, %c0_6] : memref<64x8xf32, #tpu.memory_space<vmem>>, vector<64x8xf32>
    %cst_7 = arith.constant dense<0.000000e+00> : vector<32x8xf32>
    %5 = tpu.matmul %3, %4, %cst_7 {dimension_numbers = #tpu.dot_dimension_numbers<[1], [0], [0], [1], [0, 0, 1, 1], [], []>} : vector<32x64xf32>, vector<64x8xf32>, vector<32x8xf32> -> vector<32x8xf32>
    %6 = vector.extract_strided_slice %5 {offsets = [0, 0], sizes = [32, 4], strides = [1, 1]} : vector<32x8xf32> to vector<32x4xf32>
    %7 = tpu.transpose %6, [1, 0] : vector<32x4xf32> -> vector<4x32xf32>
    %8 = vector.extract_strided_slice %5 {offsets = [0, 4], sizes = [32, 4], strides = [1, 1]} : vector<32x8xf32> to vector<32x4xf32>
    %9 = vector.extract_strided_slice %8 {offsets = [0, 0], sizes = [32, 1], strides = [1, 1]} : vector<32x4xf32> to vector<32x1xf32>
    %10 = vector.extract_strided_slice %7 {offsets = [0, 0], sizes = [1, 32], strides = [1, 1]} : vector<4x32xf32> to vector<1x32xf32>
    %11 = vector.broadcast %9 : vector<32x1xf32> to vector<32x32xf32>
    %12 = vector.broadcast %10 : vector<1x32xf32> to vector<32x32xf32>
    %13 = arith.addf %11, %12 : vector<32x32xf32>
    %cst_8 = arith.constant 0.000000e+00 : f32
    %14 = vector.broadcast %cst_8 : f32 to vector<32x32xf32>
    %15 = arith.cmpf oge, %13, %14 : vector<32x32xf32>
    %cst_9 = arith.constant 2.000000e-01 : f32
    %16 = vector.broadcast %cst_9 : f32 to vector<32x32xf32>
    %17 = arith.mulf %16, %13 : vector<32x32xf32>
    %18 = arith.select %15, %13, %17 : vector<32x32xi1>, vector<32x32xf32>
    %19 = arith.addf %18, %0 : vector<32x32xf32>
    %cst_10 = arith.constant dense<0xFF800000> : vector<32xf32>
    %20 = vector.multi_reduction <maximumf>, %19, %cst_10 [1] : vector<32x32xf32> to vector<32xf32>
    %21 = vector.shape_cast %20 : vector<32xf32> to vector<32x1xf32>
    %22 = vector.broadcast %21 : vector<32x1xf32> to vector<32x32xf32>
    %23 = arith.subf %19, %22 : vector<32x32xf32>
    %24 = math.exp %23 : vector<32x32xf32>
    %cst_11 = arith.constant dense<0.000000e+00> : vector<32xf32>
    %25 = vector.multi_reduction <add>, %24, %cst_11 [1] : vector<32x32xf32> to vector<32xf32>
    %26 = vector.shape_cast %25 : vector<32xf32> to vector<32x1xf32>
    %27 = tpu.reciprocal %26 {approx = true} : vector<32x1xf32> -> vector<32x1xf32>
    %28 = vector.broadcast %27 : vector<32x1xf32> to vector<32x32xf32>
    %29 = arith.mulf %24, %28 : vector<32x32xf32>
    %30 = vector.extract_strided_slice %3 {offsets = [0, 0], sizes = [32, 16], strides = [1, 1]} : vector<32x64xf32> to vector<32x16xf32>
    %cst_12 = arith.constant dense<0.000000e+00> : vector<32x16xf32>
    %31 = tpu.matmul %29, %30, %cst_12 {dimension_numbers = #tpu.dot_dimension_numbers<[1], [0], [0], [1], [0, 0, 1, 1], [], []>} : vector<32x32xf32>, vector<32x16xf32>, vector<32x16xf32> -> vector<32x16xf32>
    %32 = vector.extract_strided_slice %8 {offsets = [0, 1], sizes = [32, 1], strides = [1, 1]} : vector<32x4xf32> to vector<32x1xf32>
    %33 = vector.extract_strided_slice %7 {offsets = [1, 0], sizes = [1, 32], strides = [1, 1]} : vector<4x32xf32> to vector<1x32xf32>
    %34 = vector.broadcast %32 : vector<32x1xf32> to vector<32x32xf32>
    %35 = vector.broadcast %33 : vector<1x32xf32> to vector<32x32xf32>
    %36 = arith.addf %34, %35 : vector<32x32xf32>
    %cst_13 = arith.constant 0.000000e+00 : f32
    %37 = vector.broadcast %cst_13 : f32 to vector<32x32xf32>
    %38 = arith.cmpf oge, %36, %37 : vector<32x32xf32>
    %cst_14 = arith.constant 2.000000e-01 : f32
    %39 = vector.broadcast %cst_14 : f32 to vector<32x32xf32>
    %40 = arith.mulf %39, %36 : vector<32x32xf32>
    %41 = arith.select %38, %36, %40 : vector<32x32xi1>, vector<32x32xf32>
    %42 = arith.addf %41, %0 : vector<32x32xf32>
    %cst_15 = arith.constant dense<0xFF800000> : vector<32xf32>
    %43 = vector.multi_reduction <maximumf>, %42, %cst_15 [1] : vector<32x32xf32> to vector<32xf32>
    %44 = vector.shape_cast %43 : vector<32xf32> to vector<32x1xf32>
    %45 = vector.broadcast %44 : vector<32x1xf32> to vector<32x32xf32>
    %46 = arith.subf %42, %45 : vector<32x32xf32>
    %47 = math.exp %46 : vector<32x32xf32>
    %cst_16 = arith.constant dense<0.000000e+00> : vector<32xf32>
    %48 = vector.multi_reduction <add>, %47, %cst_16 [1] : vector<32x32xf32> to vector<32xf32>
    %49 = vector.shape_cast %48 : vector<32xf32> to vector<32x1xf32>
    %50 = tpu.reciprocal %49 {approx = true} : vector<32x1xf32> -> vector<32x1xf32>
    %51 = vector.broadcast %50 : vector<32x1xf32> to vector<32x32xf32>
    %52 = arith.mulf %47, %51 : vector<32x32xf32>
    %53 = vector.extract_strided_slice %3 {offsets = [0, 16], sizes = [32, 16], strides = [1, 1]} : vector<32x64xf32> to vector<32x16xf32>
    %cst_17 = arith.constant dense<0.000000e+00> : vector<32x16xf32>
    %54 = tpu.matmul %52, %53, %cst_17 {dimension_numbers = #tpu.dot_dimension_numbers<[1], [0], [0], [1], [0, 0, 1, 1], [], []>} : vector<32x32xf32>, vector<32x16xf32>, vector<32x16xf32> -> vector<32x16xf32>
    %55 = vector.extract_strided_slice %8 {offsets = [0, 2], sizes = [32, 1], strides = [1, 1]} : vector<32x4xf32> to vector<32x1xf32>
    %56 = vector.extract_strided_slice %7 {offsets = [2, 0], sizes = [1, 32], strides = [1, 1]} : vector<4x32xf32> to vector<1x32xf32>
    %57 = vector.broadcast %55 : vector<32x1xf32> to vector<32x32xf32>
    %58 = vector.broadcast %56 : vector<1x32xf32> to vector<32x32xf32>
    %59 = arith.addf %57, %58 : vector<32x32xf32>
    %cst_18 = arith.constant 0.000000e+00 : f32
    %60 = vector.broadcast %cst_18 : f32 to vector<32x32xf32>
    %61 = arith.cmpf oge, %59, %60 : vector<32x32xf32>
    %cst_19 = arith.constant 2.000000e-01 : f32
    %62 = vector.broadcast %cst_19 : f32 to vector<32x32xf32>
    %63 = arith.mulf %62, %59 : vector<32x32xf32>
    %64 = arith.select %61, %59, %63 : vector<32x32xi1>, vector<32x32xf32>
    %65 = arith.addf %64, %0 : vector<32x32xf32>
    %cst_20 = arith.constant dense<0xFF800000> : vector<32xf32>
    %66 = vector.multi_reduction <maximumf>, %65, %cst_20 [1] : vector<32x32xf32> to vector<32xf32>
    %67 = vector.shape_cast %66 : vector<32xf32> to vector<32x1xf32>
    %68 = vector.broadcast %67 : vector<32x1xf32> to vector<32x32xf32>
    %69 = arith.subf %65, %68 : vector<32x32xf32>
    %70 = math.exp %69 : vector<32x32xf32>
    %cst_21 = arith.constant dense<0.000000e+00> : vector<32xf32>
    %71 = vector.multi_reduction <add>, %70, %cst_21 [1] : vector<32x32xf32> to vector<32xf32>
    %72 = vector.shape_cast %71 : vector<32xf32> to vector<32x1xf32>
    %73 = tpu.reciprocal %72 {approx = true} : vector<32x1xf32> -> vector<32x1xf32>
    %74 = vector.broadcast %73 : vector<32x1xf32> to vector<32x32xf32>
    %75 = arith.mulf %70, %74 : vector<32x32xf32>
    %76 = vector.extract_strided_slice %3 {offsets = [0, 32], sizes = [32, 16], strides = [1, 1]} : vector<32x64xf32> to vector<32x16xf32>
    %cst_22 = arith.constant dense<0.000000e+00> : vector<32x16xf32>
    %77 = tpu.matmul %75, %76, %cst_22 {dimension_numbers = #tpu.dot_dimension_numbers<[1], [0], [0], [1], [0, 0, 1, 1], [], []>} : vector<32x32xf32>, vector<32x16xf32>, vector<32x16xf32> -> vector<32x16xf32>
    %78 = vector.extract_strided_slice %8 {offsets = [0, 3], sizes = [32, 1], strides = [1, 1]} : vector<32x4xf32> to vector<32x1xf32>
    %79 = vector.extract_strided_slice %7 {offsets = [3, 0], sizes = [1, 32], strides = [1, 1]} : vector<4x32xf32> to vector<1x32xf32>
    %80 = vector.broadcast %78 : vector<32x1xf32> to vector<32x32xf32>
    %81 = vector.broadcast %79 : vector<1x32xf32> to vector<32x32xf32>
    %82 = arith.addf %80, %81 : vector<32x32xf32>
    %cst_23 = arith.constant 0.000000e+00 : f32
    %83 = vector.broadcast %cst_23 : f32 to vector<32x32xf32>
    %84 = arith.cmpf oge, %82, %83 : vector<32x32xf32>
    %cst_24 = arith.constant 2.000000e-01 : f32
    %85 = vector.broadcast %cst_24 : f32 to vector<32x32xf32>
    %86 = arith.mulf %85, %82 : vector<32x32xf32>
    %87 = arith.select %84, %82, %86 : vector<32x32xi1>, vector<32x32xf32>
    %88 = arith.addf %87, %0 : vector<32x32xf32>
    %cst_25 = arith.constant dense<0xFF800000> : vector<32xf32>
    %89 = vector.multi_reduction <maximumf>, %88, %cst_25 [1] : vector<32x32xf32> to vector<32xf32>
    %90 = vector.shape_cast %89 : vector<32xf32> to vector<32x1xf32>
    %91 = vector.broadcast %90 : vector<32x1xf32> to vector<32x32xf32>
    %92 = arith.subf %88, %91 : vector<32x32xf32>
    %93 = math.exp %92 : vector<32x32xf32>
    %cst_26 = arith.constant dense<0.000000e+00> : vector<32xf32>
    %94 = vector.multi_reduction <add>, %93, %cst_26 [1] : vector<32x32xf32> to vector<32xf32>
    %95 = vector.shape_cast %94 : vector<32xf32> to vector<32x1xf32>
    %96 = tpu.reciprocal %95 {approx = true} : vector<32x1xf32> -> vector<32x1xf32>
    %97 = vector.broadcast %96 : vector<32x1xf32> to vector<32x32xf32>
    %98 = arith.mulf %93, %97 : vector<32x32xf32>
    %99 = vector.extract_strided_slice %3 {offsets = [0, 48], sizes = [32, 16], strides = [1, 1]} : vector<32x64xf32> to vector<32x16xf32>
    %cst_27 = arith.constant dense<0.000000e+00> : vector<32x16xf32>
    %100 = tpu.matmul %98, %99, %cst_27 {dimension_numbers = #tpu.dot_dimension_numbers<[1], [0], [0], [1], [0, 0, 1, 1], [], []>} : vector<32x32xf32>, vector<32x16xf32>, vector<32x16xf32> -> vector<32x16xf32>
    %c0_28 = arith.constant 0 : index
    %c0_29 = arith.constant 0 : index
    %101 = vector.load %arg4[%c0_28, %c0_29] : memref<1x64xf32, #tpu.memory_space<vmem>>, vector<1x64xf32>
    %102 = tpu.concatenate %31, %54, %77, %100 in 1 : vector<32x16xf32>, vector<32x16xf32>, vector<32x16xf32>, vector<32x16xf32> -> vector<32x64xf32>
    %103 = vector.broadcast %101 : vector<1x64xf32> to vector<32x64xf32>
    %104 = arith.addf %102, %103 : vector<32x64xf32>
    %cst_30 = arith.constant 0.000000e+00 : f32
    %105 = vector.broadcast %cst_30 : f32 to vector<32x64xf32>
    %106 = arith.cmpf ogt, %104, %105 : vector<32x64xf32>
    %cst_31 = arith.constant 0.000000e+00 : f32
    %107 = vector.broadcast %cst_31 : f32 to vector<32x64xf32>
    %108 = arith.minimumf %104, %107 : vector<32x64xf32>
    %109 = math.exp %108 : vector<32x64xf32>
    %cst_32 = arith.constant 1.000000e+00 : f32
    %110 = vector.broadcast %cst_32 : f32 to vector<32x64xf32>
    %111 = arith.subf %109, %110 : vector<32x64xf32>
    %112 = arith.select %106, %104, %111 : vector<32x64xi1>, vector<32x64xf32>
    %c0_33 = arith.constant 0 : index
    %c0_34 = arith.constant 0 : index
    %113 = vector.load %arg5[%c0_33, %c0_34] : memref<64x64xf32, #tpu.memory_space<vmem>>, vector<64x64xf32>
    %cst_35 = arith.constant dense<0.000000e+00> : vector<32x64xf32>
    %114 = tpu.matmul %112, %113, %cst_35 {dimension_numbers = #tpu.dot_dimension_numbers<[1], [0], [0], [1], [0, 0, 1, 1], [], []>} : vector<32x64xf32>, vector<64x64xf32>, vector<32x64xf32> -> vector<32x64xf32>
    %c0_36 = arith.constant 0 : index
    %c0_37 = arith.constant 0 : index
    %115 = vector.load %arg6[%c0_36, %c0_37] : memref<64x8xf32, #tpu.memory_space<vmem>>, vector<64x8xf32>
    %cst_38 = arith.constant dense<0.000000e+00> : vector<32x8xf32>
    %116 = tpu.matmul %114, %115, %cst_38 {dimension_numbers = #tpu.dot_dimension_numbers<[1], [0], [0], [1], [0, 0, 1, 1], [], []>} : vector<32x64xf32>, vector<64x8xf32>, vector<32x8xf32> -> vector<32x8xf32>
    %117 = vector.extract_strided_slice %116 {offsets = [0, 0], sizes = [32, 4], strides = [1, 1]} : vector<32x8xf32> to vector<32x4xf32>
    %118 = tpu.transpose %117, [1, 0] : vector<32x4xf32> -> vector<4x32xf32>
    %119 = vector.extract_strided_slice %116 {offsets = [0, 4], sizes = [32, 4], strides = [1, 1]} : vector<32x8xf32> to vector<32x4xf32>
    %120 = vector.extract_strided_slice %119 {offsets = [0, 0], sizes = [32, 1], strides = [1, 1]} : vector<32x4xf32> to vector<32x1xf32>
    %121 = vector.extract_strided_slice %118 {offsets = [0, 0], sizes = [1, 32], strides = [1, 1]} : vector<4x32xf32> to vector<1x32xf32>
    %122 = vector.broadcast %120 : vector<32x1xf32> to vector<32x32xf32>
    %123 = vector.broadcast %121 : vector<1x32xf32> to vector<32x32xf32>
    %124 = arith.addf %122, %123 : vector<32x32xf32>
    %cst_39 = arith.constant 0.000000e+00 : f32
    %125 = vector.broadcast %cst_39 : f32 to vector<32x32xf32>
    %126 = arith.cmpf oge, %124, %125 : vector<32x32xf32>
    %cst_40 = arith.constant 2.000000e-01 : f32
    %127 = vector.broadcast %cst_40 : f32 to vector<32x32xf32>
    %128 = arith.mulf %127, %124 : vector<32x32xf32>
    %129 = arith.select %126, %124, %128 : vector<32x32xi1>, vector<32x32xf32>
    %130 = arith.addf %129, %0 : vector<32x32xf32>
    %cst_41 = arith.constant dense<0xFF800000> : vector<32xf32>
    %131 = vector.multi_reduction <maximumf>, %130, %cst_41 [1] : vector<32x32xf32> to vector<32xf32>
    %132 = vector.shape_cast %131 : vector<32xf32> to vector<32x1xf32>
    %133 = vector.broadcast %132 : vector<32x1xf32> to vector<32x32xf32>
    %134 = arith.subf %130, %133 : vector<32x32xf32>
    %135 = math.exp %134 : vector<32x32xf32>
    %cst_42 = arith.constant dense<0.000000e+00> : vector<32xf32>
    %136 = vector.multi_reduction <add>, %135, %cst_42 [1] : vector<32x32xf32> to vector<32xf32>
    %137 = vector.shape_cast %136 : vector<32xf32> to vector<32x1xf32>
    %138 = tpu.reciprocal %137 {approx = true} : vector<32x1xf32> -> vector<32x1xf32>
    %139 = vector.broadcast %138 : vector<32x1xf32> to vector<32x32xf32>
    %140 = arith.mulf %135, %139 : vector<32x32xf32>
    %141 = vector.extract_strided_slice %114 {offsets = [0, 0], sizes = [32, 16], strides = [1, 1]} : vector<32x64xf32> to vector<32x16xf32>
    %cst_43 = arith.constant dense<0.000000e+00> : vector<32x16xf32>
    %142 = tpu.matmul %140, %141, %cst_43 {dimension_numbers = #tpu.dot_dimension_numbers<[1], [0], [0], [1], [0, 0, 1, 1], [], []>} : vector<32x32xf32>, vector<32x16xf32>, vector<32x16xf32> -> vector<32x16xf32>
    %143 = vector.extract_strided_slice %119 {offsets = [0, 1], sizes = [32, 1], strides = [1, 1]} : vector<32x4xf32> to vector<32x1xf32>
    %144 = vector.extract_strided_slice %118 {offsets = [1, 0], sizes = [1, 32], strides = [1, 1]} : vector<4x32xf32> to vector<1x32xf32>
    %145 = vector.broadcast %143 : vector<32x1xf32> to vector<32x32xf32>
    %146 = vector.broadcast %144 : vector<1x32xf32> to vector<32x32xf32>
    %147 = arith.addf %145, %146 : vector<32x32xf32>
    %cst_44 = arith.constant 0.000000e+00 : f32
    %148 = vector.broadcast %cst_44 : f32 to vector<32x32xf32>
    %149 = arith.cmpf oge, %147, %148 : vector<32x32xf32>
    %cst_45 = arith.constant 2.000000e-01 : f32
    %150 = vector.broadcast %cst_45 : f32 to vector<32x32xf32>
    %151 = arith.mulf %150, %147 : vector<32x32xf32>
    %152 = arith.select %149, %147, %151 : vector<32x32xi1>, vector<32x32xf32>
    %153 = arith.addf %152, %0 : vector<32x32xf32>
    %cst_46 = arith.constant dense<0xFF800000> : vector<32xf32>
    %154 = vector.multi_reduction <maximumf>, %153, %cst_46 [1] : vector<32x32xf32> to vector<32xf32>
    %155 = vector.shape_cast %154 : vector<32xf32> to vector<32x1xf32>
    %156 = vector.broadcast %155 : vector<32x1xf32> to vector<32x32xf32>
    %157 = arith.subf %153, %156 : vector<32x32xf32>
    %158 = math.exp %157 : vector<32x32xf32>
    %cst_47 = arith.constant dense<0.000000e+00> : vector<32xf32>
    %159 = vector.multi_reduction <add>, %158, %cst_47 [1] : vector<32x32xf32> to vector<32xf32>
    %160 = vector.shape_cast %159 : vector<32xf32> to vector<32x1xf32>
    %161 = tpu.reciprocal %160 {approx = true} : vector<32x1xf32> -> vector<32x1xf32>
    %162 = vector.broadcast %161 : vector<32x1xf32> to vector<32x32xf32>
    %163 = arith.mulf %158, %162 : vector<32x32xf32>
    %164 = vector.extract_strided_slice %114 {offsets = [0, 16], sizes = [32, 16], strides = [1, 1]} : vector<32x64xf32> to vector<32x16xf32>
    %cst_48 = arith.constant dense<0.000000e+00> : vector<32x16xf32>
    %165 = tpu.matmul %163, %164, %cst_48 {dimension_numbers = #tpu.dot_dimension_numbers<[1], [0], [0], [1], [0, 0, 1, 1], [], []>} : vector<32x32xf32>, vector<32x16xf32>, vector<32x16xf32> -> vector<32x16xf32>
    %166 = vector.extract_strided_slice %119 {offsets = [0, 2], sizes = [32, 1], strides = [1, 1]} : vector<32x4xf32> to vector<32x1xf32>
    %167 = vector.extract_strided_slice %118 {offsets = [2, 0], sizes = [1, 32], strides = [1, 1]} : vector<4x32xf32> to vector<1x32xf32>
    %168 = vector.broadcast %166 : vector<32x1xf32> to vector<32x32xf32>
    %169 = vector.broadcast %167 : vector<1x32xf32> to vector<32x32xf32>
    %170 = arith.addf %168, %169 : vector<32x32xf32>
    %cst_49 = arith.constant 0.000000e+00 : f32
    %171 = vector.broadcast %cst_49 : f32 to vector<32x32xf32>
    %172 = arith.cmpf oge, %170, %171 : vector<32x32xf32>
    %cst_50 = arith.constant 2.000000e-01 : f32
    %173 = vector.broadcast %cst_50 : f32 to vector<32x32xf32>
    %174 = arith.mulf %173, %170 : vector<32x32xf32>
    %175 = arith.select %172, %170, %174 : vector<32x32xi1>, vector<32x32xf32>
    %176 = arith.addf %175, %0 : vector<32x32xf32>
    %cst_51 = arith.constant dense<0xFF800000> : vector<32xf32>
    %177 = vector.multi_reduction <maximumf>, %176, %cst_51 [1] : vector<32x32xf32> to vector<32xf32>
    %178 = vector.shape_cast %177 : vector<32xf32> to vector<32x1xf32>
    %179 = vector.broadcast %178 : vector<32x1xf32> to vector<32x32xf32>
    %180 = arith.subf %176, %179 : vector<32x32xf32>
    %181 = math.exp %180 : vector<32x32xf32>
    %cst_52 = arith.constant dense<0.000000e+00> : vector<32xf32>
    %182 = vector.multi_reduction <add>, %181, %cst_52 [1] : vector<32x32xf32> to vector<32xf32>
    %183 = vector.shape_cast %182 : vector<32xf32> to vector<32x1xf32>
    %184 = tpu.reciprocal %183 {approx = true} : vector<32x1xf32> -> vector<32x1xf32>
    %185 = vector.broadcast %184 : vector<32x1xf32> to vector<32x32xf32>
    %186 = arith.mulf %181, %185 : vector<32x32xf32>
    %187 = vector.extract_strided_slice %114 {offsets = [0, 32], sizes = [32, 16], strides = [1, 1]} : vector<32x64xf32> to vector<32x16xf32>
    %cst_53 = arith.constant dense<0.000000e+00> : vector<32x16xf32>
    %188 = tpu.matmul %186, %187, %cst_53 {dimension_numbers = #tpu.dot_dimension_numbers<[1], [0], [0], [1], [0, 0, 1, 1], [], []>} : vector<32x32xf32>, vector<32x16xf32>, vector<32x16xf32> -> vector<32x16xf32>
    %189 = vector.extract_strided_slice %119 {offsets = [0, 3], sizes = [32, 1], strides = [1, 1]} : vector<32x4xf32> to vector<32x1xf32>
    %190 = vector.extract_strided_slice %118 {offsets = [3, 0], sizes = [1, 32], strides = [1, 1]} : vector<4x32xf32> to vector<1x32xf32>
    %191 = vector.broadcast %189 : vector<32x1xf32> to vector<32x32xf32>
    %192 = vector.broadcast %190 : vector<1x32xf32> to vector<32x32xf32>
    %193 = arith.addf %191, %192 : vector<32x32xf32>
    %cst_54 = arith.constant 0.000000e+00 : f32
    %194 = vector.broadcast %cst_54 : f32 to vector<32x32xf32>
    %195 = arith.cmpf oge, %193, %194 : vector<32x32xf32>
    %cst_55 = arith.constant 2.000000e-01 : f32
    %196 = vector.broadcast %cst_55 : f32 to vector<32x32xf32>
    %197 = arith.mulf %196, %193 : vector<32x32xf32>
    %198 = arith.select %195, %193, %197 : vector<32x32xi1>, vector<32x32xf32>
    %199 = arith.addf %198, %0 : vector<32x32xf32>
    %cst_56 = arith.constant dense<0xFF800000> : vector<32xf32>
    %200 = vector.multi_reduction <maximumf>, %199, %cst_56 [1] : vector<32x32xf32> to vector<32xf32>
    %201 = vector.shape_cast %200 : vector<32xf32> to vector<32x1xf32>
    %202 = vector.broadcast %201 : vector<32x1xf32> to vector<32x32xf32>
    %203 = arith.subf %199, %202 : vector<32x32xf32>
    %204 = math.exp %203 : vector<32x32xf32>
    %cst_57 = arith.constant dense<0.000000e+00> : vector<32xf32>
    %205 = vector.multi_reduction <add>, %204, %cst_57 [1] : vector<32x32xf32> to vector<32xf32>
    %206 = vector.shape_cast %205 : vector<32xf32> to vector<32x1xf32>
    %207 = tpu.reciprocal %206 {approx = true} : vector<32x1xf32> -> vector<32x1xf32>
    %208 = vector.broadcast %207 : vector<32x1xf32> to vector<32x32xf32>
    %209 = arith.mulf %204, %208 : vector<32x32xf32>
    %210 = vector.extract_strided_slice %114 {offsets = [0, 48], sizes = [32, 16], strides = [1, 1]} : vector<32x64xf32> to vector<32x16xf32>
    %cst_58 = arith.constant dense<0.000000e+00> : vector<32x16xf32>
    %211 = tpu.matmul %209, %210, %cst_58 {dimension_numbers = #tpu.dot_dimension_numbers<[1], [0], [0], [1], [0, 0, 1, 1], [], []>} : vector<32x32xf32>, vector<32x16xf32>, vector<32x16xf32> -> vector<32x16xf32>
    %c0_59 = arith.constant 0 : index
    %c0_60 = arith.constant 0 : index
    %212 = vector.load %arg7[%c0_59, %c0_60] : memref<1x64xf32, #tpu.memory_space<vmem>>, vector<1x64xf32>
    %213 = tpu.concatenate %142, %165, %188, %211 in 1 : vector<32x16xf32>, vector<32x16xf32>, vector<32x16xf32>, vector<32x16xf32> -> vector<32x64xf32>
    %214 = vector.broadcast %212 : vector<1x64xf32> to vector<32x64xf32>
    %215 = arith.addf %213, %214 : vector<32x64xf32>
    %cst_61 = arith.constant 0.000000e+00 : f32
    %216 = vector.broadcast %cst_61 : f32 to vector<32x64xf32>
    %217 = arith.cmpf ogt, %215, %216 : vector<32x64xf32>
    %cst_62 = arith.constant 0.000000e+00 : f32
    %218 = vector.broadcast %cst_62 : f32 to vector<32x64xf32>
    %219 = arith.minimumf %215, %218 : vector<32x64xf32>
    %220 = math.exp %219 : vector<32x64xf32>
    %cst_63 = arith.constant 1.000000e+00 : f32
    %221 = vector.broadcast %cst_63 : f32 to vector<32x64xf32>
    %222 = arith.subf %220, %221 : vector<32x64xf32>
    %223 = arith.select %217, %215, %222 : vector<32x64xi1>, vector<32x64xf32>
    %c0_64 = arith.constant 0 : index
    %c0_65 = arith.constant 0 : index
    %224 = vector.load %arg8[%c0_64, %c0_65] : memref<64x32xf32, #tpu.memory_space<vmem>>, vector<64x32xf32>
    %cst_66 = arith.constant dense<0.000000e+00> : vector<32x32xf32>
    %225 = tpu.matmul %223, %224, %cst_66 {dimension_numbers = #tpu.dot_dimension_numbers<[1], [0], [0], [1], [0, 0, 1, 1], [], []>} : vector<32x64xf32>, vector<64x32xf32>, vector<32x32xf32> -> vector<32x32xf32>
    %c0_67 = arith.constant 0 : index
    %c0_68 = arith.constant 0 : index
    %226 = vector.load %arg9[%c0_67, %c0_68] : memref<32x8xf32, #tpu.memory_space<vmem>>, vector<32x8xf32>
    %cst_69 = arith.constant dense<0.000000e+00> : vector<32x8xf32>
    %227 = tpu.matmul %225, %226, %cst_69 {dimension_numbers = #tpu.dot_dimension_numbers<[1], [0], [0], [1], [0, 0, 1, 1], [], []>} : vector<32x32xf32>, vector<32x8xf32>, vector<32x8xf32> -> vector<32x8xf32>
    %228 = vector.extract_strided_slice %227 {offsets = [0, 0], sizes = [32, 4], strides = [1, 1]} : vector<32x8xf32> to vector<32x4xf32>
    %229 = tpu.transpose %228, [1, 0] : vector<32x4xf32> -> vector<4x32xf32>
    %230 = vector.extract_strided_slice %227 {offsets = [0, 4], sizes = [32, 4], strides = [1, 1]} : vector<32x8xf32> to vector<32x4xf32>
    %231 = vector.extract_strided_slice %230 {offsets = [0, 0], sizes = [32, 1], strides = [1, 1]} : vector<32x4xf32> to vector<32x1xf32>
    %232 = vector.extract_strided_slice %229 {offsets = [0, 0], sizes = [1, 32], strides = [1, 1]} : vector<4x32xf32> to vector<1x32xf32>
    %233 = vector.broadcast %231 : vector<32x1xf32> to vector<32x32xf32>
    %234 = vector.broadcast %232 : vector<1x32xf32> to vector<32x32xf32>
    %235 = arith.addf %233, %234 : vector<32x32xf32>
    %cst_70 = arith.constant 0.000000e+00 : f32
    %236 = vector.broadcast %cst_70 : f32 to vector<32x32xf32>
    %237 = arith.cmpf oge, %235, %236 : vector<32x32xf32>
    %cst_71 = arith.constant 2.000000e-01 : f32
    %238 = vector.broadcast %cst_71 : f32 to vector<32x32xf32>
    %239 = arith.mulf %238, %235 : vector<32x32xf32>
    %240 = arith.select %237, %235, %239 : vector<32x32xi1>, vector<32x32xf32>
    %241 = arith.addf %240, %0 : vector<32x32xf32>
    %cst_72 = arith.constant dense<0xFF800000> : vector<32xf32>
    %242 = vector.multi_reduction <maximumf>, %241, %cst_72 [1] : vector<32x32xf32> to vector<32xf32>
    %243 = vector.shape_cast %242 : vector<32xf32> to vector<32x1xf32>
    %244 = vector.broadcast %243 : vector<32x1xf32> to vector<32x32xf32>
    %245 = arith.subf %241, %244 : vector<32x32xf32>
    %246 = math.exp %245 : vector<32x32xf32>
    %cst_73 = arith.constant dense<0.000000e+00> : vector<32xf32>
    %247 = vector.multi_reduction <add>, %246, %cst_73 [1] : vector<32x32xf32> to vector<32xf32>
    %248 = vector.shape_cast %247 : vector<32xf32> to vector<32x1xf32>
    %249 = tpu.reciprocal %248 {approx = true} : vector<32x1xf32> -> vector<32x1xf32>
    %250 = vector.broadcast %249 : vector<32x1xf32> to vector<32x32xf32>
    %251 = arith.mulf %246, %250 : vector<32x32xf32>
    %252 = vector.extract_strided_slice %225 {offsets = [0, 0], sizes = [32, 8], strides = [1, 1]} : vector<32x32xf32> to vector<32x8xf32>
    %cst_74 = arith.constant dense<0.000000e+00> : vector<32x8xf32>
    %253 = tpu.matmul %251, %252, %cst_74 {dimension_numbers = #tpu.dot_dimension_numbers<[1], [0], [0], [1], [0, 0, 1, 1], [], []>} : vector<32x32xf32>, vector<32x8xf32>, vector<32x8xf32> -> vector<32x8xf32>
    %254 = vector.extract_strided_slice %230 {offsets = [0, 1], sizes = [32, 1], strides = [1, 1]} : vector<32x4xf32> to vector<32x1xf32>
    %255 = vector.extract_strided_slice %229 {offsets = [1, 0], sizes = [1, 32], strides = [1, 1]} : vector<4x32xf32> to vector<1x32xf32>
    %256 = vector.broadcast %254 : vector<32x1xf32> to vector<32x32xf32>
    %257 = vector.broadcast %255 : vector<1x32xf32> to vector<32x32xf32>
    %258 = arith.addf %256, %257 : vector<32x32xf32>
    %cst_75 = arith.constant 0.000000e+00 : f32
    %259 = vector.broadcast %cst_75 : f32 to vector<32x32xf32>
    %260 = arith.cmpf oge, %258, %259 : vector<32x32xf32>
    %cst_76 = arith.constant 2.000000e-01 : f32
    %261 = vector.broadcast %cst_76 : f32 to vector<32x32xf32>
    %262 = arith.mulf %261, %258 : vector<32x32xf32>
    %263 = arith.select %260, %258, %262 : vector<32x32xi1>, vector<32x32xf32>
    %264 = arith.addf %263, %0 : vector<32x32xf32>
    %cst_77 = arith.constant dense<0xFF800000> : vector<32xf32>
    %265 = vector.multi_reduction <maximumf>, %264, %cst_77 [1] : vector<32x32xf32> to vector<32xf32>
    %266 = vector.shape_cast %265 : vector<32xf32> to vector<32x1xf32>
    %267 = vector.broadcast %266 : vector<32x1xf32> to vector<32x32xf32>
    %268 = arith.subf %264, %267 : vector<32x32xf32>
    %269 = math.exp %268 : vector<32x32xf32>
    %cst_78 = arith.constant dense<0.000000e+00> : vector<32xf32>
    %270 = vector.multi_reduction <add>, %269, %cst_78 [1] : vector<32x32xf32> to vector<32xf32>
    %271 = vector.shape_cast %270 : vector<32xf32> to vector<32x1xf32>
    %272 = tpu.reciprocal %271 {approx = true} : vector<32x1xf32> -> vector<32x1xf32>
    %273 = vector.broadcast %272 : vector<32x1xf32> to vector<32x32xf32>
    %274 = arith.mulf %269, %273 : vector<32x32xf32>
    %275 = vector.extract_strided_slice %225 {offsets = [0, 8], sizes = [32, 8], strides = [1, 1]} : vector<32x32xf32> to vector<32x8xf32>
    %cst_79 = arith.constant dense<0.000000e+00> : vector<32x8xf32>
    %276 = tpu.matmul %274, %275, %cst_79 {dimension_numbers = #tpu.dot_dimension_numbers<[1], [0], [0], [1], [0, 0, 1, 1], [], []>} : vector<32x32xf32>, vector<32x8xf32>, vector<32x8xf32> -> vector<32x8xf32>
    %277 = vector.extract_strided_slice %230 {offsets = [0, 2], sizes = [32, 1], strides = [1, 1]} : vector<32x4xf32> to vector<32x1xf32>
    %278 = vector.extract_strided_slice %229 {offsets = [2, 0], sizes = [1, 32], strides = [1, 1]} : vector<4x32xf32> to vector<1x32xf32>
    %279 = vector.broadcast %277 : vector<32x1xf32> to vector<32x32xf32>
    %280 = vector.broadcast %278 : vector<1x32xf32> to vector<32x32xf32>
    %281 = arith.addf %279, %280 : vector<32x32xf32>
    %cst_80 = arith.constant 0.000000e+00 : f32
    %282 = vector.broadcast %cst_80 : f32 to vector<32x32xf32>
    %283 = arith.cmpf oge, %281, %282 : vector<32x32xf32>
    %cst_81 = arith.constant 2.000000e-01 : f32
    %284 = vector.broadcast %cst_81 : f32 to vector<32x32xf32>
    %285 = arith.mulf %284, %281 : vector<32x32xf32>
    %286 = arith.select %283, %281, %285 : vector<32x32xi1>, vector<32x32xf32>
    %287 = arith.addf %286, %0 : vector<32x32xf32>
    %cst_82 = arith.constant dense<0xFF800000> : vector<32xf32>
    %288 = vector.multi_reduction <maximumf>, %287, %cst_82 [1] : vector<32x32xf32> to vector<32xf32>
    %289 = vector.shape_cast %288 : vector<32xf32> to vector<32x1xf32>
    %290 = vector.broadcast %289 : vector<32x1xf32> to vector<32x32xf32>
    %291 = arith.subf %287, %290 : vector<32x32xf32>
    %292 = math.exp %291 : vector<32x32xf32>
    %cst_83 = arith.constant dense<0.000000e+00> : vector<32xf32>
    %293 = vector.multi_reduction <add>, %292, %cst_83 [1] : vector<32x32xf32> to vector<32xf32>
    %294 = vector.shape_cast %293 : vector<32xf32> to vector<32x1xf32>
    %295 = tpu.reciprocal %294 {approx = true} : vector<32x1xf32> -> vector<32x1xf32>
    %296 = vector.broadcast %295 : vector<32x1xf32> to vector<32x32xf32>
    %297 = arith.mulf %292, %296 : vector<32x32xf32>
    %298 = vector.extract_strided_slice %225 {offsets = [0, 16], sizes = [32, 8], strides = [1, 1]} : vector<32x32xf32> to vector<32x8xf32>
    %cst_84 = arith.constant dense<0.000000e+00> : vector<32x8xf32>
    %299 = tpu.matmul %297, %298, %cst_84 {dimension_numbers = #tpu.dot_dimension_numbers<[1], [0], [0], [1], [0, 0, 1, 1], [], []>} : vector<32x32xf32>, vector<32x8xf32>, vector<32x8xf32> -> vector<32x8xf32>
    %300 = vector.extract_strided_slice %230 {offsets = [0, 3], sizes = [32, 1], strides = [1, 1]} : vector<32x4xf32> to vector<32x1xf32>
    %301 = vector.extract_strided_slice %229 {offsets = [3, 0], sizes = [1, 32], strides = [1, 1]} : vector<4x32xf32> to vector<1x32xf32>
    %302 = vector.broadcast %300 : vector<32x1xf32> to vector<32x32xf32>
    %303 = vector.broadcast %301 : vector<1x32xf32> to vector<32x32xf32>
    %304 = arith.addf %302, %303 : vector<32x32xf32>
    %cst_85 = arith.constant 0.000000e+00 : f32
    %305 = vector.broadcast %cst_85 : f32 to vector<32x32xf32>
    %306 = arith.cmpf oge, %304, %305 : vector<32x32xf32>
    %cst_86 = arith.constant 2.000000e-01 : f32
    %307 = vector.broadcast %cst_86 : f32 to vector<32x32xf32>
    %308 = arith.mulf %307, %304 : vector<32x32xf32>
    %309 = arith.select %306, %304, %308 : vector<32x32xi1>, vector<32x32xf32>
    %310 = arith.addf %309, %0 : vector<32x32xf32>
    %cst_87 = arith.constant dense<0xFF800000> : vector<32xf32>
    %311 = vector.multi_reduction <maximumf>, %310, %cst_87 [1] : vector<32x32xf32> to vector<32xf32>
    %312 = vector.shape_cast %311 : vector<32xf32> to vector<32x1xf32>
    %313 = vector.broadcast %312 : vector<32x1xf32> to vector<32x32xf32>
    %314 = arith.subf %310, %313 : vector<32x32xf32>
    %315 = math.exp %314 : vector<32x32xf32>
    %cst_88 = arith.constant dense<0.000000e+00> : vector<32xf32>
    %316 = vector.multi_reduction <add>, %315, %cst_88 [1] : vector<32x32xf32> to vector<32xf32>
    %317 = vector.shape_cast %316 : vector<32xf32> to vector<32x1xf32>
    %318 = tpu.reciprocal %317 {approx = true} : vector<32x1xf32> -> vector<32x1xf32>
    %319 = vector.broadcast %318 : vector<32x1xf32> to vector<32x32xf32>
    %320 = arith.mulf %315, %319 : vector<32x32xf32>
    %321 = vector.extract_strided_slice %225 {offsets = [0, 24], sizes = [32, 8], strides = [1, 1]} : vector<32x32xf32> to vector<32x8xf32>
    %cst_89 = arith.constant dense<0.000000e+00> : vector<32x8xf32>
    %322 = tpu.matmul %320, %321, %cst_89 {dimension_numbers = #tpu.dot_dimension_numbers<[1], [0], [0], [1], [0, 0, 1, 1], [], []>} : vector<32x32xf32>, vector<32x8xf32>, vector<32x8xf32> -> vector<32x8xf32>
    %c0_90 = arith.constant 0 : index
    %c0_91 = arith.constant 0 : index
    %323 = vector.load %arg10[%c0_90, %c0_91] : memref<1x32xf32, #tpu.memory_space<vmem>>, vector<1x32xf32>
    %cst_92 = arith.constant 0.000000e+00 : f32
    %324 = vector.broadcast %cst_92 : f32 to vector<32x8xf32>
    %325 = arith.addf %324, %253 : vector<32x8xf32>
    %326 = vector.extract_strided_slice %323 {offsets = [0, 0], sizes = [1, 8], strides = [1, 1]} : vector<1x32xf32> to vector<1x8xf32>
    %327 = vector.broadcast %326 : vector<1x8xf32> to vector<32x8xf32>
    %328 = arith.addf %325, %327 : vector<32x8xf32>
    %329 = arith.addf %328, %276 : vector<32x8xf32>
    %330 = vector.extract_strided_slice %323 {offsets = [0, 8], sizes = [1, 8], strides = [1, 1]} : vector<1x32xf32> to vector<1x8xf32>
    %331 = vector.broadcast %330 : vector<1x8xf32> to vector<32x8xf32>
    %332 = arith.addf %329, %331 : vector<32x8xf32>
    %333 = arith.addf %332, %299 : vector<32x8xf32>
    %334 = vector.extract_strided_slice %323 {offsets = [0, 16], sizes = [1, 8], strides = [1, 1]} : vector<1x32xf32> to vector<1x8xf32>
    %335 = vector.broadcast %334 : vector<1x8xf32> to vector<32x8xf32>
    %336 = arith.addf %333, %335 : vector<32x8xf32>
    %337 = arith.addf %336, %322 : vector<32x8xf32>
    %338 = vector.extract_strided_slice %323 {offsets = [0, 24], sizes = [1, 8], strides = [1, 1]} : vector<1x32xf32> to vector<1x8xf32>
    %339 = vector.broadcast %338 : vector<1x8xf32> to vector<32x8xf32>
    %340 = arith.addf %337, %339 : vector<32x8xf32>
    %cst_93 = arith.constant 2.500000e-01 : f32
    %341 = vector.broadcast %cst_93 : f32 to vector<32x8xf32>
    %342 = arith.mulf %340, %341 : vector<32x8xf32>
    %c0_94 = arith.constant 0 : index
    %c0_95 = arith.constant 0 : index
    %343 = vector.load %arg11[%c0_94, %c0_95] : memref<32x8xf32, #tpu.memory_space<vmem>>, vector<32x8xf32>
    tpu.vector_store %arg11[%c0_94, %c0_95], %342 {strides = array<i32>} : memref<32x8xf32, #tpu.memory_space<vmem>>, vector<32x8xf32>,
    return
  }
}

</mosaic_0001>

<llo_original>
// kernel: gat_forward.1
$region0: #{gat_forward.1}
  #allocation0 [shape = 'u32[]', space=smem, size = 0x4, offset = 0x4, fixed_abs, tag = 'smem constant byte address 0x4 - core index']
  #allocation1 [shape = 'u32[144,128]{1,0:T(1,128)}', space=vmem, size = 0x12000, scoped, tag = 'internal scratch']
  %s0 = inlined_call_operand.vmem [shape: f32[32,32], index: 0, kind: input, shape index: {}]
  %s1 = inlined_call_operand.vmem [shape: f32[32,16], index: 1, kind: input, shape index: {}]
  %s2 = inlined_call_operand.vmem [shape: f32[16,64], index: 2, kind: input, shape index: {}]
  %s3 = inlined_call_operand.vmem [shape: f32[64,8], index: 3, kind: input, shape index: {}]
  %s4 = inlined_call_operand.vmem [shape: f32[1,64], index: 4, kind: input, shape index: {}]
  %s5 = inlined_call_operand.vmem [shape: f32[64,64], index: 5, kind: input, shape index: {}]
  %s6 = inlined_call_operand.vmem [shape: f32[64,8], index: 6, kind: input, shape index: {}]
  %s7 = inlined_call_operand.vmem [shape: f32[1,64], index: 7, kind: input, shape index: {}]
  %s8 = inlined_call_operand.vmem [shape: f32[64,32], index: 8, kind: input, shape index: {}]
  %s9 = inlined_call_operand.vmem [shape: f32[32,8], index: 9, kind: input, shape index: {}]
  %s10 = inlined_call_operand.vmem [shape: f32[1,32], index: 10, kind: input, shape index: {}]
  %s11 = inlined_call_operand.vmem [shape: f32[32,8], index: 11, kind: output, shape index: {}]
  %s12 = sld [smem:[#allocation0]]
  $region54: #{gat_forward.1} parent=0
    _
  %s14 = ssub.s32 1, %s12
  %s15 = scalar_select 0, %s14, %s12
  // Predicated region
  $region2: #{gat_forward.1} parent=0 // pred_check
    _
  $region3: #{gat_forward.1} parent=0 // pred_check_branch
    %17 = sbr.rel (0) target = $region5
  $region4: #{gat_forward.1} parent=0 // pred_region
    _
  $region5: #{gat_forward.1} parent=0 // pred_fallthru
    _
  // Predicated region
  $region6: #{gat_forward.1} parent=0 // pred_check
    _
  $region7: #{gat_forward.1} parent=0 // pred_check_branch
    %19 = sbr.rel (0) target = $region9
  $region8: #{gat_forward.1} parent=0 // pred_region
    _
  $region9: #{gat_forward.1} parent=0 // pred_fallthru
    _
  // Predicated region
  $region10: #{gat_forward.1} parent=0 // pred_check
    _
  $region11: #{gat_forward.1} parent=0 // pred_check_branch
    %21 = sbr.rel (0) target = $region13
  $region12: #{gat_forward.1} parent=0 // pred_region
    _
  $region13: #{gat_forward.1} parent=0 // pred_fallthru
    _
  // Predicated region
  $region14: #{gat_forward.1} parent=0 // pred_check
    _
  $region15: #{gat_forward.1} parent=0 // pred_check_branch
    %23 = sbr.rel (0) target = $region17
  $region16: #{gat_forward.1} parent=0 // pred_region
    _
  $region17: #{gat_forward.1} parent=0 // pred_fallthru
    _
  // Predicated region
  $region18: #{gat_forward.1} parent=0 // pred_check
    _
  $region19: #{gat_forward.1} parent=0 // pred_check_branch
    %25 = sbr.rel (0) target = $region21
  $region20: #{gat_forward.1} parent=0 // pred_region
    _
  $region21: #{gat_forward.1} parent=0 // pred_fallthru
    _
  // Predicated region
  $region22: #{gat_forward.1} parent=0 // pred_check
    _
  $region23: #{gat_forward.1} parent=0 // pred_check_branch
    %27 = sbr.rel (0) target = $region25
  $region24: #{gat_forward.1} parent=0 // pred_region
    _
  $region25: #{gat_forward.1} parent=0 // pred_fallthru
    _
  // Predicated region
  $region26: #{gat_forward.1} parent=0 // pred_check
    _
  $region27: #{gat_forward.1} parent=0 // pred_check_branch
    %29 = sbr.rel (0) target = $region29
  $region28: #{gat_forward.1} parent=0 // pred_region
    _
  $region29: #{gat_forward.1} parent=0 // pred_fallthru
    _
  // Predicated region
  $region30: #{gat_forward.1} parent=0 // pred_check
    _
  $region31: #{gat_forward.1} parent=0 // pred_check_branch
    %31 = sbr.rel (0) target = $region33
  $region32: #{gat_forward.1} parent=0 // pred_region
    _
  $region33: #{gat_forward.1} parent=0 // pred_fallthru
    _
  // Predicated region
  $region34: #{gat_forward.1} parent=0 // pred_check
    _
  $region35: #{gat_forward.1} parent=0 // pred_check_branch
    %33 = sbr.rel (0) target = $region37
  $region36: #{gat_forward.1} parent=0 // pred_region
    _
  $region37: #{gat_forward.1} parent=0 // pred_fallthru
    _
  // Predicated region
  $region38: #{gat_forward.1} parent=0 // pred_check
    _
  $region39: #{gat_forward.1} parent=0 // pred_check_branch
    %35 = sbr.rel (0) target = $region41
  $region40: #{gat_forward.1} parent=0 // pred_region
    _
  $region41: #{gat_forward.1} parent=0 // pred_fallthru
    _
  // Predicated region
  $region42: #{gat_forward.1} parent=0 // pred_check
    _
  $region43: #{gat_forward.1} parent=0 // pred_check_branch
    %37 = sbr.rel (0) target = $region45
  $region44: #{gat_forward.1} parent=0 // pred_region
    _
  $region45: #{gat_forward.1} parent=0 // pred_fallthru
    _
  %v38 = vld [vmem:[%s0] sm:$0xff]
  %v39 = vld [vmem:[%s0 + $0x8] sm:$0xff]
  %v40 = vld [vmem:[%s0 + $0x10] sm:$0xff]
  %v41 = vld [vmem:[%s0 + $0x18] sm:$0xff]
  %v42 = vld [vmem:[%s1] sm:$0xff]
  %v43 = vld [vmem:[%s1 + $0x8] sm:$0xff]
  %v44 = vld [vmem:[%s1 + $0x10] sm:$0xff]
  %v45 = vld [vmem:[%s1 + $0x18] sm:$0xff]
  %v46 = vld [vmem:[%s2] sm:$0xff]
  %v47 = vld [vmem:[%s2 + $0x8] sm:$0xff]
  %vm48 = vcmask 130048
  %v50 = vsel %vm48, %v42, 0
  %v53 = vsel %vm48, %v43, 0
  %v56 = vsel %vm48, %v44, 0
  %v59 = vsel %vm48, %v45, 0
  %61 = vmatprep.subr.mxu0 0.0
  %62 = vmatpush1.msra.mxu0 0.0
  %63 = vmatprep.subr.mxu0 0.0
  %64 = vmatpush1.msra.mxu0 0.0
  %65 = vmatprep.subr.mxu0 0.0
  %66 = vmatpush1.msra.mxu0 0.0
  %67 = vmatprep.subr.mxu0 0.0
  %68 = vmatpush1.msra.mxu0 0.0
  %69 = vmatprep.subr.mxu0 0.0
  %70 = vmatpush1.msra.mxu0 0.0
  %71 = vmatprep.subr.mxu0 0.0
  %72 = vmatpush1.msra.mxu0 0.0
  %73 = vmatprep.subr.mxu0 0.0
  %74 = vmatpush1.msra.mxu0 0.0
  %75 = vmatprep.subr.mxu0 0.0
  %76 = vmatpush1.msra.mxu0 0.0
  %77 = vmatprep.subr.mxu0 0.0
  %78 = vmatpush1.msra.mxu0 0.0
  %79 = vmatprep.subr.mxu0 0.0
  %80 = vmatpush1.msra.mxu0 0.0
  %81 = vmatprep.subr.mxu0 0.0
  %82 = vmatpush1.msra.mxu0 0.0
  %83 = vmatprep.subr.mxu0 0.0
  %84 = vmatpush1.msra.mxu0 0.0
  %85 = vmatprep.subr.mxu0 0.0
  %86 = vmatpush1.msra.mxu0 0.0
  %87 = vmatprep.subr.mxu0 0.0
  %88 = vmatpush1.msra.mxu0 0.0
  %89 = vmatprep.subr.mxu0 0.0
  %90 = vmatpush1.msra.mxu0 %v47
  %91 = vmatprep.subr.mxu0 0.0
  %92 = vmatpush1.msra.mxu0 %v46
  %93 = vmatprep.subr.mxu0 0.0
  %94 = vmatpush2.msra.mxu0 0.0
  %95 = vmatprep.subr.mxu0 0.0
  %96 = vmatpush2.msra.mxu0 0.0
  %97 = vmatprep.subr.mxu0 0.0
  %98 = vmatpush2.msra.mxu0 0.0
  %99 = vmatprep.subr.mxu0 0.0
  %100 = vmatpush2.msra.mxu0 0.0
  %101 = vmatprep.subr.mxu0 0.0
  %102 = vmatpush2.msra.mxu0 0.0
  %103 = vmatprep.subr.mxu0 0.0
  %104 = vmatpush2.msra.mxu0 0.0
  %105 = vmatprep.subr.mxu0 0.0
  %106 = vmatpush2.msra.mxu0 0.0
  %107 = vmatprep.subr.mxu0 0.0
  %108 = vmatpush2.msra.mxu0 0.0
  %109 = vmatprep.subr.mxu0 0.0
  %110 = vmatpush2.msra.mxu0 0.0
  %111 = vmatprep.subr.mxu0 0.0
  %112 = vmatpush2.msra.mxu0 0.0
  %113 = vmatprep.subr.mxu0 0.0
  %114 = vmatpush2.msra.mxu0 0.0
  %115 = vmatprep.subr.mxu0 0.0
  %116 = vmatpush2.msra.mxu0 0.0
  %117 = vmatprep.subr.mxu0 0.0
  %118 = vmatpush2.msra.mxu0 0.0
  %119 = vmatprep.subr.mxu0 0.0
  %120 = vmatpush2.msra.mxu0 0.0
  %121 = vmatprep.subr.mxu0 0.0
  %122 = vmatpush2.msra.mxu0 0.0
  %123 = vmatprep.subr.mxu0 0.0
  %124 = vmatpush2.msra.mxu0 0.0
  %125 = vmatprep.mubr.f32.mxu0 0.0
  %126 = vmatmul.mubr.f32.gmra.mxu0 %v50
  %v127 = vpop.f32.mrf.mxu0
  %v128 = vadd.f32 0.0, %v127
  %v129 = vpop.f32.mrf.mxu0
  %130 = vmatprep.mubr.f32.mxu0 0.0
  %131 = vmatmul.mubr.f32.gmra.mxu0 %v53
  %v132 = vpop.f32.mrf.mxu0
  %v133 = vadd.f32 0.0, %v132
  %v134 = vpop.f32.mrf.mxu0
  %135 = vmatprep.mubr.f32.mxu0 0.0
  %136 = vmatmul.mubr.f32.gmra.mxu0 %v56
  %v137 = vpop.f32.mrf.mxu0
  %v138 = vadd.f32 0.0, %v137
  %v139 = vpop.f32.mrf.mxu0
  %140 = vmatprep.mubr.f32.mxu0 0.0
  %141 = vmatmul.mubr.f32.gmra.mxu0 %v59
  %v142 = vpop.f32.mrf.mxu0
  %v143 = vadd.f32 0.0, %v142
  %v144 = vpop.f32.mrf.mxu0
  %145 = vdwg.mxu0
  %v146 = vld [vmem:[%s3] sm:$0xff]
  %v147 = vld [vmem:[%s3 + $0x8] sm:$0xff]
  %v148 = vld [vmem:[%s3 + $0x10] sm:$0xff]
  %v149 = vld [vmem:[%s3 + $0x18] sm:$0xff]
  %v150 = vld [vmem:[%s3 + $0x20] sm:$0xff]
  %v151 = vld [vmem:[%s3 + $0x28] sm:$0xff]
  %v152 = vld [vmem:[%s3 + $0x30] sm:$0xff]
  %v153 = vld [vmem:[%s3 + $0x38] sm:$0xff]
  %vm154 = vcmask 523264
  %v156 = vsel %vm154, %v128, 0
  %v159 = vsel %vm154, %v133, 0
  %v162 = vsel %vm154, %v138, 0
  %v165 = vsel %vm154, %v143, 0
  %167 = vmatprep.subr.mxu0 0.0
  %168 = vmatpush1.msra.mxu0 0.0
  %169 = vmatprep.subr.mxu0 0.0
  %170 = vmatpush1.msra.mxu0 0.0
  %171 = vmatprep.subr.mxu0 0.0
  %172 = vmatpush1.msra.mxu0 0.0
  %173 = vmatprep.subr.mxu0 0.0
  %174 = vmatpush1.msra.mxu0 0.0
  %175 = vmatprep.subr.mxu0 0.0
  %176 = vmatpush1.msra.mxu0 0.0
  %177 = vmatprep.subr.mxu0 0.0
  %178 = vmatpush1.msra.mxu0 0.0
  %179 = vmatprep.subr.mxu0 0.0
  %180 = vmatpush1.msra.mxu0 0.0
  %181 = vmatprep.subr.mxu0 0.0
  %182 = vmatpush1.msra.mxu0 0.0
  %183 = vmatprep.subr.mxu0 0.0
  %184 = vmatpush1.msra.mxu0 %v153
  %185 = vmatprep.subr.mxu0 0.0
  %186 = vmatpush1.msra.mxu0 %v152
  %187 = vmatprep.subr.mxu0 0.0
  %188 = vmatpush1.msra.mxu0 %v151
  %189 = vmatprep.subr.mxu0 0.0
  %190 = vmatpush1.msra.mxu0 %v150
  %191 = vmatprep.subr.mxu0 0.0
  %192 = vmatpush1.msra.mxu0 %v149
  %193 = vmatprep.subr.mxu0 0.0
  %194 = vmatpush1.msra.mxu0 %v148
  %195 = vmatprep.subr.mxu0 0.0
  %196 = vmatpush1.msra.mxu0 %v147
  %197 = vmatprep.subr.mxu0 0.0
  %198 = vmatpush1.msra.mxu0 %v146
  %199 = vmatprep.subr.mxu0 0.0
  %200 = vmatpush2.msra.mxu0 0.0
  %201 = vmatprep.subr.mxu0 0.0
  %202 = vmatpush2.msra.mxu0 0.0
  %203 = vmatprep.subr.mxu0 0.0
  %204 = vmatpush2.msra.mxu0 0.0
  %205 = vmatprep.subr.mxu0 0.0
  %206 = vmatpush2.msra.mxu0 0.0
  %207 = vmatprep.subr.mxu0 0.0
  %208 = vmatpush2.msra.mxu0 0.0
  %209 = vmatprep.subr.mxu0 0.0
  %210 = vmatpush2.msra.mxu0 0.0
  %211 = vmatprep.subr.mxu0 0.0
  %212 = vmatpush2.msra.mxu0 0.0
  %213 = vmatprep.subr.mxu0 0.0
  %214 = vmatpush2.msra.mxu0 0.0
  %215 = vmatprep.subr.mxu0 0.0
  %216 = vmatpush2.msra.mxu0 0.0
  %217 = vmatprep.subr.mxu0 0.0
  %218 = vmatpush2.msra.mxu0 0.0
  %219 = vmatprep.subr.mxu0 0.0
  %220 = vmatpush2.msra.mxu0 0.0
  %221 = vmatprep.subr.mxu0 0.0
  %222 = vmatpush2.msra.mxu0 0.0
  %223 = vmatprep.subr.mxu0 0.0
  %224 = vmatpush2.msra.mxu0 0.0
  %225 = vmatprep.subr.mxu0 0.0
  %226 = vmatpush2.msra.mxu0 0.0
  %227 = vmatprep.subr.mxu0 0.0
  %228 = vmatpush2.msra.mxu0 0.0
  %229 = vmatprep.subr.mxu0 0.0
  %230 = vmatpush2.msra.mxu0 0.0
  %231 = vmatprep.mubr.f32.mxu0 0.0
  %232 = vmatmul.mubr.f32.gmra.mxu0 %v156
  %v233 = vpop.f32.mrf.mxu0
  %v234 = vadd.f32 0.0, %v233
  %v235 = vpop.f32.mrf.mxu0
  %236 = vmatprep.mubr.f32.mxu0 0.0
  %237 = vmatmul.mubr.f32.gmra.mxu0 %v159
  %v238 = vpop.f32.mrf.mxu0
  %v239 = vadd.f32 0.0, %v238
  %v240 = vpop.f32.mrf.mxu0
  %241 = vmatprep.mubr.f32.mxu0 0.0
  %242 = vmatmul.mubr.f32.gmra.mxu0 %v162
  %v243 = vpop.f32.mrf.mxu0
  %v244 = vadd.f32 0.0, %v243
  %v245 = vpop.f32.mrf.mxu0
  %246 = vmatprep.mubr.f32.mxu0 0.0
  %247 = vmatmul.mubr.f32.gmra.mxu0 %v165
  %v248 = vpop.f32.mrf.mxu0
  %v249 = vadd.f32 0.0, %v248
  %v250 = vpop.f32.mrf.mxu0
  %251 = vdwg.mxu0
  %252 = vxpose.xlu0.b32.start [1/16] %v234, 128
  %253 = vxpose.xlu0.b32.cont [2/16] %v239, 128
  %254 = vxpose.xlu0.b32.cont [3/16] %v244, 128
  %255 = vxpose.xlu0.b32.cont [4/16] %v249, 128
  %256 = vxpose.xlu0.b32.cont [5/16] 0.0, 128
  %257 = vxpose.xlu0.b32.cont [6/16] 0.0, 128
  %258 = vxpose.xlu0.b32.cont [7/16] 0.0, 128
  %259 = vxpose.xlu0.b32.cont [8/16] 0.0, 128
  %260 = vxpose.xlu0.b32.cont [9/16] 0.0, 128
  %261 = vxpose.xlu0.b32.cont [10/16] 0.0, 128
  %262 = vxpose.xlu0.b32.cont [11/16] 0.0, 128
  %263 = vxpose.xlu0.b32.cont [12/16] 0.0, 128
  %264 = vxpose.xlu0.b32.cont [13/16] 0.0, 128
  %265 = vxpose.xlu0.b32.cont [14/16] 0.0, 128
  %266 = vxpose.xlu0.b32.cont [15/16] 0.0, 128
  %267 = vxpose.xlu0.b32.end [16/16] 0.0, 128
  %v268 = vpop.trf.xlu0
  %v269 = vpop.trf.xlu0
  %v270 = vpop.trf.xlu0
  %v271 = vpop.trf.xlu0
  %v272 = vpop.trf.xlu0
  %v273 = vpop.trf.xlu0
  %v274 = vpop.trf.xlu0
  %v275 = vpop.trf.xlu0
  %v276 = vpop.trf.xlu0
  %v277 = vpop.trf.xlu0
  %v278 = vpop.trf.xlu0
  %v279 = vpop.trf.xlu0
  %v280 = vpop.trf.xlu0
  %v281 = vpop.trf.xlu0
  %v282 = vpop.trf.xlu0
  %v283 = vpop.trf.xlu0
  %285 = vset.pattern.permute.xlu0 4
  %286 = vperm.xlu0 %285, %v234
  %v287 = vpop.permute.xlu0 %286
  %290 = vset.pattern.permute.xlu0 4
  %291 = vperm.xlu0 %290, %v239
  %v292 = vpop.permute.xlu0 %291
  %295 = vset.pattern.permute.xlu0 4
  %296 = vperm.xlu0 %295, %v244
  %v297 = vpop.permute.xlu0 %296
  %300 = vset.pattern.permute.xlu0 4
  %301 = vperm.xlu0 %300, %v249
  %v302 = vpop.permute.xlu0 %301
  %v304 = vlaneseq
  %v305 = vshrl.u32 %v304, 7
  %v306 = vsub.s32 0, %v305
  %v307 = vrot.slane %v268, %v306
  %v308 = vadd.f32 %v287, %v307
  %v309 = vadd.f32 %v292, %v307
  %v310 = vadd.f32 %v297, %v307
  %v311 = vadd.f32 %v302, %v307
  %vm312 = vcmp.ge.f32.partialorder %v308, 0.0
  %vm313 = vcmp.ge.f32.partialorder %v309, 0.0
  %vm314 = vcmp.ge.f32.partialorder %v310, 0.0
  %vm315 = vcmp.ge.f32.partialorder %v311, 0.0
  %v316 = vmul.f32 %v308, 0.2
  %v317 = vmul.f32 %v309, 0.2
  %v318 = vmul.f32 %v310, 0.2
  %v319 = vmul.f32 %v311, 0.2
  %v320 = vsel %vm312, %v308, %v316
  %v321 = vsel %vm313, %v309, %v317
  %v322 = vsel %vm314, %v310, %v318
  %v323 = vsel %vm315, %v311, %v319
  %v324 = vadd.f32 %v320, %v38
  %v325 = vadd.f32 %v321, %v39
  %v326 = vadd.f32 %v322, %v40
  %v327 = vadd.f32 %v323, %v41
  %vm328 = vcmask 261120
  %v329 = vsel %vm328, %v324, -inf
  %330 = vmax.xlane.f32.xlu0 %v329
  %v331 = vpop.xlane.xlu0 %330
  %v332 = vsel %vm328, %v325, -inf
  %333 = vmax.xlane.f32.xlu0 %v332
  %v334 = vpop.xlane.xlu0 %333
  %v335 = vsel %vm328, %v326, -inf
  %336 = vmax.xlane.f32.xlu0 %v335
  %v337 = vpop.xlane.xlu0 %336
  %v338 = vsel %vm328, %v327, -inf
  %339 = vmax.xlane.f32.xlu0 %v338
  %v340 = vpop.xlane.xlu0 %339
  %v341 = vsub.f32 %v324, %v331
  %v342 = vsub.f32 %v325, %v334
  %v343 = vsub.f32 %v326, %v337
  %v344 = vsub.f32 %v327, %v340
  %v345 = vmul.f32 %v341, 1.442695
  %v346 = vpow.pop %v345
  %v347 = vmul.f32 %v342, 1.442695
  %v348 = vpow.pop %v347
  %v349 = vmul.f32 %v343, 1.442695
  %v350 = vpow.pop %v349
  %v351 = vmul.f32 %v344, 1.442695
  %v352 = vpow.pop %v351
  %v353 = vsel %vm328, %v346, 0.0
  %354 = vadd.xlane.f32.xlu0 %v353
  %v355 = vpop.xlane.xlu0 %354
  %v356 = vsel %vm328, %v348, 0.0
  %357 = vadd.xlane.f32.xlu0 %v356
  %v358 = vpop.xlane.xlu0 %357
  %v359 = vsel %vm328, %v350, 0.0
  %360 = vadd.xlane.f32.xlu0 %v359
  %v361 = vpop.xlane.xlu0 %360
  %v362 = vsel %vm328, %v352, 0.0
  %363 = vadd.xlane.f32.xlu0 %v362
  %v364 = vpop.xlane.xlu0 %363
  %v365 = vrcp.pop %v355
  %v366 = vrcp.pop %v358
  %v367 = vrcp.pop %v361
  %v368 = vrcp.pop %v364
  %v369 = vmul.f32 %v346, %v365
  %v370 = vmul.f32 %v348, %v366
  %v371 = vmul.f32 %v350, %v367
  %v372 = vmul.f32 %v352, %v368
  %v374 = vsel %vm328, %v369, 0
  %v377 = vsel %vm328, %v370, 0
  %v380 = vsel %vm328, %v371, 0
  %v383 = vsel %vm328, %v372, 0
  %385 = vmatprep.subr.mxu0 0.0
  %386 = vmatpush1.msra.mxu0 0.0
  %387 = vmatprep.subr.mxu0 0.0
  %388 = vmatpush1.msra.mxu0 0.0
  %389 = vmatprep.subr.mxu0 0.0
  %390 = vmatpush1.msra.mxu0 0.0
  %391 = vmatprep.subr.mxu0 0.0
  %392 = vmatpush1.msra.mxu0 0.0
  %393 = vmatprep.subr.mxu0 0.0
  %394 = vmatpush1.msra.mxu0 0.0
  %395 = vmatprep.subr.mxu0 0.0
  %396 = vmatpush1.msra.mxu0 0.0
  %397 = vmatprep.subr.mxu0 0.0
  %398 = vmatpush1.msra.mxu0 0.0
  %399 = vmatprep.subr.mxu0 0.0
  %400 = vmatpush1.msra.mxu0 0.0
  %401 = vmatprep.subr.mxu0 0.0
  %402 = vmatpush1.msra.mxu0 0.0
  %403 = vmatprep.subr.mxu0 0.0
  %404 = vmatpush1.msra.mxu0 0.0
  %405 = vmatprep.subr.mxu0 0.0
  %406 = vmatpush1.msra.mxu0 0.0
  %407 = vmatprep.subr.mxu0 0.0
  %408 = vmatpush1.msra.mxu0 0.0
  %409 = vmatprep.subr.mxu0 0.0
  %410 = vmatpush1.msra.mxu0 %v143
  %411 = vmatprep.subr.mxu0 0.0
  %412 = vmatpush1.msra.mxu0 %v138
  %413 = vmatprep.subr.mxu0 0.0
  %414 = vmatpush1.msra.mxu0 %v133
  %415 = vmatprep.subr.mxu0 0.0
  %416 = vmatpush1.msra.mxu0 %v128
  %417 = vmatprep.subr.mxu0 0.0
  %418 = vmatpush2.msra.mxu0 0.0
  %419 = vmatprep.subr.mxu0 0.0
  %420 = vmatpush2.msra.mxu0 0.0
  %421 = vmatprep.subr.mxu0 0.0
  %422 = vmatpush2.msra.mxu0 0.0
  %423 = vmatprep.subr.mxu0 0.0
  %424 = vmatpush2.msra.mxu0 0.0
  %425 = vmatprep.subr.mxu0 0.0
  %426 = vmatpush2.msra.mxu0 0.0
  %427 = vmatprep.subr.mxu0 0.0
  %428 = vmatpush2.msra.mxu0 0.0
  %429 = vmatprep.subr.mxu0 0.0
  %430 = vmatpush2.msra.mxu0 0.0
  %431 = vmatprep.subr.mxu0 0.0
  %432 = vmatpush2.msra.mxu0 0.0
  %433 = vmatprep.subr.mxu0 0.0
  %434 = vmatpush2.msra.mxu0 0.0
  %435 = vmatprep.subr.mxu0 0.0
  %436 = vmatpush2.msra.mxu0 0.0
  %437 = vmatprep.subr.mxu0 0.0
  %438 = vmatpush2.msra.mxu0 0.0
  %439 = vmatprep.subr.mxu0 0.0
  %440 = vmatpush2.msra.mxu0 0.0
  %441 = vmatprep.subr.mxu0 0.0
  %442 = vmatpush2.msra.mxu0 0.0
  %443 = vmatprep.subr.mxu0 0.0
  %444 = vmatpush2.msra.mxu0 0.0
  %445 = vmatprep.subr.mxu0 0.0
  %446 = vmatpush2.msra.mxu0 0.0
  %447 = vmatprep.subr.mxu0 0.0
  %448 = vmatpush2.msra.mxu0 0.0
  %449 = vmatprep.mubr.f32.mxu0 0.0
  %450 = vmatmul.mubr.f32.gmra.mxu0 %v374
  %v451 = vpop.f32.mrf.mxu0
  %v452 = vadd.f32 0.0, %v451
  %v453 = vpop.f32.mrf.mxu0
  %454 = vmatprep.mubr.f32.mxu0 0.0
  %455 = vmatmul.mubr.f32.gmra.mxu0 %v377
  %v456 = vpop.f32.mrf.mxu0
  %v457 = vadd.f32 0.0, %v456
  %v458 = vpop.f32.mrf.mxu0
  %459 = vmatprep.mubr.f32.mxu0 0.0
  %460 = vmatmul.mubr.f32.gmra.mxu0 %v380
  %v461 = vpop.f32.mrf.mxu0
  %v462 = vadd.f32 0.0, %v461
  %v463 = vpop.f32.mrf.mxu0
  %464 = vmatprep.mubr.f32.mxu0 0.0
  %465 = vmatmul.mubr.f32.gmra.mxu0 %v383
  %v466 = vpop.f32.mrf.mxu0
  %v467 = vadd.f32 0.0, %v466
  %v468 = vpop.f32.mrf.mxu0
  %469 = vdwg.mxu0
  %470 = vset.pattern.permute.xlu0 5
  %471 = vperm.xlu0 %470, %v234
  %v472 = vpop.permute.xlu0 %471
  %474 = vset.pattern.permute.xlu0 5
  %475 = vperm.xlu0 %474, %v239
  %v476 = vpop.permute.xlu0 %475
  %478 = vset.pattern.permute.xlu0 5
  %479 = vperm.xlu0 %478, %v244
  %v480 = vpop.permute.xlu0 %479
  %482 = vset.pattern.permute.xlu0 5
  %483 = vperm.xlu0 %482, %v249
  %v484 = vpop.permute.xlu0 %483
  %v486 = vlaneseq
  %v487 = vshrl.u32 %v486, 7
  %v488 = vsub.s32 1, %v487
  %v489 = vrot.slane %v268, %v488
  %v490 = vadd.f32 %v472, %v489
  %v491 = vadd.f32 %v476, %v489
  %v492 = vadd.f32 %v480, %v489
  %v493 = vadd.f32 %v484, %v489
  %vm494 = vcmp.ge.f32.partialorder %v490, 0.0
  %vm495 = vcmp.ge.f32.partialorder %v491, 0.0
  %vm496 = vcmp.ge.f32.partialorder %v492, 0.0
  %vm497 = vcmp.ge.f32.partialorder %v493, 0.0
  %v498 = vmul.f32 %v490, 0.2
  %v499 = vmul.f32 %v491, 0.2
  %v500 = vmul.f32 %v492, 0.2
  %v501 = vmul.f32 %v493, 0.2
  %v502 = vsel %vm494, %v490, %v498
  %v503 = vsel %vm495, %v491, %v499
  %v504 = vsel %vm496, %v492, %v500
  %v505 = vsel %vm497, %v493, %v501
  %v506 = vadd.f32 %v502, %v38
  %v507 = vadd.f32 %v503, %v39
  %v508 = vadd.f32 %v504, %v40
  %v509 = vadd.f32 %v505, %v41
  %v510 = vsel %vm328, %v506, -inf
  %511 = vmax.xlane.f32.xlu0 %v510
  %v512 = vpop.xlane.xlu0 %511
  %v513 = vsel %vm328, %v507, -inf
  %514 = vmax.xlane.f32.xlu0 %v513
  %v515 = vpop.xlane.xlu0 %514
  %v516 = vsel %vm328, %v508, -inf
  %517 = vmax.xlane.f32.xlu0 %v516
  %v518 = vpop.xlane.xlu0 %517
  %v519 = vsel %vm328, %v509, -inf
  %520 = vmax.xlane.f32.xlu0 %v519
  %v521 = vpop.xlane.xlu0 %520
  %v522 = vsub.f32 %v506, %v512
  %v523 = vsub.f32 %v507, %v515
  %v524 = vsub.f32 %v508, %v518
  %v525 = vsub.f32 %v509, %v521
  %v526 = vmul.f32 %v522, 1.442695
  %v527 = vpow.pop %v526
  %v528 = vmul.f32 %v523, 1.442695
  %v529 = vpow.pop %v528
  %v530 = vmul.f32 %v524, 1.442695
  %v531 = vpow.pop %v530
  %v532 = vmul.f32 %v525, 1.442695
  %v533 = vpow.pop %v532
  %v534 = vsel %vm328, %v527, 0.0
  %535 = vadd.xlane.f32.xlu0 %v534
  %v536 = vpop.xlane.xlu0 %535
  %v537 = vsel %vm328, %v529, 0.0
  %538 = vadd.xlane.f32.xlu0 %v537
  %v539 = vpop.xlane.xlu0 %538
  %v540 = vsel %vm328, %v531, 0.0
  %541 = vadd.xlane.f32.xlu0 %v540
  %v542 = vpop.xlane.xlu0 %541
  %v543 = vsel %vm328, %v533, 0.0
  %544 = vadd.xlane.f32.xlu0 %v543
  %v545 = vpop.xlane.xlu0 %544
  %v546 = vrcp.pop %v536
  %v547 = vrcp.pop %v539
  %v548 = vrcp.pop %v542
  %v549 = vrcp.pop %v545
  %v550 = vmul.f32 %v527, %v546
  %v551 = vmul.f32 %v529, %v547
  %v552 = vmul.f32 %v531, %v548
  %v553 = vmul.f32 %v533, %v549
  %554 = vrot.lane.b32.xlu0 %v128, 112
  %v555 = vpop.permute.xlu0 %554
  %556 = vrot.lane.b32.xlu0 %v133, 112
  %v557 = vpop.permute.xlu0 %556
  %558 = vrot.lane.b32.xlu0 %v138, 112
  %v559 = vpop.permute.xlu0 %558
  %560 = vrot.lane.b32.xlu0 %v143, 112
  %v561 = vpop.permute.xlu0 %560
  %v567 = vsel %vm328, %v550, 0
  %v570 = vsel %vm328, %v551, 0
  %v573 = vsel %vm328, %v552, 0
  %v576 = vsel %vm328, %v553, 0
  %578 = vmatprep.subr.mxu0 0.0
  %579 = vmatpush1.msra.mxu0 0.0
  %580 = vmatprep.subr.mxu0 0.0
  %581 = vmatpush1.msra.mxu0 0.0
  %582 = vmatprep.subr.mxu0 0.0
  %583 = vmatpush1.msra.mxu0 0.0
  %584 = vmatprep.subr.mxu0 0.0
  %585 = vmatpush1.msra.mxu0 0.0
  %586 = vmatprep.subr.mxu0 0.0
  %587 = vmatpush1.msra.mxu0 0.0
  %588 = vmatprep.subr.mxu0 0.0
  %589 = vmatpush1.msra.mxu0 0.0
  %590 = vmatprep.subr.mxu0 0.0
  %591 = vmatpush1.msra.mxu0 0.0
  %592 = vmatprep.subr.mxu0 0.0
  %593 = vmatpush1.msra.mxu0 0.0
  %594 = vmatprep.subr.mxu0 0.0
  %595 = vmatpush1.msra.mxu0 0.0
  %596 = vmatprep.subr.mxu0 0.0
  %597 = vmatpush1.msra.mxu0 0.0
  %598 = vmatprep.subr.mxu0 0.0
  %599 = vmatpush1.msra.mxu0 0.0
  %600 = vmatprep.subr.mxu0 0.0
  %601 = vmatpush1.msra.mxu0 0.0
  %602 = vmatprep.subr.mxu0 0.0
  %603 = vmatpush1.msra.mxu0 %v561
  %604 = vmatprep.subr.mxu0 0.0
  %605 = vmatpush1.msra.mxu0 %v559
  %606 = vmatprep.subr.mxu0 0.0
  %607 = vmatpush1.msra.mxu0 %v557
  %608 = vmatprep.subr.mxu0 0.0
  %609 = vmatpush1.msra.mxu0 %v555
  %610 = vmatprep.subr.mxu0 0.0
  %611 = vmatpush2.msra.mxu0 0.0
  %612 = vmatprep.subr.mxu0 0.0
  %613 = vmatpush2.msra.mxu0 0.0
  %614 = vmatprep.subr.mxu0 0.0
  %615 = vmatpush2.msra.mxu0 0.0
  %616 = vmatprep.subr.mxu0 0.0
  %617 = vmatpush2.msra.mxu0 0.0
  %618 = vmatprep.subr.mxu0 0.0
  %619 = vmatpush2.msra.mxu0 0.0
  %620 = vmatprep.subr.mxu0 0.0
  %621 = vmatpush2.msra.mxu0 0.0
  %622 = vmatprep.subr.mxu0 0.0
  %623 = vmatpush2.msra.mxu0 0.0
  %624 = vmatprep.subr.mxu0 0.0
  %625 = vmatpush2.msra.mxu0 0.0
  %626 = vmatprep.subr.mxu0 0.0
  %627 = vmatpush2.msra.mxu0 0.0
  %628 = vmatprep.subr.mxu0 0.0
  %629 = vmatpush2.msra.mxu0 0.0
  %630 = vmatprep.subr.mxu0 0.0
  %631 = vmatpush2.msra.mxu0 0.0
  %632 = vmatprep.subr.mxu0 0.0
  %633 = vmatpush2.msra.mxu0 0.0
  %634 = vmatprep.subr.mxu0 0.0
  %635 = vmatpush2.msra.mxu0 0.0
  %636 = vmatprep.subr.mxu0 0.0
  %637 = vmatpush2.msra.mxu0 0.0
  %638 = vmatprep.subr.mxu0 0.0
  %639 = vmatpush2.msra.mxu0 0.0
  %640 = vmatprep.subr.mxu0 0.0
  %641 = vmatpush2.msra.mxu0 0.0
  %642 = vmatprep.mubr.f32.mxu0 0.0
  %643 = vmatmul.mubr.f32.gmra.mxu0 %v567
  %v644 = vpop.f32.mrf.mxu0
  %v645 = vadd.f32 0.0, %v644
  %v646 = vpop.f32.mrf.mxu0
  %647 = vmatprep.mubr.f32.mxu0 0.0
  %648 = vmatmul.mubr.f32.gmra.mxu0 %v570
  %v649 = vpop.f32.mrf.mxu0
  %v650 = vadd.f32 0.0, %v649
  %v651 = vpop.f32.mrf.mxu0
  %652 = vmatprep.mubr.f32.mxu0 0.0
  %653 = vmatmul.mubr.f32.gmra.mxu0 %v573
  %v654 = vpop.f32.mrf.mxu0
  %v655 = vadd.f32 0.0, %v654
  %v656 = vpop.f32.mrf.mxu0
  %657 = vmatprep.mubr.f32.mxu0 0.0
  %658 = vmatmul.mubr.f32.gmra.mxu0 %v576
  %v659 = vpop.f32.mrf.mxu0
  %v660 = vadd.f32 0.0, %v659
  %v661 = vpop.f32.mrf.mxu0
  %662 = vdwg.mxu0
  %663 = vset.pattern.permute.xlu0 6
  %664 = vperm.xlu0 %663, %v234
  %v665 = vpop.permute.xlu0 %664
  %667 = vset.pattern.permute.xlu0 6
  %668 = vperm.xlu0 %667, %v239
  %v669 = vpop.permute.xlu0 %668
  %671 = vset.pattern.permute.xlu0 6
  %672 = vperm.xlu0 %671, %v244
  %v673 = vpop.permute.xlu0 %672
  %675 = vset.pattern.permute.xlu0 6
  %676 = vperm.xlu0 %675, %v249
  %v677 = vpop.permute.xlu0 %676
  %v679 = vlaneseq
  %v680 = vshrl.u32 %v679, 7
  %v681 = vsub.s32 2, %v680
  %v682 = vrot.slane %v268, %v681
  %v683 = vadd.f32 %v665, %v682
  %v684 = vadd.f32 %v669, %v682
  %v685 = vadd.f32 %v673, %v682
  %v686 = vadd.f32 %v677, %v682
  %vm687 = vcmp.ge.f32.partialorder %v683, 0.0
  %vm688 = vcmp.ge.f32.partialorder %v684, 0.0
  %vm689 = vcmp.ge.f32.partialorder %v685, 0.0
  %vm690 = vcmp.ge.f32.partialorder %v686, 0.0
  %v691 = vmul.f32 %v683, 0.2
  %v692 = vmul.f32 %v684, 0.2
  %v693 = vmul.f32 %v685, 0.2
  %v694 = vmul.f32 %v686, 0.2
  %v695 = vsel %vm687, %v683, %v691
  %v696 = vsel %vm688, %v684, %v692
  %v697 = vsel %vm689, %v685, %v693
  %v698 = vsel %vm690, %v686, %v694
  %v699 = vadd.f32 %v695, %v38
  %v700 = vadd.f32 %v696, %v39
  %v701 = vadd.f32 %v697, %v40
  %v702 = vadd.f32 %v698, %v41
  %v703 = vsel %vm328, %v699, -inf
  %704 = vmax.xlane.f32.xlu0 %v703
  %v705 = vpop.xlane.xlu0 %704
  %v706 = vsel %vm328, %v700, -inf
  %707 = vmax.xlane.f32.xlu0 %v706
  %v708 = vpop.xlane.xlu0 %707
  %v709 = vsel %vm328, %v701, -inf
  %710 = vmax.xlane.f32.xlu0 %v709
  %v711 = vpop.xlane.xlu0 %710
  %v712 = vsel %vm328, %v702, -inf
  %713 = vmax.xlane.f32.xlu0 %v712
  %v714 = vpop.xlane.xlu0 %713
  %v715 = vsub.f32 %v699, %v705
  %v716 = vsub.f32 %v700, %v708
  %v717 = vsub.f32 %v701, %v711
  %v718 = vsub.f32 %v702, %v714
  %v719 = vmul.f32 %v715, 1.442695
  %v720 = vpow.pop %v719
  %v721 = vmul.f32 %v716, 1.442695
  %v722 = vpow.pop %v721
  %v723 = vmul.f32 %v717, 1.442695
  %v724 = vpow.pop %v723
  %v725 = vmul.f32 %v718, 1.442695
  %v726 = vpow.pop %v725
  %v727 = vsel %vm328, %v720, 0.0
  %728 = vadd.xlane.f32.xlu0 %v727
  %v729 = vpop.xlane.xlu0 %728
  %v730 = vsel %vm328, %v722, 0.0
  %731 = vadd.xlane.f32.xlu0 %v730
  %v732 = vpop.xlane.xlu0 %731
  %v733 = vsel %vm328, %v724, 0.0
  %734 = vadd.xlane.f32.xlu0 %v733
  %v735 = vpop.xlane.xlu0 %734
  %v736 = vsel %vm328, %v726, 0.0
  %737 = vadd.xlane.f32.xlu0 %v736
  %v738 = vpop.xlane.xlu0 %737
  %v739 = vrcp.pop %v729
  %v740 = vrcp.pop %v732
  %v741 = vrcp.pop %v735
  %v742 = vrcp.pop %v738
  %v743 = vmul.f32 %v720, %v739
  %v744 = vmul.f32 %v722, %v740
  %v745 = vmul.f32 %v724, %v741
  %v746 = vmul.f32 %v726, %v742
  %747 = vrot.lane.b32.xlu0 %v128, 96
  %v748 = vpop.permute.xlu0 %747
  %749 = vrot.lane.b32.xlu0 %v133, 96
  %v750 = vpop.permute.xlu0 %749
  %751 = vrot.lane.b32.xlu0 %v138, 96
  %v752 = vpop.permute.xlu0 %751
  %753 = vrot.lane.b32.xlu0 %v143, 96
  %v754 = vpop.permute.xlu0 %753
  %v760 = vsel %vm328, %v743, 0
  %v763 = vsel %vm328, %v744, 0
  %v766 = vsel %vm328, %v745, 0
  %v769 = vsel %vm328, %v746, 0
  %771 = vmatprep.subr.mxu0 0.0
  %772 = vmatpush1.msra.mxu0 0.0
  %773 = vmatprep.subr.mxu0 0.0
  %774 = vmatpush1.msra.mxu0 0.0
  %775 = vmatprep.subr.mxu0 0.0
  %776 = vmatpush1.msra.mxu0 0.0
  %777 = vmatprep.subr.mxu0 0.0
  %778 = vmatpush1.msra.mxu0 0.0
  %779 = vmatprep.subr.mxu0 0.0
  %780 = vmatpush1.msra.mxu0 0.0
  %781 = vmatprep.subr.mxu0 0.0
  %782 = vmatpush1.msra.mxu0 0.0
  %783 = vmatprep.subr.mxu0 0.0
  %784 = vmatpush1.msra.mxu0 0.0
  %785 = vmatprep.subr.mxu0 0.0
  %786 = vmatpush1.msra.mxu0 0.0
  %787 = vmatprep.subr.mxu0 0.0
  %788 = vmatpush1.msra.mxu0 0.0
  %789 = vmatprep.subr.mxu0 0.0
  %790 = vmatpush1.msra.mxu0 0.0
  %791 = vmatprep.subr.mxu0 0.0
  %792 = vmatpush1.msra.mxu0 0.0
  %793 = vmatprep.subr.mxu0 0.0
  %794 = vmatpush1.msra.mxu0 0.0
  %795 = vmatprep.subr.mxu0 0.0
  %796 = vmatpush1.msra.mxu0 %v754
  %797 = vmatprep.subr.mxu0 0.0
  %798 = vmatpush1.msra.mxu0 %v752
  %799 = vmatprep.subr.mxu0 0.0
  %800 = vmatpush1.msra.mxu0 %v750
  %801 = vmatprep.subr.mxu0 0.0
  %802 = vmatpush1.msra.mxu0 %v748
  %803 = vmatprep.subr.mxu0 0.0
  %804 = vmatpush2.msra.mxu0 0.0
  %805 = vmatprep.subr.mxu0 0.0
  %806 = vmatpush2.msra.mxu0 0.0
  %807 = vmatprep.subr.mxu0 0.0
  %808 = vmatpush2.msra.mxu0 0.0
  %809 = vmatprep.subr.mxu0 0.0
  %810 = vmatpush2.msra.mxu0 0.0
  %811 = vmatprep.subr.mxu0 0.0
  %812 = vmatpush2.msra.mxu0 0.0
  %813 = vmatprep.subr.mxu0 0.0
  %814 = vmatpush2.msra.mxu0 0.0
  %815 = vmatprep.subr.mxu0 0.0
  %816 = vmatpush2.msra.mxu0 0.0
  %817 = vmatprep.subr.mxu0 0.0
  %818 = vmatpush2.msra.mxu0 0.0
  %819 = vmatprep.subr.mxu0 0.0
  %820 = vmatpush2.msra.mxu0 0.0
  %821 = vmatprep.subr.mxu0 0.0
  %822 = vmatpush2.msra.mxu0 0.0
  %823 = vmatprep.subr.mxu0 0.0
  %824 = vmatpush2.msra.mxu0 0.0
  %825 = vmatprep.subr.mxu0 0.0
  %826 = vmatpush2.msra.mxu0 0.0
  %827 = vmatprep.subr.mxu0 0.0
  %828 = vmatpush2.msra.mxu0 0.0
  %829 = vmatprep.subr.mxu0 0.0
  %830 = vmatpush2.msra.mxu0 0.0
  %831 = vmatprep.subr.mxu0 0.0
  %832 = vmatpush2.msra.mxu0 0.0
  %833 = vmatprep.subr.mxu0 0.0
  %834 = vmatpush2.msra.mxu0 0.0
  %835 = vmatprep.mubr.f32.mxu0 0.0
  %836 = vmatmul.mubr.f32.gmra.mxu0 %v760
  %v837 = vpop.f32.mrf.mxu0
  %v838 = vadd.f32 0.0, %v837
  %v839 = vpop.f32.mrf.mxu0
  %840 = vmatprep.mubr.f32.mxu0 0.0
  %841 = vmatmul.mubr.f32.gmra.mxu0 %v763
  %v842 = vpop.f32.mrf.mxu0
  %v843 = vadd.f32 0.0, %v842
  %v844 = vpop.f32.mrf.mxu0
  %845 = vmatprep.mubr.f32.mxu0 0.0
  %846 = vmatmul.mubr.f32.gmra.mxu0 %v766
  %v847 = vpop.f32.mrf.mxu0
  %v848 = vadd.f32 0.0, %v847
  %v849 = vpop.f32.mrf.mxu0
  %850 = vmatprep.mubr.f32.mxu0 0.0
  %851 = vmatmul.mubr.f32.gmra.mxu0 %v769
  %v852 = vpop.f32.mrf.mxu0
  %v853 = vadd.f32 0.0, %v852
  %v854 = vpop.f32.mrf.mxu0
  %855 = vdwg.mxu0
  %856 = vset.pattern.permute.xlu0 7
  %857 = vperm.xlu0 %856, %v234
  %v858 = vpop.permute.xlu0 %857
  %860 = vset.pattern.permute.xlu0 7
  %861 = vperm.xlu0 %860, %v239
  %v862 = vpop.permute.xlu0 %861
  %864 = vset.pattern.permute.xlu0 7
  %865 = vperm.xlu0 %864, %v244
  %v866 = vpop.permute.xlu0 %865
  %868 = vset.pattern.permute.xlu0 7
  %869 = vperm.xlu0 %868, %v249
  %v870 = vpop.permute.xlu0 %869
  %v872 = vlaneseq
  %v873 = vshrl.u32 %v872, 7
  %v874 = vsub.s32 3, %v873
  %v875 = vrot.slane %v268, %v874
  %v876 = vadd.f32 %v858, %v875
  %v877 = vadd.f32 %v862, %v875
  %v878 = vadd.f32 %v866, %v875
  %v879 = vadd.f32 %v870, %v875
  %vm880 = vcmp.ge.f32.partialorder %v876, 0.0
  %vm881 = vcmp.ge.f32.partialorder %v877, 0.0
  %vm882 = vcmp.ge.f32.partialorder %v878, 0.0
  %vm883 = vcmp.ge.f32.partialorder %v879, 0.0
  %v884 = vmul.f32 %v876, 0.2
  %v885 = vmul.f32 %v877, 0.2
  %v886 = vmul.f32 %v878, 0.2
  %v887 = vmul.f32 %v879, 0.2
  %v888 = vsel %vm880, %v876, %v884
  %v889 = vsel %vm881, %v877, %v885
  %v890 = vsel %vm882, %v878, %v886
  %v891 = vsel %vm883, %v879, %v887
  %v892 = vadd.f32 %v888, %v38
  %v893 = vadd.f32 %v889, %v39
  %v894 = vadd.f32 %v890, %v40
  %v895 = vadd.f32 %v891, %v41
  %v896 = vsel %vm328, %v892, -inf
  %897 = vmax.xlane.f32.xlu0 %v896
  %v898 = vpop.xlane.xlu0 %897
  %v899 = vsel %vm328, %v893, -inf
  %900 = vmax.xlane.f32.xlu0 %v899
  %v901 = vpop.xlane.xlu0 %900
  %v902 = vsel %vm328, %v894, -inf
  %903 = vmax.xlane.f32.xlu0 %v902
  %v904 = vpop.xlane.xlu0 %903
  %v905 = vsel %vm328, %v895, -inf
  %906 = vmax.xlane.f32.xlu0 %v905
  %v907 = vpop.xlane.xlu0 %906
  %v908 = vsub.f32 %v892, %v898
  %v909 = vsub.f32 %v893, %v901
  %v910 = vsub.f32 %v894, %v904
  %v911 = vsub.f32 %v895, %v907
  %v912 = vmul.f32 %v908, 1.442695
  %v913 = vpow.pop %v912
  %v914 = vmul.f32 %v909, 1.442695
  %v915 = vpow.pop %v914
  %v916 = vmul.f32 %v910, 1.442695
  %v917 = vpow.pop %v916
  %v918 = vmul.f32 %v911, 1.442695
  %v919 = vpow.pop %v918
  %v920 = vsel %vm328, %v913, 0.0
  %921 = vadd.xlane.f32.xlu0 %v920
  %v922 = vpop.xlane.xlu0 %921
  %v923 = vsel %vm328, %v915, 0.0
  %924 = vadd.xlane.f32.xlu0 %v923
  %v925 = vpop.xlane.xlu0 %924
  %v926 = vsel %vm328, %v917, 0.0
  %927 = vadd.xlane.f32.xlu0 %v926
  %v928 = vpop.xlane.xlu0 %927
  %v929 = vsel %vm328, %v919, 0.0
  %930 = vadd.xlane.f32.xlu0 %v929
  %v931 = vpop.xlane.xlu0 %930
  %v932 = vrcp.pop %v922
  %v933 = vrcp.pop %v925
  %v934 = vrcp.pop %v928
  %v935 = vrcp.pop %v931
  %v936 = vmul.f32 %v913, %v932
  %v937 = vmul.f32 %v915, %v933
  %v938 = vmul.f32 %v917, %v934
  %v939 = vmul.f32 %v919, %v935
  %940 = vrot.lane.b32.xlu0 %v128, 80
  %v941 = vpop.permute.xlu0 %940
  %942 = vrot.lane.b32.xlu0 %v133, 80
  %v943 = vpop.permute.xlu0 %942
  %944 = vrot.lane.b32.xlu0 %v138, 80
  %v945 = vpop.permute.xlu0 %944
  %946 = vrot.lane.b32.xlu0 %v143, 80
  %v947 = vpop.permute.xlu0 %946
  %v953 = vsel %vm328, %v936, 0
  %v956 = vsel %vm328, %v937, 0
  %v959 = vsel %vm328, %v938, 0
  %v962 = vsel %vm328, %v939, 0
  %964 = vmatprep.subr.mxu0 0.0
  %965 = vmatpush1.msra.mxu0 0.0
  %966 = vmatprep.subr.mxu0 0.0
  %967 = vmatpush1.msra.mxu0 0.0
  %968 = vmatprep.subr.mxu0 0.0
  %969 = vmatpush1.msra.mxu0 0.0
  %970 = vmatprep.subr.mxu0 0.0
  %971 = vmatpush1.msra.mxu0 0.0
  %972 = vmatprep.subr.mxu0 0.0
  %973 = vmatpush1.msra.mxu0 0.0
  %974 = vmatprep.subr.mxu0 0.0
  %975 = vmatpush1.msra.mxu0 0.0
  %976 = vmatprep.subr.mxu0 0.0
  %977 = vmatpush1.msra.mxu0 0.0
  %978 = vmatprep.subr.mxu0 0.0
  %979 = vmatpush1.msra.mxu0 0.0
  %980 = vmatprep.subr.mxu0 0.0
  %981 = vmatpush1.msra.mxu0 0.0
  %982 = vmatprep.subr.mxu0 0.0
  %983 = vmatpush1.msra.mxu0 0.0
  %984 = vmatprep.subr.mxu0 0.0
  %985 = vmatpush1.msra.mxu0 0.0
  %986 = vmatprep.subr.mxu0 0.0
  %987 = vmatpush1.msra.mxu0 0.0
  %988 = vmatprep.subr.mxu0 0.0
  %989 = vmatpush1.msra.mxu0 %v947
  %990 = vmatprep.subr.mxu0 0.0
  %991 = vmatpush1.msra.mxu0 %v945
  %992 = vmatprep.subr.mxu0 0.0
  %993 = vmatpush1.msra.mxu0 %v943
  %994 = vmatprep.subr.mxu0 0.0
  %995 = vmatpush1.msra.mxu0 %v941
  %996 = vmatprep.subr.mxu0 0.0
  %997 = vmatpush2.msra.mxu0 0.0
  %998 = vmatprep.subr.mxu0 0.0
  %999 = vmatpush2.msra.mxu0 0.0
  %1000 = vmatprep.subr.mxu0 0.0
  %1001 = vmatpush2.msra.mxu0 0.0
  %1002 = vmatprep.subr.mxu0 0.0
  %1003 = vmatpush2.msra.mxu0 0.0
  %1004 = vmatprep.subr.mxu0 0.0
  %1005 = vmatpush2.msra.mxu0 0.0
  %1006 = vmatprep.subr.mxu0 0.0
  %1007 = vmatpush2.msra.mxu0 0.0
  %1008 = vmatprep.subr.mxu0 0.0
  %1009 = vmatpush2.msra.mxu0 0.0
  %1010 = vmatprep.subr.mxu0 0.0
  %1011 = vmatpush2.msra.mxu0 0.0
  %1012 = vmatprep.subr.mxu0 0.0
  %1013 = vmatpush2.msra.mxu0 0.0
  %1014 = vmatprep.subr.mxu0 0.0
  %1015 = vmatpush2.msra.mxu0 0.0
  %1016 = vmatprep.subr.mxu0 0.0
  %1017 = vmatpush2.msra.mxu0 0.0
  %1018 = vmatprep.subr.mxu0 0.0
  %1019 = vmatpush2.msra.mxu0 0.0
  %1020 = vmatprep.subr.mxu0 0.0
  %1021 = vmatpush2.msra.mxu0 0.0
  %1022 = vmatprep.subr.mxu0 0.0
  %1023 = vmatpush2.msra.mxu0 0.0
  %1024 = vmatprep.subr.mxu0 0.0
  %1025 = vmatpush2.msra.mxu0 0.0
  %1026 = vmatprep.subr.mxu0 0.0
  %1027 = vmatpush2.msra.mxu0 0.0
  %1028 = vmatprep.mubr.f32.mxu0 0.0
  %1029 = vmatmul.mubr.f32.gmra.mxu0 %v953
  %v1030 = vpop.f32.mrf.mxu0
  %v1031 = vadd.f32 0.0, %v1030
  %v1032 = vpop.f32.mrf.mxu0
  %1033 = vmatprep.mubr.f32.mxu0 0.0
  %1034 = vmatmul.mubr.f32.gmra.mxu0 %v956
  %v1035 = vpop.f32.mrf.mxu0
  %v1036 = vadd.f32 0.0, %v1035
  %v1037 = vpop.f32.mrf.mxu0
  %1038 = vmatprep.mubr.f32.mxu0 0.0
  %1039 = vmatmul.mubr.f32.gmra.mxu0 %v959
  %v1040 = vpop.f32.mrf.mxu0
  %v1041 = vadd.f32 0.0, %v1040
  %v1042 = vpop.f32.mrf.mxu0
  %1043 = vmatprep.mubr.f32.mxu0 0.0
  %1044 = vmatmul.mubr.f32.gmra.mxu0 %v962
  %v1045 = vpop.f32.mrf.mxu0
  %v1046 = vadd.f32 0.0, %v1045
  %v1047 = vpop.f32.mrf.mxu0
  %1048 = vdwg.mxu0
  %v1049 = vld [vmem:[%s4] sm:$0x1]
  %1054 = vrot.lane.b32.xlu0 %v645, 16
  %v1055 = vpop.permute.xlu0 %1054
  %1056 = vrot.lane.b32.xlu0 %v650, 16
  %v1057 = vpop.permute.xlu0 %1056
  %1058 = vrot.lane.b32.xlu0 %v655, 16
  %v1059 = vpop.permute.xlu0 %1058
  %1060 = vrot.lane.b32.xlu0 %v660, 16
  %v1061 = vpop.permute.xlu0 %1060
  %1070 = vrot.lane.b32.xlu0 %v838, 32
  %v1071 = vpop.permute.xlu0 %1070
  %1072 = vrot.lane.b32.xlu0 %v843, 32
  %v1073 = vpop.permute.xlu0 %1072
  %1074 = vrot.lane.b32.xlu0 %v848, 32
  %v1075 = vpop.permute.xlu0 %1074
  %1076 = vrot.lane.b32.xlu0 %v853, 32
  %v1077 = vpop.permute.xlu0 %1076
  %1086 = vrot.lane.b32.xlu0 %v1031, 48
  %v1087 = vpop.permute.xlu0 %1086
  %1088 = vrot.lane.b32.xlu0 %v1036, 48
  %v1089 = vpop.permute.xlu0 %1088
  %1090 = vrot.lane.b32.xlu0 %v1041, 48
  %v1091 = vpop.permute.xlu0 %1090
  %1092 = vrot.lane.b32.xlu0 %v1046, 48
  %v1093 = vpop.permute.xlu0 %1092
  %v1098 = vsel %vm48, %v452, %v1055
  %v1099 = vsel %vm48, %v457, %v1057
  %v1100 = vsel %vm48, %v462, %v1059
  %v1101 = vsel %vm48, %v467, %v1061
  %v1102 = vsel %vm328, %v1098, %v1071
  %v1103 = vsel %vm328, %v1099, %v1073
  %v1104 = vsel %vm328, %v1100, %v1075
  %v1105 = vsel %vm328, %v1101, %v1077
  %vm1106 = vcmask 392192
  %v1107 = vsel %vm1106, %v1102, %v1087
  %v1108 = vsel %vm1106, %v1103, %v1089
  %v1109 = vsel %vm1106, %v1104, %v1091
  %v1110 = vsel %vm1106, %v1105, %v1093
  %v1112 = vlaneseq
  %v1113 = vshrl.u32 %v1112, 7
  %v1114 = vsub.s32 0, %v1113
  %v1115 = vrot.slane %v1049, %v1114
  %v1117 = vadd.f32 %v1107, %v1115
  %v1118 = vadd.f32 %v1108, %v1115
  %v1119 = vadd.f32 %v1109, %v1115
  %v1120 = vadd.f32 %v1110, %v1115
  %vm1121 = vcmp.gt.f32.partialorder %v1117, 0.0
  %vm1122 = vcmp.gt.f32.partialorder %v1118, 0.0
  %vm1123 = vcmp.gt.f32.partialorder %v1119, 0.0
  %vm1124 = vcmp.gt.f32.partialorder %v1120, 0.0
  %v1125 = vmin.f32 %v1117, 0.0
  %v1126 = vmin.f32 %v1118, 0.0
  %v1127 = vmin.f32 %v1119, 0.0
  %v1128 = vmin.f32 %v1120, 0.0
  %v1129 = vmul.f32 %v1125, 1.442695
  %v1130 = vpow.pop %v1129
  %v1131 = vmul.f32 %v1126, 1.442695
  %v1132 = vpow.pop %v1131
  %v1133 = vmul.f32 %v1127, 1.442695
  %v1134 = vpow.pop %v1133
  %v1135 = vmul.f32 %v1128, 1.442695
  %v1136 = vpow.pop %v1135
  %v1137 = vsub.f32 %v1130, 1.0
  %v1138 = vsub.f32 %v1132, 1.0
  %v1139 = vsub.f32 %v1134, 1.0
  %v1140 = vsub.f32 %v1136, 1.0
  %v1141 = vsel %vm1121, %v1117, %v1137
  %v1142 = vsel %vm1122, %v1118, %v1138
  %v1143 = vsel %vm1123, %v1119, %v1139
  %v1144 = vsel %vm1124, %v1120, %v1140
  %v1145 = vld [vmem:[%s5] sm:$0xff]
  %v1146 = vld [vmem:[%s5 + $0x8] sm:$0xff]
  %v1147 = vld [vmem:[%s5 + $0x10] sm:$0xff]
  %v1148 = vld [vmem:[%s5 + $0x18] sm:$0xff]
  %v1149 = vld [vmem:[%s5 + $0x20] sm:$0xff]
  %v1150 = vld [vmem:[%s5 + $0x28] sm:$0xff]
  %v1151 = vld [vmem:[%s5 + $0x30] sm:$0xff]
  %v1152 = vld [vmem:[%s5 + $0x38] sm:$0xff]
  %v1154 = vsel %vm154, %v1141, 0
  %v1157 = vsel %vm154, %v1142, 0
  %v1160 = vsel %vm154, %v1143, 0
  %v1163 = vsel %vm154, %v1144, 0
  %1165 = vmatprep.subr.mxu0 0.0
  %1166 = vmatpush1.msra.mxu0 0.0
  %1167 = vmatprep.subr.mxu0 0.0
  %1168 = vmatpush1.msra.mxu0 0.0
  %1169 = vmatprep.subr.mxu0 0.0
  %1170 = vmatpush1.msra.mxu0 0.0
  %1171 = vmatprep.subr.mxu0 0.0
  %1172 = vmatpush1.msra.mxu0 0.0
  %1173 = vmatprep.subr.mxu0 0.0
  %1174 = vmatpush1.msra.mxu0 0.0
  %1175 = vmatprep.subr.mxu0 0.0
  %1176 = vmatpush1.msra.mxu0 0.0
  %1177 = vmatprep.subr.mxu0 0.0
  %1178 = vmatpush1.msra.mxu0 0.0
  %1179 = vmatprep.subr.mxu0 0.0
  %1180 = vmatpush1.msra.mxu0 0.0
  %1181 = vmatprep.subr.mxu0 0.0
  %1182 = vmatpush1.msra.mxu0 %v1152
  %1183 = vmatprep.subr.mxu0 0.0
  %1184 = vmatpush1.msra.mxu0 %v1151
  %1185 = vmatprep.subr.mxu0 0.0
  %1186 = vmatpush1.msra.mxu0 %v1150
  %1187 = vmatprep.subr.mxu0 0.0
  %1188 = vmatpush1.msra.mxu0 %v1149
  %1189 = vmatprep.subr.mxu0 0.0
  %1190 = vmatpush1.msra.mxu0 %v1148
  %1191 = vmatprep.subr.mxu0 0.0
  %1192 = vmatpush1.msra.mxu0 %v1147
  %1193 = vmatprep.subr.mxu0 0.0
  %1194 = vmatpush1.msra.mxu0 %v1146
  %1195 = vmatprep.subr.mxu0 0.0
  %1196 = vmatpush1.msra.mxu0 %v1145
  %1197 = vmatprep.subr.mxu0 0.0
  %1198 = vmatpush2.msra.mxu0 0.0
  %1199 = vmatprep.subr.mxu0 0.0
  %1200 = vmatpush2.msra.mxu0 0.0
  %1201 = vmatprep.subr.mxu0 0.0
  %1202 = vmatpush2.msra.mxu0 0.0
  %1203 = vmatprep.subr.mxu0 0.0
  %1204 = vmatpush2.msra.mxu0 0.0
  %1205 = vmatprep.subr.mxu0 0.0
  %1206 = vmatpush2.msra.mxu0 0.0
  %1207 = vmatprep.subr.mxu0 0.0
  %1208 = vmatpush2.msra.mxu0 0.0
  %1209 = vmatprep.subr.mxu0 0.0
  %1210 = vmatpush2.msra.mxu0 0.0
  %1211 = vmatprep.subr.mxu0 0.0
  %1212 = vmatpush2.msra.mxu0 0.0
  %1213 = vmatprep.subr.mxu0 0.0
  %1214 = vmatpush2.msra.mxu0 0.0
  %1215 = vmatprep.subr.mxu0 0.0
  %1216 = vmatpush2.msra.mxu0 0.0
  %1217 = vmatprep.subr.mxu0 0.0
  %1218 = vmatpush2.msra.mxu0 0.0
  %1219 = vmatprep.subr.mxu0 0.0
  %1220 = vmatpush2.msra.mxu0 0.0
  %1221 = vmatprep.subr.mxu0 0.0
  %1222 = vmatpush2.msra.mxu0 0.0
  %1223 = vmatprep.subr.mxu0 0.0
  %1224 = vmatpush2.msra.mxu0 0.0
  %1225 = vmatprep.subr.mxu0 0.0
  %1226 = vmatpush2.msra.mxu0 0.0
  %1227 = vmatprep.subr.mxu0 0.0
  %1228 = vmatpush2.msra.mxu0 0.0
  %1229 = vmatprep.mubr.f32.mxu0 0.0
  %1230 = vmatmul.mubr.f32.gmra.mxu0 %v1154
  %v1231 = vpop.f32.mrf.mxu0
  %v1232 = vadd.f32 0.0, %v1231
  %v1233 = vpop.f32.mrf.mxu0
  %1234 = vmatprep.mubr.f32.mxu0 0.0
  %1235 = vmatmul.mubr.f32.gmra.mxu0 %v1157
  %v1236 = vpop.f32.mrf.mxu0
  %v1237 = vadd.f32 0.0, %v1236
  %v1238 = vpop.f32.mrf.mxu0
  %1239 = vmatprep.mubr.f32.mxu0 0.0
  %1240 = vmatmul.mubr.f32.gmra.mxu0 %v1160
  %v1241 = vpop.f32.mrf.mxu0
  %v1242 = vadd.f32 0.0, %v1241
  %v1243 = vpop.f32.mrf.mxu0
  %1244 = vmatprep.mubr.f32.mxu0 0.0
  %1245 = vmatmul.mubr.f32.gmra.mxu0 %v1163
  %v1246 = vpop.f32.mrf.mxu0
  %v1247 = vadd.f32 0.0, %v1246
  %v1248 = vpop.f32.mrf.mxu0
  %1249 = vdwg.mxu0
  %v1250 = vld [vmem:[%s6] sm:$0xff]
  %v1251 = vld [vmem:[%s6 + $0x8] sm:$0xff]
  %v1252 = vld [vmem:[%s6 + $0x10] sm:$0xff]
  %v1253 = vld [vmem:[%s6 + $0x18] sm:$0xff]
  %v1254 = vld [vmem:[%s6 + $0x20] sm:$0xff]
  %v1255 = vld [vmem:[%s6 + $0x28] sm:$0xff]
  %v1256 = vld [vmem:[%s6 + $0x30] sm:$0xff]
  %v1257 = vld [vmem:[%s6 + $0x38] sm:$0xff]
  %v1259 = vsel %vm154, %v1232, 0
  %v1262 = vsel %vm154, %v1237, 0
  %v1265 = vsel %vm154, %v1242, 0
  %v1268 = vsel %vm154, %v1247, 0
  %1270 = vmatprep.subr.mxu0 0.0
  %1271 = vmatpush1.msra.mxu0 0.0
  %1272 = vmatprep.subr.mxu0 0.0
  %1273 = vmatpush1.msra.mxu0 0.0
  %1274 = vmatprep.subr.mxu0 0.0
  %1275 = vmatpush1.msra.mxu0 0.0
  %1276 = vmatprep.subr.mxu0 0.0
  %1277 = vmatpush1.msra.mxu0 0.0
  %1278 = vmatprep.subr.mxu0 0.0
  %1279 = vmatpush1.msra.mxu0 0.0
  %1280 = vmatprep.subr.mxu0 0.0
  %1281 = vmatpush1.msra.mxu0 0.0
  %1282 = vmatprep.subr.mxu0 0.0
  %1283 = vmatpush1.msra.mxu0 0.0
  %1284 = vmatprep.subr.mxu0 0.0
  %1285 = vmatpush1.msra.mxu0 0.0
  %1286 = vmatprep.subr.mxu0 0.0
  %1287 = vmatpush1.msra.mxu0 %v1257
  %1288 = vmatprep.subr.mxu0 0.0
  %1289 = vmatpush1.msra.mxu0 %v1256
  %1290 = vmatprep.subr.mxu0 0.0
  %1291 = vmatpush1.msra.mxu0 %v1255
  %1292 = vmatprep.subr.mxu0 0.0
  %1293 = vmatpush1.msra.mxu0 %v1254
  %1294 = vmatprep.subr.mxu0 0.0
  %1295 = vmatpush1.msra.mxu0 %v1253
  %1296 = vmatprep.subr.mxu0 0.0
  %1297 = vmatpush1.msra.mxu0 %v1252
  %1298 = vmatprep.subr.mxu0 0.0
  %1299 = vmatpush1.msra.mxu0 %v1251
  %1300 = vmatprep.subr.mxu0 0.0
  %1301 = vmatpush1.msra.mxu0 %v1250
  %1302 = vmatprep.subr.mxu0 0.0
  %1303 = vmatpush2.msra.mxu0 0.0
  %1304 = vmatprep.subr.mxu0 0.0
  %1305 = vmatpush2.msra.mxu0 0.0
  %1306 = vmatprep.subr.mxu0 0.0
  %1307 = vmatpush2.msra.mxu0 0.0
  %1308 = vmatprep.subr.mxu0 0.0
  %1309 = vmatpush2.msra.mxu0 0.0
  %1310 = vmatprep.subr.mxu0 0.0
  %1311 = vmatpush2.msra.mxu0 0.0
  %1312 = vmatprep.subr.mxu0 0.0
  %1313 = vmatpush2.msra.mxu0 0.0
  %1314 = vmatprep.subr.mxu0 0.0
  %1315 = vmatpush2.msra.mxu0 0.0
  %1316 = vmatprep.subr.mxu0 0.0
  %1317 = vmatpush2.msra.mxu0 0.0
  %1318 = vmatprep.subr.mxu0 0.0
  %1319 = vmatpush2.msra.mxu0 0.0
  %1320 = vmatprep.subr.mxu0 0.0
  %1321 = vmatpush2.msra.mxu0 0.0
  %1322 = vmatprep.subr.mxu0 0.0
  %1323 = vmatpush2.msra.mxu0 0.0
  %1324 = vmatprep.subr.mxu0 0.0
  %1325 = vmatpush2.msra.mxu0 0.0
  %1326 = vmatprep.subr.mxu0 0.0
  %1327 = vmatpush2.msra.mxu0 0.0
  %1328 = vmatprep.subr.mxu0 0.0
  %1329 = vmatpush2.msra.mxu0 0.0
  %1330 = vmatprep.subr.mxu0 0.0
  %1331 = vmatpush2.msra.mxu0 0.0
  %1332 = vmatprep.subr.mxu0 0.0
  %1333 = vmatpush2.msra.mxu0 0.0
  %1334 = vmatprep.mubr.f32.mxu0 0.0
  %1335 = vmatmul.mubr.f32.gmra.mxu0 %v1259
  %v1336 = vpop.f32.mrf.mxu0
  %v1337 = vadd.f32 0.0, %v1336
  %v1338 = vpop.f32.mrf.mxu0
  %1339 = vmatprep.mubr.f32.mxu0 0.0
  %1340 = vmatmul.mubr.f32.gmra.mxu0 %v1262
  %v1341 = vpop.f32.mrf.mxu0
  %v1342 = vadd.f32 0.0, %v1341
  %v1343 = vpop.f32.mrf.mxu0
  %1344 = vmatprep.mubr.f32.mxu0 0.0
  %1345 = vmatmul.mubr.f32.gmra.mxu0 %v1265
  %v1346 = vpop.f32.mrf.mxu0
  %v1347 = vadd.f32 0.0, %v1346
  %v1348 = vpop.f32.mrf.mxu0
  %1349 = vmatprep.mubr.f32.mxu0 0.0
  %1350 = vmatmul.mubr.f32.gmra.mxu0 %v1268
  %v1351 = vpop.f32.mrf.mxu0
  %v1352 = vadd.f32 0.0, %v1351
  %v1353 = vpop.f32.mrf.mxu0
  %1354 = vdwg.mxu0
  %1355 = vxpose.xlu0.b32.start [1/16] %v1337, 128
  %1356 = vxpose.xlu0.b32.cont [2/16] %v1342, 128
  %1357 = vxpose.xlu0.b32.cont [3/16] %v1347, 128
  %1358 = vxpose.xlu0.b32.cont [4/16] %v1352, 128
  %1359 = vxpose.xlu0.b32.cont [5/16] 0.0, 128
  %1360 = vxpose.xlu0.b32.cont [6/16] 0.0, 128
  %1361 = vxpose.xlu0.b32.cont [7/16] 0.0, 128
  %1362 = vxpose.xlu0.b32.cont [8/16] 0.0, 128
  %1363 = vxpose.xlu0.b32.cont [9/16] 0.0, 128
  %1364 = vxpose.xlu0.b32.cont [10/16] 0.0, 128
  %1365 = vxpose.xlu0.b32.cont [11/16] 0.0, 128
  %1366 = vxpose.xlu0.b32.cont [12/16] 0.0, 128
  %1367 = vxpose.xlu0.b32.cont [13/16] 0.0, 128
  %1368 = vxpose.xlu0.b32.cont [14/16] 0.0, 128
  %1369 = vxpose.xlu0.b32.cont [15/16] 0.0, 128
  %1370 = vxpose.xlu0.b32.end [16/16] 0.0, 128
  %v1371 = vpop.trf.xlu0
  %v1372 = vpop.trf.xlu0
  %v1373 = vpop.trf.xlu0
  %v1374 = vpop.trf.xlu0
  %v1375 = vpop.trf.xlu0
  %v1376 = vpop.trf.xlu0
  %v1377 = vpop.trf.xlu0
  %v1378 = vpop.trf.xlu0
  %v1379 = vpop.trf.xlu0
  %v1380 = vpop.trf.xlu0
  %v1381 = vpop.trf.xlu0
  %v1382 = vpop.trf.xlu0
  %v1383 = vpop.trf.xlu0
  %v1384 = vpop.trf.xlu0
  %v1385 = vpop.trf.xlu0
  %v1386 = vpop.trf.xlu0
  %1388 = vset.pattern.permute.xlu0 4
  %1389 = vperm.xlu0 %1388, %v1337
  %v1390 = vpop.permute.xlu0 %1389
  %1393 = vset.pattern.permute.xlu0 4
  %1394 = vperm.xlu0 %1393, %v1342
  %v1395 = vpop.permute.xlu0 %1394
  %1398 = vset.pattern.permute.xlu0 4
  %1399 = vperm.xlu0 %1398, %v1347
  %v1400 = vpop.permute.xlu0 %1399
  %1403 = vset.pattern.permute.xlu0 4
  %1404 = vperm.xlu0 %1403, %v1352
  %v1405 = vpop.permute.xlu0 %1404
  %v1407 = vlaneseq
  %v1408 = vshrl.u32 %v1407, 7
  %v1409 = vsub.s32 0, %v1408
  %v1410 = vrot.slane %v1371, %v1409
  %v1411 = vadd.f32 %v1390, %v1410
  %v1412 = vadd.f32 %v1395, %v1410
  %v1413 = vadd.f32 %v1400, %v1410
  %v1414 = vadd.f32 %v1405, %v1410
  %vm1415 = vcmp.ge.f32.partialorder %v1411, 0.0
  %vm1416 = vcmp.ge.f32.partialorder %v1412, 0.0
  %vm1417 = vcmp.ge.f32.partialorder %v1413, 0.0
  %vm1418 = vcmp.ge.f32.partialorder %v1414, 0.0
  %v1419 = vmul.f32 %v1411, 0.2
  %v1420 = vmul.f32 %v1412, 0.2
  %v1421 = vmul.f32 %v1413, 0.2
  %v1422 = vmul.f32 %v1414, 0.2
  %v1423 = vsel %vm1415, %v1411, %v1419
  %v1424 = vsel %vm1416, %v1412, %v1420
  %v1425 = vsel %vm1417, %v1413, %v1421
  %v1426 = vsel %vm1418, %v1414, %v1422
  %v1427 = vadd.f32 %v1423, %v38
  %v1428 = vadd.f32 %v1424, %v39
  %v1429 = vadd.f32 %v1425, %v40
  %v1430 = vadd.f32 %v1426, %v41
  %v1431 = vsel %vm328, %v1427, -inf
  %1432 = vmax.xlane.f32.xlu0 %v1431
  %v1433 = vpop.xlane.xlu0 %1432
  %v1434 = vsel %vm328, %v1428, -inf
  %1435 = vmax.xlane.f32.xlu0 %v1434
  %v1436 = vpop.xlane.xlu0 %1435
  %v1437 = vsel %vm328, %v1429, -inf
  %1438 = vmax.xlane.f32.xlu0 %v1437
  %v1439 = vpop.xlane.xlu0 %1438
  %v1440 = vsel %vm328, %v1430, -inf
  %1441 = vmax.xlane.f32.xlu0 %v1440
  %v1442 = vpop.xlane.xlu0 %1441
  %v1443 = vsub.f32 %v1427, %v1433
  %v1444 = vsub.f32 %v1428, %v1436
  %v1445 = vsub.f32 %v1429, %v1439
  %v1446 = vsub.f32 %v1430, %v1442
  %v1447 = vmul.f32 %v1443, 1.442695
  %v1448 = vpow.pop %v1447
  %v1449 = vmul.f32 %v1444, 1.442695
  %v1450 = vpow.pop %v1449
  %v1451 = vmul.f32 %v1445, 1.442695
  %v1452 = vpow.pop %v1451
  %v1453 = vmul.f32 %v1446, 1.442695
  %v1454 = vpow.pop %v1453
  %v1455 = vsel %vm328, %v1448, 0.0
  %1456 = vadd.xlane.f32.xlu0 %v1455
  %v1457 = vpop.xlane.xlu0 %1456
  %v1458 = vsel %vm328, %v1450, 0.0
  %1459 = vadd.xlane.f32.xlu0 %v1458
  %v1460 = vpop.xlane.xlu0 %1459
  %v1461 = vsel %vm328, %v1452, 0.0
  %1462 = vadd.xlane.f32.xlu0 %v1461
  %v1463 = vpop.xlane.xlu0 %1462
  %v1464 = vsel %vm328, %v1454, 0.0
  %1465 = vadd.xlane.f32.xlu0 %v1464
  %v1466 = vpop.xlane.xlu0 %1465
  %v1467 = vrcp.pop %v1457
  %v1468 = vrcp.pop %v1460
  %v1469 = vrcp.pop %v1463
  %v1470 = vrcp.pop %v1466
  %v1471 = vmul.f32 %v1448, %v1467
  %v1472 = vmul.f32 %v1450, %v1468
  %v1473 = vmul.f32 %v1452, %v1469
  %v1474 = vmul.f32 %v1454, %v1470
  %v1476 = vsel %vm328, %v1471, 0
  %v1479 = vsel %vm328, %v1472, 0
  %v1482 = vsel %vm328, %v1473, 0
  %v1485 = vsel %vm328, %v1474, 0
  %1487 = vmatprep.subr.mxu0 0.0
  %1488 = vmatpush1.msra.mxu0 0.0
  %1489 = vmatprep.subr.mxu0 0.0
  %1490 = vmatpush1.msra.mxu0 0.0
  %1491 = vmatprep.subr.mxu0 0.0
  %1492 = vmatpush1.msra.mxu0 0.0
  %1493 = vmatprep.subr.mxu0 0.0
  %1494 = vmatpush1.msra.mxu0 0.0
  %1495 = vmatprep.subr.mxu0 0.0
  %1496 = vmatpush1.msra.mxu0 0.0
  %1497 = vmatprep.subr.mxu0 0.0
  %1498 = vmatpush1.msra.mxu0 0.0
  %1499 = vmatprep.subr.mxu0 0.0
  %1500 = vmatpush1.msra.mxu0 0.0
  %1501 = vmatprep.subr.mxu0 0.0
  %1502 = vmatpush1.msra.mxu0 0.0
  %1503 = vmatprep.subr.mxu0 0.0
  %1504 = vmatpush1.msra.mxu0 0.0
  %1505 = vmatprep.subr.mxu0 0.0
  %1506 = vmatpush1.msra.mxu0 0.0
  %1507 = vmatprep.subr.mxu0 0.0
  %1508 = vmatpush1.msra.mxu0 0.0
  %1509 = vmatprep.subr.mxu0 0.0
  %1510 = vmatpush1.msra.mxu0 0.0
  %1511 = vmatprep.subr.mxu0 0.0
  %1512 = vmatpush1.msra.mxu0 %v1247
  %1513 = vmatprep.subr.mxu0 0.0
  %1514 = vmatpush1.msra.mxu0 %v1242
  %1515 = vmatprep.subr.mxu0 0.0
  %1516 = vmatpush1.msra.mxu0 %v1237
  %1517 = vmatprep.subr.mxu0 0.0
  %1518 = vmatpush1.msra.mxu0 %v1232
  %1519 = vmatprep.subr.mxu0 0.0
  %1520 = vmatpush2.msra.mxu0 0.0
  %1521 = vmatprep.subr.mxu0 0.0
  %1522 = vmatpush2.msra.mxu0 0.0
  %1523 = vmatprep.subr.mxu0 0.0
  %1524 = vmatpush2.msra.mxu0 0.0
  %1525 = vmatprep.subr.mxu0 0.0
  %1526 = vmatpush2.msra.mxu0 0.0
  %1527 = vmatprep.subr.mxu0 0.0
  %1528 = vmatpush2.msra.mxu0 0.0
  %1529 = vmatprep.subr.mxu0 0.0
  %1530 = vmatpush2.msra.mxu0 0.0
  %1531 = vmatprep.subr.mxu0 0.0
  %1532 = vmatpush2.msra.mxu0 0.0
  %1533 = vmatprep.subr.mxu0 0.0
  %1534 = vmatpush2.msra.mxu0 0.0
  %1535 = vmatprep.subr.mxu0 0.0
  %1536 = vmatpush2.msra.mxu0 0.0
  %1537 = vmatprep.subr.mxu0 0.0
  %1538 = vmatpush2.msra.mxu0 0.0
  %1539 = vmatprep.subr.mxu0 0.0
  %1540 = vmatpush2.msra.mxu0 0.0
  %1541 = vmatprep.subr.mxu0 0.0
  %1542 = vmatpush2.msra.mxu0 0.0
  %1543 = vmatprep.subr.mxu0 0.0
  %1544 = vmatpush2.msra.mxu0 0.0
  %1545 = vmatprep.subr.mxu0 0.0
  %1546 = vmatpush2.msra.mxu0 0.0
  %1547 = vmatprep.subr.mxu0 0.0
  %1548 = vmatpush2.msra.mxu0 0.0
  %1549 = vmatprep.subr.mxu0 0.0
  %1550 = vmatpush2.msra.mxu0 0.0
  %1551 = vmatprep.mubr.f32.mxu0 0.0
  %1552 = vmatmul.mubr.f32.gmra.mxu0 %v1476
  %v1553 = vpop.f32.mrf.mxu0
  %v1554 = vadd.f32 0.0, %v1553
  %v1555 = vpop.f32.mrf.mxu0
  %1556 = vmatprep.mubr.f32.mxu0 0.0
  %1557 = vmatmul.mubr.f32.gmra.mxu0 %v1479
  %v1558 = vpop.f32.mrf.mxu0
  %v1559 = vadd.f32 0.0, %v1558
  %v1560 = vpop.f32.mrf.mxu0
  %1561 = vmatprep.mubr.f32.mxu0 0.0
  %1562 = vmatmul.mubr.f32.gmra.mxu0 %v1482
  %v1563 = vpop.f32.mrf.mxu0
  %v1564 = vadd.f32 0.0, %v1563
  %v1565 = vpop.f32.mrf.mxu0
  %1566 = vmatprep.mubr.f32.mxu0 0.0
  %1567 = vmatmul.mubr.f32.gmra.mxu0 %v1485
  %v1568 = vpop.f32.mrf.mxu0
  %v1569 = vadd.f32 0.0, %v1568
  %v1570 = vpop.f32.mrf.mxu0
  %1571 = vdwg.mxu0
  %1572 = vset.pattern.permute.xlu0 5
  %1573 = vperm.xlu0 %1572, %v1337
  %v1574 = vpop.permute.xlu0 %1573
  %1576 = vset.pattern.permute.xlu0 5
  %1577 = vperm.xlu0 %1576, %v1342
  %v1578 = vpop.permute.xlu0 %1577
  %1580 = vset.pattern.permute.xlu0 5
  %1581 = vperm.xlu0 %1580, %v1347
  %v1582 = vpop.permute.xlu0 %1581
  %1584 = vset.pattern.permute.xlu0 5
  %1585 = vperm.xlu0 %1584, %v1352
  %v1586 = vpop.permute.xlu0 %1585
  %v1588 = vlaneseq
  %v1589 = vshrl.u32 %v1588, 7
  %v1590 = vsub.s32 1, %v1589
  %v1591 = vrot.slane %v1371, %v1590
  %v1592 = vadd.f32 %v1574, %v1591
  %v1593 = vadd.f32 %v1578, %v1591
  %v1594 = vadd.f32 %v1582, %v1591
  %v1595 = vadd.f32 %v1586, %v1591
  %vm1596 = vcmp.ge.f32.partialorder %v1592, 0.0
  %vm1597 = vcmp.ge.f32.partialorder %v1593, 0.0
  %vm1598 = vcmp.ge.f32.partialorder %v1594, 0.0
  %vm1599 = vcmp.ge.f32.partialorder %v1595, 0.0
  %v1600 = vmul.f32 %v1592, 0.2
  %v1601 = vmul.f32 %v1593, 0.2
  %v1602 = vmul.f32 %v1594, 0.2
  %v1603 = vmul.f32 %v1595, 0.2
  %v1604 = vsel %vm1596, %v1592, %v1600
  %v1605 = vsel %vm1597, %v1593, %v1601
  %v1606 = vsel %vm1598, %v1594, %v1602
  %v1607 = vsel %vm1599, %v1595, %v1603
  %v1608 = vadd.f32 %v1604, %v38
  %v1609 = vadd.f32 %v1605, %v39
  %v1610 = vadd.f32 %v1606, %v40
  %v1611 = vadd.f32 %v1607, %v41
  %v1612 = vsel %vm328, %v1608, -inf
  %1613 = vmax.xlane.f32.xlu0 %v1612
  %v1614 = vpop.xlane.xlu0 %1613
  %v1615 = vsel %vm328, %v1609, -inf
  %1616 = vmax.xlane.f32.xlu0 %v1615
  %v1617 = vpop.xlane.xlu0 %1616
  %v1618 = vsel %vm328, %v1610, -inf
  %1619 = vmax.xlane.f32.xlu0 %v1618
  %v1620 = vpop.xlane.xlu0 %1619
  %v1621 = vsel %vm328, %v1611, -inf
  %1622 = vmax.xlane.f32.xlu0 %v1621
  %v1623 = vpop.xlane.xlu0 %1622
  %v1624 = vsub.f32 %v1608, %v1614
  %v1625 = vsub.f32 %v1609, %v1617
  %v1626 = vsub.f32 %v1610, %v1620
  %v1627 = vsub.f32 %v1611, %v1623
  %v1628 = vmul.f32 %v1624, 1.442695
  %v1629 = vpow.pop %v1628
  %v1630 = vmul.f32 %v1625, 1.442695
  %v1631 = vpow.pop %v1630
  %v1632 = vmul.f32 %v1626, 1.442695
  %v1633 = vpow.pop %v1632
  %v1634 = vmul.f32 %v1627, 1.442695
  %v1635 = vpow.pop %v1634
  %v1636 = vsel %vm328, %v1629, 0.0
  %1637 = vadd.xlane.f32.xlu0 %v1636
  %v1638 = vpop.xlane.xlu0 %1637
  %v1639 = vsel %vm328, %v1631, 0.0
  %1640 = vadd.xlane.f32.xlu0 %v1639
  %v1641 = vpop.xlane.xlu0 %1640
  %v1642 = vsel %vm328, %v1633, 0.0
  %1643 = vadd.xlane.f32.xlu0 %v1642
  %v1644 = vpop.xlane.xlu0 %1643
  %v1645 = vsel %vm328, %v1635, 0.0
  %1646 = vadd.xlane.f32.xlu0 %v1645
  %v1647 = vpop.xlane.xlu0 %1646
  %v1648 = vrcp.pop %v1638
  %v1649 = vrcp.pop %v1641
  %v1650 = vrcp.pop %v1644
  %v1651 = vrcp.pop %v1647
  %v1652 = vmul.f32 %v1629, %v1648
  %v1653 = vmul.f32 %v1631, %v1649
  %v1654 = vmul.f32 %v1633, %v1650
  %v1655 = vmul.f32 %v1635, %v1651
  %1656 = vrot.lane.b32.xlu0 %v1232, 112
  %v1657 = vpop.permute.xlu0 %1656
  %1658 = vrot.lane.b32.xlu0 %v1237, 112
  %v1659 = vpop.permute.xlu0 %1658
  %1660 = vrot.lane.b32.xlu0 %v1242, 112
  %v1661 = vpop.permute.xlu0 %1660
  %1662 = vrot.lane.b32.xlu0 %v1247, 112
  %v1663 = vpop.permute.xlu0 %1662
  %v1669 = vsel %vm328, %v1652, 0
  %v1672 = vsel %vm328, %v1653, 0
  %v1675 = vsel %vm328, %v1654, 0
  %v1678 = vsel %vm328, %v1655, 0
  %1680 = vmatprep.subr.mxu0 0.0
  %1681 = vmatpush1.msra.mxu0 0.0
  %1682 = vmatprep.subr.mxu0 0.0
  %1683 = vmatpush1.msra.mxu0 0.0
  %1684 = vmatprep.subr.mxu0 0.0
  %1685 = vmatpush1.msra.mxu0 0.0
  %1686 = vmatprep.subr.mxu0 0.0
  %1687 = vmatpush1.msra.mxu0 0.0
  %1688 = vmatprep.subr.mxu0 0.0
  %1689 = vmatpush1.msra.mxu0 0.0
  %1690 = vmatprep.subr.mxu0 0.0
  %1691 = vmatpush1.msra.mxu0 0.0
  %1692 = vmatprep.subr.mxu0 0.0
  %1693 = vmatpush1.msra.mxu0 0.0
  %1694 = vmatprep.subr.mxu0 0.0
  %1695 = vmatpush1.msra.mxu0 0.0
  %1696 = vmatprep.subr.mxu0 0.0
  %1697 = vmatpush1.msra.mxu0 0.0
  %1698 = vmatprep.subr.mxu0 0.0
  %1699 = vmatpush1.msra.mxu0 0.0
  %1700 = vmatprep.subr.mxu0 0.0
  %1701 = vmatpush1.msra.mxu0 0.0
  %1702 = vmatprep.subr.mxu0 0.0
  %1703 = vmatpush1.msra.mxu0 0.0
  %1704 = vmatprep.subr.mxu0 0.0
  %1705 = vmatpush1.msra.mxu0 %v1663
  %1706 = vmatprep.subr.mxu0 0.0
  %1707 = vmatpush1.msra.mxu0 %v1661
  %1708 = vmatprep.subr.mxu0 0.0
  %1709 = vmatpush1.msra.mxu0 %v1659
  %1710 = vmatprep.subr.mxu0 0.0
  %1711 = vmatpush1.msra.mxu0 %v1657
  %1712 = vmatprep.subr.mxu0 0.0
  %1713 = vmatpush2.msra.mxu0 0.0
  %1714 = vmatprep.subr.mxu0 0.0
  %1715 = vmatpush2.msra.mxu0 0.0
  %1716 = vmatprep.subr.mxu0 0.0
  %1717 = vmatpush2.msra.mxu0 0.0
  %1718 = vmatprep.subr.mxu0 0.0
  %1719 = vmatpush2.msra.mxu0 0.0
  %1720 = vmatprep.subr.mxu0 0.0
  %1721 = vmatpush2.msra.mxu0 0.0
  %1722 = vmatprep.subr.mxu0 0.0
  %1723 = vmatpush2.msra.mxu0 0.0
  %1724 = vmatprep.subr.mxu0 0.0
  %1725 = vmatpush2.msra.mxu0 0.0
  %1726 = vmatprep.subr.mxu0 0.0
  %1727 = vmatpush2.msra.mxu0 0.0
  %1728 = vmatprep.subr.mxu0 0.0
  %1729 = vmatpush2.msra.mxu0 0.0
  %1730 = vmatprep.subr.mxu0 0.0
  %1731 = vmatpush2.msra.mxu0 0.0
  %1732 = vmatprep.subr.mxu0 0.0
  %1733 = vmatpush2.msra.mxu0 0.0
  %1734 = vmatprep.subr.mxu0 0.0
  %1735 = vmatpush2.msra.mxu0 0.0
  %1736 = vmatprep.subr.mxu0 0.0
  %1737 = vmatpush2.msra.mxu0 0.0
  %1738 = vmatprep.subr.mxu0 0.0
  %1739 = vmatpush2.msra.mxu0 0.0
  %1740 = vmatprep.subr.mxu0 0.0
  %1741 = vmatpush2.msra.mxu0 0.0
  %1742 = vmatprep.subr.mxu0 0.0
  %1743 = vmatpush2.msra.mxu0 0.0
  %1744 = vmatprep.mubr.f32.mxu0 0.0
  %1745 = vmatmul.mubr.f32.gmra.mxu0 %v1669
  %v1746 = vpop.f32.mrf.mxu0
  %v1747 = vadd.f32 0.0, %v1746
  %v1748 = vpop.f32.mrf.mxu0
  %1749 = vmatprep.mubr.f32.mxu0 0.0
  %1750 = vmatmul.mubr.f32.gmra.mxu0 %v1672
  %v1751 = vpop.f32.mrf.mxu0
  %v1752 = vadd.f32 0.0, %v1751
  %v1753 = vpop.f32.mrf.mxu0
  %1754 = vmatprep.mubr.f32.mxu0 0.0
  %1755 = vmatmul.mubr.f32.gmra.mxu0 %v1675
  %v1756 = vpop.f32.mrf.mxu0
  %v1757 = vadd.f32 0.0, %v1756
  %v1758 = vpop.f32.mrf.mxu0
  %1759 = vmatprep.mubr.f32.mxu0 0.0
  %1760 = vmatmul.mubr.f32.gmra.mxu0 %v1678
  %v1761 = vpop.f32.mrf.mxu0
  %v1762 = vadd.f32 0.0, %v1761
  %v1763 = vpop.f32.mrf.mxu0
  %1764 = vdwg.mxu0
  %1765 = vset.pattern.permute.xlu0 6
  %1766 = vperm.xlu0 %1765, %v1337
  %v1767 = vpop.permute.xlu0 %1766
  %1769 = vset.pattern.permute.xlu0 6
  %1770 = vperm.xlu0 %1769, %v1342
  %v1771 = vpop.permute.xlu0 %1770
  %1773 = vset.pattern.permute.xlu0 6
  %1774 = vperm.xlu0 %1773, %v1347
  %v1775 = vpop.permute.xlu0 %1774
  %1777 = vset.pattern.permute.xlu0 6
  %1778 = vperm.xlu0 %1777, %v1352
  %v1779 = vpop.permute.xlu0 %1778
  %v1781 = vlaneseq
  %v1782 = vshrl.u32 %v1781, 7
  %v1783 = vsub.s32 2, %v1782
  %v1784 = vrot.slane %v1371, %v1783
  %v1785 = vadd.f32 %v1767, %v1784
  %v1786 = vadd.f32 %v1771, %v1784
  %v1787 = vadd.f32 %v1775, %v1784
  %v1788 = vadd.f32 %v1779, %v1784
  %vm1789 = vcmp.ge.f32.partialorder %v1785, 0.0
  %vm1790 = vcmp.ge.f32.partialorder %v1786, 0.0
  %vm1791 = vcmp.ge.f32.partialorder %v1787, 0.0
  %vm1792 = vcmp.ge.f32.partialorder %v1788, 0.0
  %v1793 = vmul.f32 %v1785, 0.2
  %v1794 = vmul.f32 %v1786, 0.2
  %v1795 = vmul.f32 %v1787, 0.2
  %v1796 = vmul.f32 %v1788, 0.2
  %v1797 = vsel %vm1789, %v1785, %v1793
  %v1798 = vsel %vm1790, %v1786, %v1794
  %v1799 = vsel %vm1791, %v1787, %v1795
  %v1800 = vsel %vm1792, %v1788, %v1796
  %v1801 = vadd.f32 %v1797, %v38
  %v1802 = vadd.f32 %v1798, %v39
  %v1803 = vadd.f32 %v1799, %v40
  %v1804 = vadd.f32 %v1800, %v41
  %v1805 = vsel %vm328, %v1801, -inf
  %1806 = vmax.xlane.f32.xlu0 %v1805
  %v1807 = vpop.xlane.xlu0 %1806
  %v1808 = vsel %vm328, %v1802, -inf
  %1809 = vmax.xlane.f32.xlu0 %v1808
  %v1810 = vpop.xlane.xlu0 %1809
  %v1811 = vsel %vm328, %v1803, -inf
  %1812 = vmax.xlane.f32.xlu0 %v1811
  %v1813 = vpop.xlane.xlu0 %1812
  %v1814 = vsel %vm328, %v1804, -inf
  %1815 = vmax.xlane.f32.xlu0 %v1814
  %v1816 = vpop.xlane.xlu0 %1815
  %v1817 = vsub.f32 %v1801, %v1807
  %v1818 = vsub.f32 %v1802, %v1810
  %v1819 = vsub.f32 %v1803, %v1813
  %v1820 = vsub.f32 %v1804, %v1816
  %v1821 = vmul.f32 %v1817, 1.442695
  %v1822 = vpow.pop %v1821
  %v1823 = vmul.f32 %v1818, 1.442695
  %v1824 = vpow.pop %v1823
  %v1825 = vmul.f32 %v1819, 1.442695
  %v1826 = vpow.pop %v1825
  %v1827 = vmul.f32 %v1820, 1.442695
  %v1828 = vpow.pop %v1827
  %v1829 = vsel %vm328, %v1822, 0.0
  %1830 = vadd.xlane.f32.xlu0 %v1829
  %v1831 = vpop.xlane.xlu0 %1830
  %v1832 = vsel %vm328, %v1824, 0.0
  %1833 = vadd.xlane.f32.xlu0 %v1832
  %v1834 = vpop.xlane.xlu0 %1833
  %v1835 = vsel %vm328, %v1826, 0.0
  %1836 = vadd.xlane.f32.xlu0 %v1835
  %v1837 = vpop.xlane.xlu0 %1836
  %v1838 = vsel %vm328, %v1828, 0.0
  %1839 = vadd.xlane.f32.xlu0 %v1838
  %v1840 = vpop.xlane.xlu0 %1839
  %v1841 = vrcp.pop %v1831
  %v1842 = vrcp.pop %v1834
  %v1843 = vrcp.pop %v1837
  %v1844 = vrcp.pop %v1840
  %v1845 = vmul.f32 %v1822, %v1841
  %v1846 = vmul.f32 %v1824, %v1842
  %v1847 = vmul.f32 %v1826, %v1843
  %v1848 = vmul.f32 %v1828, %v1844
  %1849 = vrot.lane.b32.xlu0 %v1232, 96
  %v1850 = vpop.permute.xlu0 %1849
  %1851 = vrot.lane.b32.xlu0 %v1237, 96
  %v1852 = vpop.permute.xlu0 %1851
  %1853 = vrot.lane.b32.xlu0 %v1242, 96
  %v1854 = vpop.permute.xlu0 %1853
  %1855 = vrot.lane.b32.xlu0 %v1247, 96
  %v1856 = vpop.permute.xlu0 %1855
  %v1862 = vsel %vm328, %v1845, 0
  %v1865 = vsel %vm328, %v1846, 0
  %v1868 = vsel %vm328, %v1847, 0
  %v1871 = vsel %vm328, %v1848, 0
  %1873 = vmatprep.subr.mxu0 0.0
  %1874 = vmatpush1.msra.mxu0 0.0
  %1875 = vmatprep.subr.mxu0 0.0
  %1876 = vmatpush1.msra.mxu0 0.0
  %1877 = vmatprep.subr.mxu0 0.0
  %1878 = vmatpush1.msra.mxu0 0.0
  %1879 = vmatprep.subr.mxu0 0.0
  %1880 = vmatpush1.msra.mxu0 0.0
  %1881 = vmatprep.subr.mxu0 0.0
  %1882 = vmatpush1.msra.mxu0 0.0
  %1883 = vmatprep.subr.mxu0 0.0
  %1884 = vmatpush1.msra.mxu0 0.0
  %1885 = vmatprep.subr.mxu0 0.0
  %1886 = vmatpush1.msra.mxu0 0.0
  %1887 = vmatprep.subr.mxu0 0.0
  %1888 = vmatpush1.msra.mxu0 0.0
  %1889 = vmatprep.subr.mxu0 0.0
  %1890 = vmatpush1.msra.mxu0 0.0
  %1891 = vmatprep.subr.mxu0 0.0
  %1892 = vmatpush1.msra.mxu0 0.0
  %1893 = vmatprep.subr.mxu0 0.0
  %1894 = vmatpush1.msra.mxu0 0.0
  %1895 = vmatprep.subr.mxu0 0.0
  %1896 = vmatpush1.msra.mxu0 0.0
  %1897 = vmatprep.subr.mxu0 0.0
  %1898 = vmatpush1.msra.mxu0 %v1856
  %1899 = vmatprep.subr.mxu0 0.0
  %1900 = vmatpush1.msra.mxu0 %v1854
  %1901 = vmatprep.subr.mxu0 0.0
  %1902 = vmatpush1.msra.mxu0 %v1852
  %1903 = vmatprep.subr.mxu0 0.0
  %1904 = vmatpush1.msra.mxu0 %v1850
  %1905 = vmatprep.subr.mxu0 0.0
  %1906 = vmatpush2.msra.mxu0 0.0
  %1907 = vmatprep.subr.mxu0 0.0
  %1908 = vmatpush2.msra.mxu0 0.0
  %1909 = vmatprep.subr.mxu0 0.0
  %1910 = vmatpush2.msra.mxu0 0.0
  %1911 = vmatprep.subr.mxu0 0.0
  %1912 = vmatpush2.msra.mxu0 0.0
  %1913 = vmatprep.subr.mxu0 0.0
  %1914 = vmatpush2.msra.mxu0 0.0
  %1915 = vmatprep.subr.mxu0 0.0
  %1916 = vmatpush2.msra.mxu0 0.0
  %1917 = vmatprep.subr.mxu0 0.0
  %1918 = vmatpush2.msra.mxu0 0.0
  %1919 = vmatprep.subr.mxu0 0.0
  %1920 = vmatpush2.msra.mxu0 0.0
  %1921 = vmatprep.subr.mxu0 0.0
  %1922 = vmatpush2.msra.mxu0 0.0
  %1923 = vmatprep.subr.mxu0 0.0
  %1924 = vmatpush2.msra.mxu0 0.0
  %1925 = vmatprep.subr.mxu0 0.0
  %1926 = vmatpush2.msra.mxu0 0.0
  %1927 = vmatprep.subr.mxu0 0.0
  %1928 = vmatpush2.msra.mxu0 0.0
  %1929 = vmatprep.subr.mxu0 0.0
  %1930 = vmatpush2.msra.mxu0 0.0
  %1931 = vmatprep.subr.mxu0 0.0
  %1932 = vmatpush2.msra.mxu0 0.0
  %1933 = vmatprep.subr.mxu0 0.0
  %1934 = vmatpush2.msra.mxu0 0.0
  %1935 = vmatprep.subr.mxu0 0.0
  %1936 = vmatpush2.msra.mxu0 0.0
  %1937 = vmatprep.mubr.f32.mxu0 0.0
  %1938 = vmatmul.mubr.f32.gmra.mxu0 %v1862
  %v1939 = vpop.f32.mrf.mxu0
  %v1940 = vadd.f32 0.0, %v1939
  %v1941 = vpop.f32.mrf.mxu0
  %1942 = vmatprep.mubr.f32.mxu0 0.0
  %1943 = vmatmul.mubr.f32.gmra.mxu0 %v1865
  %v1944 = vpop.f32.mrf.mxu0
  %v1945 = vadd.f32 0.0, %v1944
  %v1946 = vpop.f32.mrf.mxu0
  %1947 = vmatprep.mubr.f32.mxu0 0.0
  %1948 = vmatmul.mubr.f32.gmra.mxu0 %v1868
  %v1949 = vpop.f32.mrf.mxu0
  %v1950 = vadd.f32 0.0, %v1949
  %v1951 = vpop.f32.mrf.mxu0
  %1952 = vmatprep.mubr.f32.mxu0 0.0
  %1953 = vmatmul.mubr.f32.gmra.mxu0 %v1871
  %v1954 = vpop.f32.mrf.mxu0
  %v1955 = vadd.f32 0.0, %v1954
  %v1956 = vpop.f32.mrf.mxu0
  %1957 = vdwg.mxu0
  %1958 = vset.pattern.permute.xlu0 7
  %1959 = vperm.xlu0 %1958, %v1337
  %v1960 = vpop.permute.xlu0 %1959
  %1962 = vset.pattern.permute.xlu0 7
  %1963 = vperm.xlu0 %1962, %v1342
  %v1964 = vpop.permute.xlu0 %1963
  %1966 = vset.pattern.permute.xlu0 7
  %1967 = vperm.xlu0 %1966, %v1347
  %v1968 = vpop.permute.xlu0 %1967
  %1970 = vset.pattern.permute.xlu0 7
  %1971 = vperm.xlu0 %1970, %v1352
  %v1972 = vpop.permute.xlu0 %1971
  %v1974 = vlaneseq
  %v1975 = vshrl.u32 %v1974, 7
  %v1976 = vsub.s32 3, %v1975
  %v1977 = vrot.slane %v1371, %v1976
  %v1978 = vadd.f32 %v1960, %v1977
  %v1979 = vadd.f32 %v1964, %v1977
  %v1980 = vadd.f32 %v1968, %v1977
  %v1981 = vadd.f32 %v1972, %v1977
  %vm1982 = vcmp.ge.f32.partialorder %v1978, 0.0
  %vm1983 = vcmp.ge.f32.partialorder %v1979, 0.0
  %vm1984 = vcmp.ge.f32.partialorder %v1980, 0.0
  %vm1985 = vcmp.ge.f32.partialorder %v1981, 0.0
  %v1986 = vmul.f32 %v1978, 0.2
  %v1987 = vmul.f32 %v1979, 0.2
  %v1988 = vmul.f32 %v1980, 0.2
  %v1989 = vmul.f32 %v1981, 0.2
  %v1990 = vsel %vm1982, %v1978, %v1986
  %v1991 = vsel %vm1983, %v1979, %v1987
  %v1992 = vsel %vm1984, %v1980, %v1988
  %v1993 = vsel %vm1985, %v1981, %v1989
  %v1994 = vadd.f32 %v1990, %v38
  %v1995 = vadd.f32 %v1991, %v39
  %v1996 = vadd.f32 %v1992, %v40
  %v1997 = vadd.f32 %v1993, %v41
  %v1998 = vsel %vm328, %v1994, -inf
  %1999 = vmax.xlane.f32.xlu0 %v1998
  %v2000 = vpop.xlane.xlu0 %1999
  %v2001 = vsel %vm328, %v1995, -inf
  %2002 = vmax.xlane.f32.xlu0 %v2001
  %v2003 = vpop.xlane.xlu0 %2002
  %v2004 = vsel %vm328, %v1996, -inf
  %2005 = vmax.xlane.f32.xlu0 %v2004
  %v2006 = vpop.xlane.xlu0 %2005
  %v2007 = vsel %vm328, %v1997, -inf
  %2008 = vmax.xlane.f32.xlu0 %v2007
  %v2009 = vpop.xlane.xlu0 %2008
  %v2010 = vsub.f32 %v1994, %v2000
  %v2011 = vsub.f32 %v1995, %v2003
  %v2012 = vsub.f32 %v1996, %v2006
  %v2013 = vsub.f32 %v1997, %v2009
  %v2014 = vmul.f32 %v2010, 1.442695
  %v2015 = vpow.pop %v2014
  %v2016 = vmul.f32 %v2011, 1.442695
  %v2017 = vpow.pop %v2016
  %v2018 = vmul.f32 %v2012, 1.442695
  %v2019 = vpow.pop %v2018
  %v2020 = vmul.f32 %v2013, 1.442695
  %v2021 = vpow.pop %v2020
  %v2022 = vsel %vm328, %v2015, 0.0
  %2023 = vadd.xlane.f32.xlu0 %v2022
  %v2024 = vpop.xlane.xlu0 %2023
  %v2025 = vsel %vm328, %v2017, 0.0
  %2026 = vadd.xlane.f32.xlu0 %v2025
  %v2027 = vpop.xlane.xlu0 %2026
  %v2028 = vsel %vm328, %v2019, 0.0
  %2029 = vadd.xlane.f32.xlu0 %v2028
  %v2030 = vpop.xlane.xlu0 %2029
  %v2031 = vsel %vm328, %v2021, 0.0
  %2032 = vadd.xlane.f32.xlu0 %v2031
  %v2033 = vpop.xlane.xlu0 %2032
  %v2034 = vrcp.pop %v2024
  %v2035 = vrcp.pop %v2027
  %v2036 = vrcp.pop %v2030
  %v2037 = vrcp.pop %v2033
  %v2038 = vmul.f32 %v2015, %v2034
  %v2039 = vmul.f32 %v2017, %v2035
  %v2040 = vmul.f32 %v2019, %v2036
  %v2041 = vmul.f32 %v2021, %v2037
  %2042 = vrot.lane.b32.xlu0 %v1232, 80
  %v2043 = vpop.permute.xlu0 %2042
  %2044 = vrot.lane.b32.xlu0 %v1237, 80
  %v2045 = vpop.permute.xlu0 %2044
  %2046 = vrot.lane.b32.xlu0 %v1242, 80
  %v2047 = vpop.permute.xlu0 %2046
  %2048 = vrot.lane.b32.xlu0 %v1247, 80
  %v2049 = vpop.permute.xlu0 %2048
  %v2055 = vsel %vm328, %v2038, 0
  %v2058 = vsel %vm328, %v2039, 0
  %v2061 = vsel %vm328, %v2040, 0
  %v2064 = vsel %vm328, %v2041, 0
  %2066 = vmatprep.subr.mxu0 0.0
  %2067 = vmatpush1.msra.mxu0 0.0
  %2068 = vmatprep.subr.mxu0 0.0
  %2069 = vmatpush1.msra.mxu0 0.0
  %2070 = vmatprep.subr.mxu0 0.0
  %2071 = vmatpush1.msra.mxu0 0.0
  %2072 = vmatprep.subr.mxu0 0.0
  %2073 = vmatpush1.msra.mxu0 0.0
  %2074 = vmatprep.subr.mxu0 0.0
  %2075 = vmatpush1.msra.mxu0 0.0
  %2076 = vmatprep.subr.mxu0 0.0
  %2077 = vmatpush1.msra.mxu0 0.0
  %2078 = vmatprep.subr.mxu0 0.0
  %2079 = vmatpush1.msra.mxu0 0.0
  %2080 = vmatprep.subr.mxu0 0.0
  %2081 = vmatpush1.msra.mxu0 0.0
  %2082 = vmatprep.subr.mxu0 0.0
  %2083 = vmatpush1.msra.mxu0 0.0
  %2084 = vmatprep.subr.mxu0 0.0
  %2085 = vmatpush1.msra.mxu0 0.0
  %2086 = vmatprep.subr.mxu0 0.0
  %2087 = vmatpush1.msra.mxu0 0.0
  %2088 = vmatprep.subr.mxu0 0.0
  %2089 = vmatpush1.msra.mxu0 0.0
  %2090 = vmatprep.subr.mxu0 0.0
  %2091 = vmatpush1.msra.mxu0 %v2049
  %2092 = vmatprep.subr.mxu0 0.0
  %2093 = vmatpush1.msra.mxu0 %v2047
  %2094 = vmatprep.subr.mxu0 0.0
  %2095 = vmatpush1.msra.mxu0 %v2045
  %2096 = vmatprep.subr.mxu0 0.0
  %2097 = vmatpush1.msra.mxu0 %v2043
  %2098 = vmatprep.subr.mxu0 0.0
  %2099 = vmatpush2.msra.mxu0 0.0
  %2100 = vmatprep.subr.mxu0 0.0
  %2101 = vmatpush2.msra.mxu0 0.0
  %2102 = vmatprep.subr.mxu0 0.0
  %2103 = vmatpush2.msra.mxu0 0.0
  %2104 = vmatprep.subr.mxu0 0.0
  %2105 = vmatpush2.msra.mxu0 0.0
  %2106 = vmatprep.subr.mxu0 0.0
  %2107 = vmatpush2.msra.mxu0 0.0
  %2108 = vmatprep.subr.mxu0 0.0
  %2109 = vmatpush2.msra.mxu0 0.0
  %2110 = vmatprep.subr.mxu0 0.0
  %2111 = vmatpush2.msra.mxu0 0.0
  %2112 = vmatprep.subr.mxu0 0.0
  %2113 = vmatpush2.msra.mxu0 0.0
  %2114 = vmatprep.subr.mxu0 0.0
  %2115 = vmatpush2.msra.mxu0 0.0
  %2116 = vmatprep.subr.mxu0 0.0
  %2117 = vmatpush2.msra.mxu0 0.0
  %2118 = vmatprep.subr.mxu0 0.0
  %2119 = vmatpush2.msra.mxu0 0.0
  %2120 = vmatprep.subr.mxu0 0.0
  %2121 = vmatpush2.msra.mxu0 0.0
  %2122 = vmatprep.subr.mxu0 0.0
  %2123 = vmatpush2.msra.mxu0 0.0
  %2124 = vmatprep.subr.mxu0 0.0
  %2125 = vmatpush2.msra.mxu0 0.0
  %2126 = vmatprep.subr.mxu0 0.0
  %2127 = vmatpush2.msra.mxu0 0.0
  %2128 = vmatprep.subr.mxu0 0.0
  %2129 = vmatpush2.msra.mxu0 0.0
  %2130 = vmatprep.mubr.f32.mxu0 0.0
  %2131 = vmatmul.mubr.f32.gmra.mxu0 %v2055
  %v2132 = vpop.f32.mrf.mxu0
  %v2133 = vadd.f32 0.0, %v2132
  %v2134 = vpop.f32.mrf.mxu0
  %2135 = vmatprep.mubr.f32.mxu0 0.0
  %2136 = vmatmul.mubr.f32.gmra.mxu0 %v2058
  %v2137 = vpop.f32.mrf.mxu0
  %v2138 = vadd.f32 0.0, %v2137
  %v2139 = vpop.f32.mrf.mxu0
  %2140 = vmatprep.mubr.f32.mxu0 0.0
  %2141 = vmatmul.mubr.f32.gmra.mxu0 %v2061
  %v2142 = vpop.f32.mrf.mxu0
  %v2143 = vadd.f32 0.0, %v2142
  %v2144 = vpop.f32.mrf.mxu0
  %2145 = vmatprep.mubr.f32.mxu0 0.0
  %2146 = vmatmul.mubr.f32.gmra.mxu0 %v2064
  %v2147 = vpop.f32.mrf.mxu0
  %v2148 = vadd.f32 0.0, %v2147
  %v2149 = vpop.f32.mrf.mxu0
  %2150 = vdwg.mxu0
  %v2151 = vld [vmem:[%s7] sm:$0x1]
  %2156 = vrot.lane.b32.xlu0 %v1747, 16
  %v2157 = vpop.permute.xlu0 %2156
  %2158 = vrot.lane.b32.xlu0 %v1752, 16
  %v2159 = vpop.permute.xlu0 %2158
  %2160 = vrot.lane.b32.xlu0 %v1757, 16
  %v2161 = vpop.permute.xlu0 %2160
  %2162 = vrot.lane.b32.xlu0 %v1762, 16
  %v2163 = vpop.permute.xlu0 %2162
  %2172 = vrot.lane.b32.xlu0 %v1940, 32
  %v2173 = vpop.permute.xlu0 %2172
  %2174 = vrot.lane.b32.xlu0 %v1945, 32
  %v2175 = vpop.permute.xlu0 %2174
  %2176 = vrot.lane.b32.xlu0 %v1950, 32
  %v2177 = vpop.permute.xlu0 %2176
  %2178 = vrot.lane.b32.xlu0 %v1955, 32
  %v2179 = vpop.permute.xlu0 %2178
  %2188 = vrot.lane.b32.xlu0 %v2133, 48
  %v2189 = vpop.permute.xlu0 %2188
  %2190 = vrot.lane.b32.xlu0 %v2138, 48
  %v2191 = vpop.permute.xlu0 %2190
  %2192 = vrot.lane.b32.xlu0 %v2143, 48
  %v2193 = vpop.permute.xlu0 %2192
  %2194 = vrot.lane.b32.xlu0 %v2148, 48
  %v2195 = vpop.permute.xlu0 %2194
  %v2200 = vsel %vm48, %v1554, %v2157
  %v2201 = vsel %vm48, %v1559, %v2159
  %v2202 = vsel %vm48, %v1564, %v2161
  %v2203 = vsel %vm48, %v1569, %v2163
  %v2204 = vsel %vm328, %v2200, %v2173
  %v2205 = vsel %vm328, %v2201, %v2175
  %v2206 = vsel %vm328, %v2202, %v2177
  %v2207 = vsel %vm328, %v2203, %v2179
  %v2208 = vsel %vm1106, %v2204, %v2189
  %v2209 = vsel %vm1106, %v2205, %v2191
  %v2210 = vsel %vm1106, %v2206, %v2193
  %v2211 = vsel %vm1106, %v2207, %v2195
  %v2213 = vlaneseq
  %v2214 = vshrl.u32 %v2213, 7
  %v2215 = vsub.s32 0, %v2214
  %v2216 = vrot.slane %v2151, %v2215
  %v2218 = vadd.f32 %v2208, %v2216
  %v2219 = vadd.f32 %v2209, %v2216
  %v2220 = vadd.f32 %v2210, %v2216
  %v2221 = vadd.f32 %v2211, %v2216
  %vm2222 = vcmp.gt.f32.partialorder %v2218, 0.0
  %vm2223 = vcmp.gt.f32.partialorder %v2219, 0.0
  %vm2224 = vcmp.gt.f32.partialorder %v2220, 0.0
  %vm2225 = vcmp.gt.f32.partialorder %v2221, 0.0
  %v2226 = vmin.f32 %v2218, 0.0
  %v2227 = vmin.f32 %v2219, 0.0
  %v2228 = vmin.f32 %v2220, 0.0
  %v2229 = vmin.f32 %v2221, 0.0
  %v2230 = vmul.f32 %v2226, 1.442695
  %v2231 = vpow.pop %v2230
  %v2232 = vmul.f32 %v2227, 1.442695
  %v2233 = vpow.pop %v2232
  %v2234 = vmul.f32 %v2228, 1.442695
  %v2235 = vpow.pop %v2234
  %v2236 = vmul.f32 %v2229, 1.442695
  %v2237 = vpow.pop %v2236
  %v2238 = vsub.f32 %v2231, 1.0
  %v2239 = vsub.f32 %v2233, 1.0
  %v2240 = vsub.f32 %v2235, 1.0
  %v2241 = vsub.f32 %v2237, 1.0
  %v2242 = vsel %vm2222, %v2218, %v2238
  %v2243 = vsel %vm2223, %v2219, %v2239
  %v2244 = vsel %vm2224, %v2220, %v2240
  %v2245 = vsel %vm2225, %v2221, %v2241
  %v2246 = vld [vmem:[%s8] sm:$0xff]
  %v2247 = vld [vmem:[%s8 + $0x8] sm:$0xff]
  %v2248 = vld [vmem:[%s8 + $0x10] sm:$0xff]
  %v2249 = vld [vmem:[%s8 + $0x18] sm:$0xff]
  %v2250 = vld [vmem:[%s8 + $0x20] sm:$0xff]
  %v2251 = vld [vmem:[%s8 + $0x28] sm:$0xff]
  %v2252 = vld [vmem:[%s8 + $0x30] sm:$0xff]
  %v2253 = vld [vmem:[%s8 + $0x38] sm:$0xff]
  %v2255 = vsel %vm154, %v2242, 0
  %v2258 = vsel %vm154, %v2243, 0
  %v2261 = vsel %vm154, %v2244, 0
  %v2264 = vsel %vm154, %v2245, 0
  %2266 = vmatprep.subr.mxu0 0.0
  %2267 = vmatpush1.msra.mxu0 0.0
  %2268 = vmatprep.subr.mxu0 0.0
  %2269 = vmatpush1.msra.mxu0 0.0
  %2270 = vmatprep.subr.mxu0 0.0
  %2271 = vmatpush1.msra.mxu0 0.0
  %2272 = vmatprep.subr.mxu0 0.0
  %2273 = vmatpush1.msra.mxu0 0.0
  %2274 = vmatprep.subr.mxu0 0.0
  %2275 = vmatpush1.msra.mxu0 0.0
  %2276 = vmatprep.subr.mxu0 0.0
  %2277 = vmatpush1.msra.mxu0 0.0
  %2278 = vmatprep.subr.mxu0 0.0
  %2279 = vmatpush1.msra.mxu0 0.0
  %2280 = vmatprep.subr.mxu0 0.0
  %2281 = vmatpush1.msra.mxu0 0.0
  %2282 = vmatprep.subr.mxu0 0.0
  %2283 = vmatpush1.msra.mxu0 %v2253
  %2284 = vmatprep.subr.mxu0 0.0
  %2285 = vmatpush1.msra.mxu0 %v2252
  %2286 = vmatprep.subr.mxu0 0.0
  %2287 = vmatpush1.msra.mxu0 %v2251
  %2288 = vmatprep.subr.mxu0 0.0
  %2289 = vmatpush1.msra.mxu0 %v2250
  %2290 = vmatprep.subr.mxu0 0.0
  %2291 = vmatpush1.msra.mxu0 %v2249
  %2292 = vmatprep.subr.mxu0 0.0
  %2293 = vmatpush1.msra.mxu0 %v2248
  %2294 = vmatprep.subr.mxu0 0.0
  %2295 = vmatpush1.msra.mxu0 %v2247
  %2296 = vmatprep.subr.mxu0 0.0
  %2297 = vmatpush1.msra.mxu0 %v2246
  %2298 = vmatprep.subr.mxu0 0.0
  %2299 = vmatpush2.msra.mxu0 0.0
  %2300 = vmatprep.subr.mxu0 0.0
  %2301 = vmatpush2.msra.mxu0 0.0
  %2302 = vmatprep.subr.mxu0 0.0
  %2303 = vmatpush2.msra.mxu0 0.0
  %2304 = vmatprep.subr.mxu0 0.0
  %2305 = vmatpush2.msra.mxu0 0.0
  %2306 = vmatprep.subr.mxu0 0.0
  %2307 = vmatpush2.msra.mxu0 0.0
  %2308 = vmatprep.subr.mxu0 0.0
  %2309 = vmatpush2.msra.mxu0 0.0
  %2310 = vmatprep.subr.mxu0 0.0
  %2311 = vmatpush2.msra.mxu0 0.0
  %2312 = vmatprep.subr.mxu0 0.0
  %2313 = vmatpush2.msra.mxu0 0.0
  %2314 = vmatprep.subr.mxu0 0.0
  %2315 = vmatpush2.msra.mxu0 0.0
  %2316 = vmatprep.subr.mxu0 0.0
  %2317 = vmatpush2.msra.mxu0 0.0
  %2318 = vmatprep.subr.mxu0 0.0
  %2319 = vmatpush2.msra.mxu0 0.0
  %2320 = vmatprep.subr.mxu0 0.0
  %2321 = vmatpush2.msra.mxu0 0.0
  %2322 = vmatprep.subr.mxu0 0.0
  %2323 = vmatpush2.msra.mxu0 0.0
  %2324 = vmatprep.subr.mxu0 0.0
  %2325 = vmatpush2.msra.mxu0 0.0
  %2326 = vmatprep.subr.mxu0 0.0
  %2327 = vmatpush2.msra.mxu0 0.0
  %2328 = vmatprep.subr.mxu0 0.0
  %2329 = vmatpush2.msra.mxu0 0.0
  %2330 = vmatprep.mubr.f32.mxu0 0.0
  %2331 = vmatmul.mubr.f32.gmra.mxu0 %v2255
  %v2332 = vpop.f32.mrf.mxu0
  %v2333 = vadd.f32 0.0, %v2332
  %v2334 = vpop.f32.mrf.mxu0
  %2335 = vmatprep.mubr.f32.mxu0 0.0
  %2336 = vmatmul.mubr.f32.gmra.mxu0 %v2258
  %v2337 = vpop.f32.mrf.mxu0
  %v2338 = vadd.f32 0.0, %v2337
  %v2339 = vpop.f32.mrf.mxu0
  %2340 = vmatprep.mubr.f32.mxu0 0.0
  %2341 = vmatmul.mubr.f32.gmra.mxu0 %v2261
  %v2342 = vpop.f32.mrf.mxu0
  %v2343 = vadd.f32 0.0, %v2342
  %v2344 = vpop.f32.mrf.mxu0
  %2345 = vmatprep.mubr.f32.mxu0 0.0
  %2346 = vmatmul.mubr.f32.gmra.mxu0 %v2264
  %v2347 = vpop.f32.mrf.mxu0
  %v2348 = vadd.f32 0.0, %v2347
  %v2349 = vpop.f32.mrf.mxu0
  %2350 = vdwg.mxu0
  %v2351 = vld [vmem:[%s9] sm:$0xff]
  %v2352 = vld [vmem:[%s9 + $0x8] sm:$0xff]
  %v2353 = vld [vmem:[%s9 + $0x10] sm:$0xff]
  %v2354 = vld [vmem:[%s9 + $0x18] sm:$0xff]
  %v2356 = vsel %vm328, %v2333, 0
  %v2359 = vsel %vm328, %v2338, 0
  %v2362 = vsel %vm328, %v2343, 0
  %v2365 = vsel %vm328, %v2348, 0
  %2367 = vmatprep.subr.mxu0 0.0
  %2368 = vmatpush1.msra.mxu0 0.0
  %2369 = vmatprep.subr.mxu0 0.0
  %2370 = vmatpush1.msra.mxu0 0.0
  %2371 = vmatprep.subr.mxu0 0.0
  %2372 = vmatpush1.msra.mxu0 0.0
  %2373 = vmatprep.subr.mxu0 0.0
  %2374 = vmatpush1.msra.mxu0 0.0
  %2375 = vmatprep.subr.mxu0 0.0
  %2376 = vmatpush1.msra.mxu0 0.0
  %2377 = vmatprep.subr.mxu0 0.0
  %2378 = vmatpush1.msra.mxu0 0.0
  %2379 = vmatprep.subr.mxu0 0.0
  %2380 = vmatpush1.msra.mxu0 0.0
  %2381 = vmatprep.subr.mxu0 0.0
  %2382 = vmatpush1.msra.mxu0 0.0
  %2383 = vmatprep.subr.mxu0 0.0
  %2384 = vmatpush1.msra.mxu0 0.0
  %2385 = vmatprep.subr.mxu0 0.0
  %2386 = vmatpush1.msra.mxu0 0.0
  %2387 = vmatprep.subr.mxu0 0.0
  %2388 = vmatpush1.msra.mxu0 0.0
  %2389 = vmatprep.subr.mxu0 0.0
  %2390 = vmatpush1.msra.mxu0 0.0
  %2391 = vmatprep.subr.mxu0 0.0
  %2392 = vmatpush1.msra.mxu0 %v2354
  %2393 = vmatprep.subr.mxu0 0.0
  %2394 = vmatpush1.msra.mxu0 %v2353
  %2395 = vmatprep.subr.mxu0 0.0
  %2396 = vmatpush1.msra.mxu0 %v2352
  %2397 = vmatprep.subr.mxu0 0.0
  %2398 = vmatpush1.msra.mxu0 %v2351
  %2399 = vmatprep.subr.mxu0 0.0
  %2400 = vmatpush2.msra.mxu0 0.0
  %2401 = vmatprep.subr.mxu0 0.0
  %2402 = vmatpush2.msra.mxu0 0.0
  %2403 = vmatprep.subr.mxu0 0.0
  %2404 = vmatpush2.msra.mxu0 0.0
  %2405 = vmatprep.subr.mxu0 0.0
  %2406 = vmatpush2.msra.mxu0 0.0
  %2407 = vmatprep.subr.mxu0 0.0
  %2408 = vmatpush2.msra.mxu0 0.0
  %2409 = vmatprep.subr.mxu0 0.0
  %2410 = vmatpush2.msra.mxu0 0.0
  %2411 = vmatprep.subr.mxu0 0.0
  %2412 = vmatpush2.msra.mxu0 0.0
  %2413 = vmatprep.subr.mxu0 0.0
  %2414 = vmatpush2.msra.mxu0 0.0
  %2415 = vmatprep.subr.mxu0 0.0
  %2416 = vmatpush2.msra.mxu0 0.0
  %2417 = vmatprep.subr.mxu0 0.0
  %2418 = vmatpush2.msra.mxu0 0.0
  %2419 = vmatprep.subr.mxu0 0.0
  %2420 = vmatpush2.msra.mxu0 0.0
  %2421 = vmatprep.subr.mxu0 0.0
  %2422 = vmatpush2.msra.mxu0 0.0
  %2423 = vmatprep.subr.mxu0 0.0
  %2424 = vmatpush2.msra.mxu0 0.0
  %2425 = vmatprep.subr.mxu0 0.0
  %2426 = vmatpush2.msra.mxu0 0.0
  %2427 = vmatprep.subr.mxu0 0.0
  %2428 = vmatpush2.msra.mxu0 0.0
  %2429 = vmatprep.subr.mxu0 0.0
  %2430 = vmatpush2.msra.mxu0 0.0
  %2431 = vmatprep.mubr.f32.mxu0 0.0
  %2432 = vmatmul.mubr.f32.gmra.mxu0 %v2356
  %v2433 = vpop.f32.mrf.mxu0
  %v2434 = vadd.f32 0.0, %v2433
  %v2435 = vpop.f32.mrf.mxu0
  %2436 = vmatprep.mubr.f32.mxu0 0.0
  %2437 = vmatmul.mubr.f32.gmra.mxu0 %v2359
  %v2438 = vpop.f32.mrf.mxu0
  %v2439 = vadd.f32 0.0, %v2438
  %v2440 = vpop.f32.mrf.mxu0
  %2441 = vmatprep.mubr.f32.mxu0 0.0
  %2442 = vmatmul.mubr.f32.gmra.mxu0 %v2362
  %v2443 = vpop.f32.mrf.mxu0
  %v2444 = vadd.f32 0.0, %v2443
  %v2445 = vpop.f32.mrf.mxu0
  %2446 = vmatprep.mubr.f32.mxu0 0.0
  %2447 = vmatmul.mubr.f32.gmra.mxu0 %v2365
  %v2448 = vpop.f32.mrf.mxu0
  %v2449 = vadd.f32 0.0, %v2448
  %v2450 = vpop.f32.mrf.mxu0
  %2451 = vdwg.mxu0
  %2452 = vxpose.xlu0.b32.start [1/16] %v2434, 128
  %2453 = vxpose.xlu0.b32.cont [2/16] %v2439, 128
  %2454 = vxpose.xlu0.b32.cont [3/16] %v2444, 128
  %2455 = vxpose.xlu0.b32.cont [4/16] %v2449, 128
  %2456 = vxpose.xlu0.b32.cont [5/16] 0.0, 128
  %2457 = vxpose.xlu0.b32.cont [6/16] 0.0, 128
  %2458 = vxpose.xlu0.b32.cont [7/16] 0.0, 128
  %2459 = vxpose.xlu0.b32.cont [8/16] 0.0, 128
  %2460 = vxpose.xlu0.b32.cont [9/16] 0.0, 128
  %2461 = vxpose.xlu0.b32.cont [10/16] 0.0, 128
  %2462 = vxpose.xlu0.b32.cont [11/16] 0.0, 128
  %2463 = vxpose.xlu0.b32.cont [12/16] 0.0, 128
  %2464 = vxpose.xlu0.b32.cont [13/16] 0.0, 128
  %2465 = vxpose.xlu0.b32.cont [14/16] 0.0, 128
  %2466 = vxpose.xlu0.b32.cont [15/16] 0.0, 128
  %2467 = vxpose.xlu0.b32.end [16/16] 0.0, 128
  %v2468 = vpop.trf.xlu0
  %v2469 = vpop.trf.xlu0
  %v2470 = vpop.trf.xlu0
  %v2471 = vpop.trf.xlu0
  %v2472 = vpop.trf.xlu0
  %v2473 = vpop.trf.xlu0
  %v2474 = vpop.trf.xlu0
  %v2475 = vpop.trf.xlu0
  %v2476 = vpop.trf.xlu0
  %v2477 = vpop.trf.xlu0
  %v2478 = vpop.trf.xlu0
  %v2479 = vpop.trf.xlu0
  %v2480 = vpop.trf.xlu0
  %v2481 = vpop.trf.xlu0
  %v2482 = vpop.trf.xlu0
  %v2483 = vpop.trf.xlu0
  %2485 = vset.pattern.permute.xlu0 4
  %2486 = vperm.xlu0 %2485, %v2434
  %v2487 = vpop.permute.xlu0 %2486
  %2490 = vset.pattern.permute.xlu0 4
  %2491 = vperm.xlu0 %2490, %v2439
  %v2492 = vpop.permute.xlu0 %2491
  %2495 = vset.pattern.permute.xlu0 4
  %2496 = vperm.xlu0 %2495, %v2444
  %v2497 = vpop.permute.xlu0 %2496
  %2500 = vset.pattern.permute.xlu0 4
  %2501 = vperm.xlu0 %2500, %v2449
  %v2502 = vpop.permute.xlu0 %2501
  %v2504 = vlaneseq
  %v2505 = vshrl.u32 %v2504, 7
  %v2506 = vsub.s32 0, %v2505
  %v2507 = vrot.slane %v2468, %v2506
  %v2508 = vadd.f32 %v2487, %v2507
  %v2509 = vadd.f32 %v2492, %v2507
  %v2510 = vadd.f32 %v2497, %v2507
  %v2511 = vadd.f32 %v2502, %v2507
  %vm2512 = vcmp.ge.f32.partialorder %v2508, 0.0
  %vm2513 = vcmp.ge.f32.partialorder %v2509, 0.0
  %vm2514 = vcmp.ge.f32.partialorder %v2510, 0.0
  %vm2515 = vcmp.ge.f32.partialorder %v2511, 0.0
  %v2516 = vmul.f32 %v2508, 0.2
  %v2517 = vmul.f32 %v2509, 0.2
  %v2518 = vmul.f32 %v2510, 0.2
  %v2519 = vmul.f32 %v2511, 0.2
  %v2520 = vsel %vm2512, %v2508, %v2516
  %v2521 = vsel %vm2513, %v2509, %v2517
  %v2522 = vsel %vm2514, %v2510, %v2518
  %v2523 = vsel %vm2515, %v2511, %v2519
  %v2524 = vadd.f32 %v2520, %v38
  %v2525 = vadd.f32 %v2521, %v39
  %v2526 = vadd.f32 %v2522, %v40
  %v2527 = vadd.f32 %v2523, %v41
  %v2528 = vsel %vm328, %v2524, -inf
  %2529 = vmax.xlane.f32.xlu0 %v2528
  %v2530 = vpop.xlane.xlu0 %2529
  %v2531 = vsel %vm328, %v2525, -inf
  %2532 = vmax.xlane.f32.xlu0 %v2531
  %v2533 = vpop.xlane.xlu0 %2532
  %v2534 = vsel %vm328, %v2526, -inf
  %2535 = vmax.xlane.f32.xlu0 %v2534
  %v2536 = vpop.xlane.xlu0 %2535
  %v2537 = vsel %vm328, %v2527, -inf
  %2538 = vmax.xlane.f32.xlu0 %v2537
  %v2539 = vpop.xlane.xlu0 %2538
  %v2540 = vsub.f32 %v2524, %v2530
  %v2541 = vsub.f32 %v2525, %v2533
  %v2542 = vsub.f32 %v2526, %v2536
  %v2543 = vsub.f32 %v2527, %v2539
  %v2544 = vmul.f32 %v2540, 1.442695
  %v2545 = vpow.pop %v2544
  %v2546 = vmul.f32 %v2541, 1.442695
  %v2547 = vpow.pop %v2546
  %v2548 = vmul.f32 %v2542, 1.442695
  %v2549 = vpow.pop %v2548
  %v2550 = vmul.f32 %v2543, 1.442695
  %v2551 = vpow.pop %v2550
  %v2552 = vsel %vm328, %v2545, 0.0
  %2553 = vadd.xlane.f32.xlu0 %v2552
  %v2554 = vpop.xlane.xlu0 %2553
  %v2555 = vsel %vm328, %v2547, 0.0
  %2556 = vadd.xlane.f32.xlu0 %v2555
  %v2557 = vpop.xlane.xlu0 %2556
  %v2558 = vsel %vm328, %v2549, 0.0
  %2559 = vadd.xlane.f32.xlu0 %v2558
  %v2560 = vpop.xlane.xlu0 %2559
  %v2561 = vsel %vm328, %v2551, 0.0
  %2562 = vadd.xlane.f32.xlu0 %v2561
  %v2563 = vpop.xlane.xlu0 %2562
  %v2564 = vrcp.pop %v2554
  %v2565 = vrcp.pop %v2557
  %v2566 = vrcp.pop %v2560
  %v2567 = vrcp.pop %v2563
  %v2568 = vmul.f32 %v2545, %v2564
  %v2569 = vmul.f32 %v2547, %v2565
  %v2570 = vmul.f32 %v2549, %v2566
  %v2571 = vmul.f32 %v2551, %v2567
  %2572 = vset.pattern.permute.xlu0 5
  %2573 = vperm.xlu0 %2572, %v2434
  %v2574 = vpop.permute.xlu0 %2573
  %2576 = vset.pattern.permute.xlu0 5
  %2577 = vperm.xlu0 %2576, %v2439
  %v2578 = vpop.permute.xlu0 %2577
  %2580 = vset.pattern.permute.xlu0 5
  %2581 = vperm.xlu0 %2580, %v2444
  %v2582 = vpop.permute.xlu0 %2581
  %2584 = vset.pattern.permute.xlu0 5
  %2585 = vperm.xlu0 %2584, %v2449
  %v2586 = vpop.permute.xlu0 %2585
  %v2588 = vlaneseq
  %v2589 = vshrl.u32 %v2588, 7
  %v2590 = vsub.s32 1, %v2589
  %v2591 = vrot.slane %v2468, %v2590
  %v2592 = vadd.f32 %v2574, %v2591
  %v2593 = vadd.f32 %v2578, %v2591
  %v2594 = vadd.f32 %v2582, %v2591
  %v2595 = vadd.f32 %v2586, %v2591
  %vm2596 = vcmp.ge.f32.partialorder %v2592, 0.0
  %vm2597 = vcmp.ge.f32.partialorder %v2593, 0.0
  %vm2598 = vcmp.ge.f32.partialorder %v2594, 0.0
  %vm2599 = vcmp.ge.f32.partialorder %v2595, 0.0
  %v2600 = vmul.f32 %v2592, 0.2
  %v2601 = vmul.f32 %v2593, 0.2
  %v2602 = vmul.f32 %v2594, 0.2
  %v2603 = vmul.f32 %v2595, 0.2
  %v2604 = vsel %vm2596, %v2592, %v2600
  %v2605 = vsel %vm2597, %v2593, %v2601
  %v2606 = vsel %vm2598, %v2594, %v2602
  %v2607 = vsel %vm2599, %v2595, %v2603
  %v2608 = vadd.f32 %v2604, %v38
  %v2609 = vadd.f32 %v2605, %v39
  %v2610 = vadd.f32 %v2606, %v40
  %v2611 = vadd.f32 %v2607, %v41
  %v2612 = vsel %vm328, %v2608, -inf
  %2613 = vmax.xlane.f32.xlu0 %v2612
  %v2614 = vpop.xlane.xlu0 %2613
  %v2615 = vsel %vm328, %v2609, -inf
  %2616 = vmax.xlane.f32.xlu0 %v2615
  %v2617 = vpop.xlane.xlu0 %2616
  %v2618 = vsel %vm328, %v2610, -inf
  %2619 = vmax.xlane.f32.xlu0 %v2618
  %v2620 = vpop.xlane.xlu0 %2619
  %v2621 = vsel %vm328, %v2611, -inf
  %2622 = vmax.xlane.f32.xlu0 %v2621
  %v2623 = vpop.xlane.xlu0 %2622
  %v2624 = vsub.f32 %v2608, %v2614
  %v2625 = vsub.f32 %v2609, %v2617
  %v2626 = vsub.f32 %v2610, %v2620
  %v2627 = vsub.f32 %v2611, %v2623
  %v2628 = vmul.f32 %v2624, 1.442695
  %v2629 = vpow.pop %v2628
  %v2630 = vmul.f32 %v2625, 1.442695
  %v2631 = vpow.pop %v2630
  %v2632 = vmul.f32 %v2626, 1.442695
  %v2633 = vpow.pop %v2632
  %v2634 = vmul.f32 %v2627, 1.442695
  %v2635 = vpow.pop %v2634
  %v2636 = vsel %vm328, %v2629, 0.0
  %2637 = vadd.xlane.f32.xlu0 %v2636
  %v2638 = vpop.xlane.xlu0 %2637
  %v2639 = vsel %vm328, %v2631, 0.0
  %2640 = vadd.xlane.f32.xlu0 %v2639
  %v2641 = vpop.xlane.xlu0 %2640
  %v2642 = vsel %vm328, %v2633, 0.0
  %2643 = vadd.xlane.f32.xlu0 %v2642
  %v2644 = vpop.xlane.xlu0 %2643
  %v2645 = vsel %vm328, %v2635, 0.0
  %2646 = vadd.xlane.f32.xlu0 %v2645
  %v2647 = vpop.xlane.xlu0 %2646
  %v2648 = vrcp.pop %v2638
  %v2649 = vrcp.pop %v2641
  %v2650 = vrcp.pop %v2644
  %v2651 = vrcp.pop %v2647
  %v2652 = vmul.f32 %v2629, %v2648
  %v2653 = vmul.f32 %v2631, %v2649
  %v2654 = vmul.f32 %v2633, %v2650
  %v2655 = vmul.f32 %v2635, %v2651
  %2656 = vrot.lane.b32.xlu0 %v2333, 120
  %v2657 = vpop.permute.xlu0 %2656
  %2658 = vrot.lane.b32.xlu0 %v2338, 120
  %v2659 = vpop.permute.xlu0 %2658
  %2660 = vrot.lane.b32.xlu0 %v2343, 120
  %v2661 = vpop.permute.xlu0 %2660
  %2662 = vrot.lane.b32.xlu0 %v2348, 120
  %v2663 = vpop.permute.xlu0 %2662
  %v2669 = vsel %vm328, %v2652, 0
  %v2672 = vsel %vm328, %v2653, 0
  %v2675 = vsel %vm328, %v2654, 0
  %v2678 = vsel %vm328, %v2655, 0
  %2680 = vmatprep.subr.mxu0 0.0
  %2681 = vmatpush1.msra.mxu0 0.0
  %2682 = vmatprep.subr.mxu0 0.0
  %2683 = vmatpush1.msra.mxu0 0.0
  %2684 = vmatprep.subr.mxu0 0.0
  %2685 = vmatpush1.msra.mxu0 0.0
  %2686 = vmatprep.subr.mxu0 0.0
  %2687 = vmatpush1.msra.mxu0 0.0
  %2688 = vmatprep.subr.mxu0 0.0
  %2689 = vmatpush1.msra.mxu0 0.0
  %2690 = vmatprep.subr.mxu0 0.0
  %2691 = vmatpush1.msra.mxu0 0.0
  %2692 = vmatprep.subr.mxu0 0.0
  %2693 = vmatpush1.msra.mxu0 0.0
  %2694 = vmatprep.subr.mxu0 0.0
  %2695 = vmatpush1.msra.mxu0 0.0
  %2696 = vmatprep.subr.mxu0 0.0
  %2697 = vmatpush1.msra.mxu0 0.0
  %2698 = vmatprep.subr.mxu0 0.0
  %2699 = vmatpush1.msra.mxu0 0.0
  %2700 = vmatprep.subr.mxu0 0.0
  %2701 = vmatpush1.msra.mxu0 0.0
  %2702 = vmatprep.subr.mxu0 0.0
  %2703 = vmatpush1.msra.mxu0 0.0
  %2704 = vmatprep.subr.mxu0 0.0
  %2705 = vmatpush1.msra.mxu0 %v2663
  %2706 = vmatprep.subr.mxu0 0.0
  %2707 = vmatpush1.msra.mxu0 %v2661
  %2708 = vmatprep.subr.mxu0 0.0
  %2709 = vmatpush1.msra.mxu0 %v2659
  %2710 = vmatprep.subr.mxu0 0.0
  %2711 = vmatpush1.msra.mxu0 %v2657
  %2712 = vmatprep.subr.mxu0 0.0
  %2713 = vmatpush2.msra.mxu0 0.0
  %2714 = vmatprep.subr.mxu0 0.0
  %2715 = vmatpush2.msra.mxu0 0.0
  %2716 = vmatprep.subr.mxu0 0.0
  %2717 = vmatpush2.msra.mxu0 0.0
  %2718 = vmatprep.subr.mxu0 0.0
  %2719 = vmatpush2.msra.mxu0 0.0
  %2720 = vmatprep.subr.mxu0 0.0
  %2721 = vmatpush2.msra.mxu0 0.0
  %2722 = vmatprep.subr.mxu0 0.0
  %2723 = vmatpush2.msra.mxu0 0.0
  %2724 = vmatprep.subr.mxu0 0.0
  %2725 = vmatpush2.msra.mxu0 0.0
  %2726 = vmatprep.subr.mxu0 0.0
  %2727 = vmatpush2.msra.mxu0 0.0
  %2728 = vmatprep.subr.mxu0 0.0
  %2729 = vmatpush2.msra.mxu0 0.0
  %2730 = vmatprep.subr.mxu0 0.0
  %2731 = vmatpush2.msra.mxu0 0.0
  %2732 = vmatprep.subr.mxu0 0.0
  %2733 = vmatpush2.msra.mxu0 0.0
  %2734 = vmatprep.subr.mxu0 0.0
  %2735 = vmatpush2.msra.mxu0 0.0
  %2736 = vmatprep.subr.mxu0 0.0
  %2737 = vmatpush2.msra.mxu0 0.0
  %2738 = vmatprep.subr.mxu0 0.0
  %2739 = vmatpush2.msra.mxu0 0.0
  %2740 = vmatprep.subr.mxu0 0.0
  %2741 = vmatpush2.msra.mxu0 0.0
  %2742 = vmatprep.subr.mxu0 0.0
  %2743 = vmatpush2.msra.mxu0 0.0
  %2744 = vmatprep.mubr.f32.mxu0 0.0
  %2745 = vmatmul.mubr.f32.gmra.mxu0 %v2669
  %v2746 = vpop.f32.mrf.mxu0
  %v2747 = vadd.f32 0.0, %v2746
  %v2748 = vpop.f32.mrf.mxu0
  %2749 = vmatprep.mubr.f32.mxu0 0.0
  %2750 = vmatmul.mubr.f32.gmra.mxu0 %v2672
  %v2751 = vpop.f32.mrf.mxu0
  %v2752 = vadd.f32 0.0, %v2751
  %v2753 = vpop.f32.mrf.mxu0
  %2754 = vmatprep.mubr.f32.mxu0 0.0
  %2755 = vmatmul.mubr.f32.gmra.mxu0 %v2675
  %v2756 = vpop.f32.mrf.mxu0
  %v2757 = vadd.f32 0.0, %v2756
  %v2758 = vpop.f32.mrf.mxu0
  %2759 = vmatprep.mubr.f32.mxu0 0.0
  %2760 = vmatmul.mubr.f32.gmra.mxu0 %v2678
  %v2761 = vpop.f32.mrf.mxu0
  %v2762 = vadd.f32 0.0, %v2761
  %v2763 = vpop.f32.mrf.mxu0
  %2764 = vdwg.mxu0
  %2765 = vset.pattern.permute.xlu0 6
  %2766 = vperm.xlu0 %2765, %v2434
  %v2767 = vpop.permute.xlu0 %2766
  %2769 = vset.pattern.permute.xlu0 6
  %2770 = vperm.xlu0 %2769, %v2439
  %v2771 = vpop.permute.xlu0 %2770
  %2773 = vset.pattern.permute.xlu0 6
  %2774 = vperm.xlu0 %2773, %v2444
  %v2775 = vpop.permute.xlu0 %2774
  %2777 = vset.pattern.permute.xlu0 6
  %2778 = vperm.xlu0 %2777, %v2449
  %v2779 = vpop.permute.xlu0 %2778
  %v2781 = vlaneseq
  %v2782 = vshrl.u32 %v2781, 7
  %v2783 = vsub.s32 2, %v2782
  %v2784 = vrot.slane %v2468, %v2783
  %v2785 = vadd.f32 %v2767, %v2784
  %v2786 = vadd.f32 %v2771, %v2784
  %v2787 = vadd.f32 %v2775, %v2784
  %v2788 = vadd.f32 %v2779, %v2784
  %vm2789 = vcmp.ge.f32.partialorder %v2785, 0.0
  %vm2790 = vcmp.ge.f32.partialorder %v2786, 0.0
  %vm2791 = vcmp.ge.f32.partialorder %v2787, 0.0
  %vm2792 = vcmp.ge.f32.partialorder %v2788, 0.0
  %v2793 = vmul.f32 %v2785, 0.2
  %v2794 = vmul.f32 %v2786, 0.2
  %v2795 = vmul.f32 %v2787, 0.2
  %v2796 = vmul.f32 %v2788, 0.2
  %v2797 = vsel %vm2789, %v2785, %v2793
  %v2798 = vsel %vm2790, %v2786, %v2794
  %v2799 = vsel %vm2791, %v2787, %v2795
  %v2800 = vsel %vm2792, %v2788, %v2796
  %v2801 = vadd.f32 %v2797, %v38
  %v2802 = vadd.f32 %v2798, %v39
  %v2803 = vadd.f32 %v2799, %v40
  %v2804 = vadd.f32 %v2800, %v41
  %v2805 = vsel %vm328, %v2801, -inf
  %2806 = vmax.xlane.f32.xlu0 %v2805
  %v2807 = vpop.xlane.xlu0 %2806
  %v2808 = vsel %vm328, %v2802, -inf
  %2809 = vmax.xlane.f32.xlu0 %v2808
  %v2810 = vpop.xlane.xlu0 %2809
  %v2811 = vsel %vm328, %v2803, -inf
  %2812 = vmax.xlane.f32.xlu0 %v2811
  %v2813 = vpop.xlane.xlu0 %2812
  %v2814 = vsel %vm328, %v2804, -inf
  %2815 = vmax.xlane.f32.xlu0 %v2814
  %v2816 = vpop.xlane.xlu0 %2815
  %v2817 = vsub.f32 %v2801, %v2807
  %v2818 = vsub.f32 %v2802, %v2810
  %v2819 = vsub.f32 %v2803, %v2813
  %v2820 = vsub.f32 %v2804, %v2816
  %v2821 = vmul.f32 %v2817, 1.442695
  %v2822 = vpow.pop %v2821
  %v2823 = vmul.f32 %v2818, 1.442695
  %v2824 = vpow.pop %v2823
  %v2825 = vmul.f32 %v2819, 1.442695
  %v2826 = vpow.pop %v2825
  %v2827 = vmul.f32 %v2820, 1.442695
  %v2828 = vpow.pop %v2827
  %v2829 = vsel %vm328, %v2822, 0.0
  %2830 = vadd.xlane.f32.xlu0 %v2829
  %v2831 = vpop.xlane.xlu0 %2830
  %v2832 = vsel %vm328, %v2824, 0.0
  %2833 = vadd.xlane.f32.xlu0 %v2832
  %v2834 = vpop.xlane.xlu0 %2833
  %v2835 = vsel %vm328, %v2826, 0.0
  %2836 = vadd.xlane.f32.xlu0 %v2835
  %v2837 = vpop.xlane.xlu0 %2836
  %v2838 = vsel %vm328, %v2828, 0.0
  %2839 = vadd.xlane.f32.xlu0 %v2838
  %v2840 = vpop.xlane.xlu0 %2839
  %v2841 = vrcp.pop %v2831
  %v2842 = vrcp.pop %v2834
  %v2843 = vrcp.pop %v2837
  %v2844 = vrcp.pop %v2840
  %v2845 = vmul.f32 %v2822, %v2841
  %v2846 = vmul.f32 %v2824, %v2842
  %v2847 = vmul.f32 %v2826, %v2843
  %v2848 = vmul.f32 %v2828, %v2844
  %2849 = vrot.lane.b32.xlu0 %v2333, 112
  %v2850 = vpop.permute.xlu0 %2849
  %2851 = vrot.lane.b32.xlu0 %v2338, 112
  %v2852 = vpop.permute.xlu0 %2851
  %2853 = vrot.lane.b32.xlu0 %v2343, 112
  %v2854 = vpop.permute.xlu0 %2853
  %2855 = vrot.lane.b32.xlu0 %v2348, 112
  %v2856 = vpop.permute.xlu0 %2855
  %v2862 = vsel %vm328, %v2845, 0
  %v2865 = vsel %vm328, %v2846, 0
  %v2868 = vsel %vm328, %v2847, 0
  %v2871 = vsel %vm328, %v2848, 0
  %2873 = vmatprep.subr.mxu0 0.0
  %2874 = vmatpush1.msra.mxu0 0.0
  %2875 = vmatprep.subr.mxu0 0.0
  %2876 = vmatpush1.msra.mxu0 0.0
  %2877 = vmatprep.subr.mxu0 0.0
  %2878 = vmatpush1.msra.mxu0 0.0
  %2879 = vmatprep.subr.mxu0 0.0
  %2880 = vmatpush1.msra.mxu0 0.0
  %2881 = vmatprep.subr.mxu0 0.0
  %2882 = vmatpush1.msra.mxu0 0.0
  %2883 = vmatprep.subr.mxu0 0.0
  %2884 = vmatpush1.msra.mxu0 0.0
  %2885 = vmatprep.subr.mxu0 0.0
  %2886 = vmatpush1.msra.mxu0 0.0
  %2887 = vmatprep.subr.mxu0 0.0
  %2888 = vmatpush1.msra.mxu0 0.0
  %2889 = vmatprep.subr.mxu0 0.0
  %2890 = vmatpush1.msra.mxu0 0.0
  %2891 = vmatprep.subr.mxu0 0.0
  %2892 = vmatpush1.msra.mxu0 0.0
  %2893 = vmatprep.subr.mxu0 0.0
  %2894 = vmatpush1.msra.mxu0 0.0
  %2895 = vmatprep.subr.mxu0 0.0
  %2896 = vmatpush1.msra.mxu0 0.0
  %2897 = vmatprep.subr.mxu0 0.0
  %2898 = vmatpush1.msra.mxu0 %v2856
  %2899 = vmatprep.subr.mxu0 0.0
  %2900 = vmatpush1.msra.mxu0 %v2854
  %2901 = vmatprep.subr.mxu0 0.0
  %2902 = vmatpush1.msra.mxu0 %v2852
  %2903 = vmatprep.subr.mxu0 0.0
  %2904 = vmatpush1.msra.mxu0 %v2850
  %2905 = vmatprep.subr.mxu0 0.0
  %2906 = vmatpush2.msra.mxu0 0.0
  %2907 = vmatprep.subr.mxu0 0.0
  %2908 = vmatpush2.msra.mxu0 0.0
  %2909 = vmatprep.subr.mxu0 0.0
  %2910 = vmatpush2.msra.mxu0 0.0
  %2911 = vmatprep.subr.mxu0 0.0
  %2912 = vmatpush2.msra.mxu0 0.0
  %2913 = vmatprep.subr.mxu0 0.0
  %2914 = vmatpush2.msra.mxu0 0.0
  %2915 = vmatprep.subr.mxu0 0.0
  %2916 = vmatpush2.msra.mxu0 0.0
  %2917 = vmatprep.subr.mxu0 0.0
  %2918 = vmatpush2.msra.mxu0 0.0
  %2919 = vmatprep.subr.mxu0 0.0
  %2920 = vmatpush2.msra.mxu0 0.0
  %2921 = vmatprep.subr.mxu0 0.0
  %2922 = vmatpush2.msra.mxu0 0.0
  %2923 = vmatprep.subr.mxu0 0.0
  %2924 = vmatpush2.msra.mxu0 0.0
  %2925 = vmatprep.subr.mxu0 0.0
  %2926 = vmatpush2.msra.mxu0 0.0
  %2927 = vmatprep.subr.mxu0 0.0
  %2928 = vmatpush2.msra.mxu0 0.0
  %2929 = vmatprep.subr.mxu0 0.0
  %2930 = vmatpush2.msra.mxu0 0.0
  %2931 = vmatprep.subr.mxu0 0.0
  %2932 = vmatpush2.msra.mxu0 0.0
  %2933 = vmatprep.subr.mxu0 0.0
  %2934 = vmatpush2.msra.mxu0 0.0
  %2935 = vmatprep.subr.mxu0 0.0
  %2936 = vmatpush2.msra.mxu0 0.0
  %2937 = vmatprep.mubr.f32.mxu0 0.0
  %2938 = vmatmul.mubr.f32.gmra.mxu0 %v2862
  %v2939 = vpop.f32.mrf.mxu0
  %v2940 = vadd.f32 0.0, %v2939
  %v2941 = vpop.f32.mrf.mxu0
  %2942 = vmatprep.mubr.f32.mxu0 0.0
  %2943 = vmatmul.mubr.f32.gmra.mxu0 %v2865
  %v2944 = vpop.f32.mrf.mxu0
  %v2945 = vadd.f32 0.0, %v2944
  %v2946 = vpop.f32.mrf.mxu0
  %2947 = vmatprep.mubr.f32.mxu0 0.0
  %2948 = vmatmul.mubr.f32.gmra.mxu0 %v2868
  %v2949 = vpop.f32.mrf.mxu0
  %v2950 = vadd.f32 0.0, %v2949
  %v2951 = vpop.f32.mrf.mxu0
  %2952 = vmatprep.mubr.f32.mxu0 0.0
  %2953 = vmatmul.mubr.f32.gmra.mxu0 %v2871
  %v2954 = vpop.f32.mrf.mxu0
  %v2955 = vadd.f32 0.0, %v2954
  %v2956 = vpop.f32.mrf.mxu0
  %2957 = vdwg.mxu0
  %2958 = vset.pattern.permute.xlu0 7
  %2959 = vperm.xlu0 %2958, %v2434
  %v2960 = vpop.permute.xlu0 %2959
  %2962 = vset.pattern.permute.xlu0 7
  %2963 = vperm.xlu0 %2962, %v2439
  %v2964 = vpop.permute.xlu0 %2963
  %2966 = vset.pattern.permute.xlu0 7
  %2967 = vperm.xlu0 %2966, %v2444
  %v2968 = vpop.permute.xlu0 %2967
  %2970 = vset.pattern.permute.xlu0 7
  %2971 = vperm.xlu0 %2970, %v2449
  %v2972 = vpop.permute.xlu0 %2971
  %v2974 = vlaneseq
  %v2975 = vshrl.u32 %v2974, 7
  %v2976 = vsub.s32 3, %v2975
  %v2977 = vrot.slane %v2468, %v2976
  %v2978 = vadd.f32 %v2960, %v2977
  %v2979 = vadd.f32 %v2964, %v2977
  %v2980 = vadd.f32 %v2968, %v2977
  %v2981 = vadd.f32 %v2972, %v2977
  %vm2982 = vcmp.ge.f32.partialorder %v2978, 0.0
  %vm2983 = vcmp.ge.f32.partialorder %v2979, 0.0
  %vm2984 = vcmp.ge.f32.partialorder %v2980, 0.0
  %vm2985 = vcmp.ge.f32.partialorder %v2981, 0.0
  %v2986 = vmul.f32 %v2978, 0.2
  %v2987 = vmul.f32 %v2979, 0.2
  %v2988 = vmul.f32 %v2980, 0.2
  %v2989 = vmul.f32 %v2981, 0.2
  %v2990 = vsel %vm2982, %v2978, %v2986
  %v2991 = vsel %vm2983, %v2979, %v2987
  %v2992 = vsel %vm2984, %v2980, %v2988
  %v2993 = vsel %vm2985, %v2981, %v2989
  %v2994 = vadd.f32 %v2990, %v38
  %v2995 = vadd.f32 %v2991, %v39
  %v2996 = vadd.f32 %v2992, %v40
  %v2997 = vadd.f32 %v2993, %v41
  %v2998 = vsel %vm328, %v2994, -inf
  %2999 = vmax.xlane.f32.xlu0 %v2998
  %v3000 = vpop.xlane.xlu0 %2999
  %v3001 = vsel %vm328, %v2995, -inf
  %3002 = vmax.xlane.f32.xlu0 %v3001
  %v3003 = vpop.xlane.xlu0 %3002
  %v3004 = vsel %vm328, %v2996, -inf
  %3005 = vmax.xlane.f32.xlu0 %v3004
  %v3006 = vpop.xlane.xlu0 %3005
  %v3007 = vsel %vm328, %v2997, -inf
  %3008 = vmax.xlane.f32.xlu0 %v3007
  %v3009 = vpop.xlane.xlu0 %3008
  %v3010 = vsub.f32 %v2994, %v3000
  %v3011 = vsub.f32 %v2995, %v3003
  %v3012 = vsub.f32 %v2996, %v3006
  %v3013 = vsub.f32 %v2997, %v3009
  %v3014 = vmul.f32 %v3010, 1.442695
  %v3015 = vpow.pop %v3014
  %v3016 = vmul.f32 %v3011, 1.442695
  %v3017 = vpow.pop %v3016
  %v3018 = vmul.f32 %v3012, 1.442695
  %v3019 = vpow.pop %v3018
  %v3020 = vmul.f32 %v3013, 1.442695
  %v3021 = vpow.pop %v3020
  %v3022 = vsel %vm328, %v3015, 0.0
  %3023 = vadd.xlane.f32.xlu0 %v3022
  %v3024 = vpop.xlane.xlu0 %3023
  %v3025 = vsel %vm328, %v3017, 0.0
  %3026 = vadd.xlane.f32.xlu0 %v3025
  %v3027 = vpop.xlane.xlu0 %3026
  %v3028 = vsel %vm328, %v3019, 0.0
  %3029 = vadd.xlane.f32.xlu0 %v3028
  %v3030 = vpop.xlane.xlu0 %3029
  %v3031 = vsel %vm328, %v3021, 0.0
  %3032 = vadd.xlane.f32.xlu0 %v3031
  %v3033 = vpop.xlane.xlu0 %3032
  %v3034 = vrcp.pop %v3024
  %v3035 = vrcp.pop %v3027
  %v3036 = vrcp.pop %v3030
  %v3037 = vrcp.pop %v3033
  %v3038 = vmul.f32 %v3015, %v3034
  %v3039 = vmul.f32 %v3017, %v3035
  %v3040 = vmul.f32 %v3019, %v3036
  %v3041 = vmul.f32 %v3021, %v3037
  %3042 = vrot.lane.b32.xlu0 %v2333, 104
  %v3043 = vpop.permute.xlu0 %3042
  %3044 = vrot.lane.b32.xlu0 %v2338, 104
  %v3045 = vpop.permute.xlu0 %3044
  %3046 = vrot.lane.b32.xlu0 %v2343, 104
  %v3047 = vpop.permute.xlu0 %3046
  %3048 = vrot.lane.b32.xlu0 %v2348, 104
  %v3049 = vpop.permute.xlu0 %3048
  %v3055 = vsel %vm328, %v3038, 0
  %v3058 = vsel %vm328, %v3039, 0
  %v3061 = vsel %vm328, %v3040, 0
  %v3064 = vsel %vm328, %v3041, 0
  %3066 = vmatprep.subr.mxu0 0.0
  %3067 = vmatpush1.msra.mxu0 0.0
  %3068 = vmatprep.subr.mxu0 0.0
  %3069 = vmatpush1.msra.mxu0 0.0
  %3070 = vmatprep.subr.mxu0 0.0
  %3071 = vmatpush1.msra.mxu0 0.0
  %3072 = vmatprep.subr.mxu0 0.0
  %3073 = vmatpush1.msra.mxu0 0.0
  %3074 = vmatprep.subr.mxu0 0.0
  %3075 = vmatpush1.msra.mxu0 0.0
  %3076 = vmatprep.subr.mxu0 0.0
  %3077 = vmatpush1.msra.mxu0 0.0
  %3078 = vmatprep.subr.mxu0 0.0
  %3079 = vmatpush1.msra.mxu0 0.0
  %3080 = vmatprep.subr.mxu0 0.0
  %3081 = vmatpush1.msra.mxu0 0.0
  %3082 = vmatprep.subr.mxu0 0.0
  %3083 = vmatpush1.msra.mxu0 0.0
  %3084 = vmatprep.subr.mxu0 0.0
  %3085 = vmatpush1.msra.mxu0 0.0
  %3086 = vmatprep.subr.mxu0 0.0
  %3087 = vmatpush1.msra.mxu0 0.0
  %3088 = vmatprep.subr.mxu0 0.0
  %3089 = vmatpush1.msra.mxu0 0.0
  %3090 = vmatprep.subr.mxu0 0.0
  %3091 = vmatpush1.msra.mxu0 %v3049
  %3092 = vmatprep.subr.mxu0 0.0
  %3093 = vmatpush1.msra.mxu0 %v3047
  %3094 = vmatprep.subr.mxu0 0.0
  %3095 = vmatpush1.msra.mxu0 %v3045
  %3096 = vmatprep.subr.mxu0 0.0
  %3097 = vmatpush1.msra.mxu0 %v3043
  %3098 = vmatprep.subr.mxu0 0.0
  %3099 = vmatpush2.msra.mxu0 0.0
  %3100 = vmatprep.subr.mxu0 0.0
  %3101 = vmatpush2.msra.mxu0 0.0
  %3102 = vmatprep.subr.mxu0 0.0
  %3103 = vmatpush2.msra.mxu0 0.0
  %3104 = vmatprep.subr.mxu0 0.0
  %3105 = vmatpush2.msra.mxu0 0.0
  %3106 = vmatprep.subr.mxu0 0.0
  %3107 = vmatpush2.msra.mxu0 0.0
  %3108 = vmatprep.subr.mxu0 0.0
  %3109 = vmatpush2.msra.mxu0 0.0
  %3110 = vmatprep.subr.mxu0 0.0
  %3111 = vmatpush2.msra.mxu0 0.0
  %3112 = vmatprep.subr.mxu0 0.0
  %3113 = vmatpush2.msra.mxu0 0.0
  %3114 = vmatprep.subr.mxu0 0.0
  %3115 = vmatpush2.msra.mxu0 0.0
  %3116 = vmatprep.subr.mxu0 0.0
  %3117 = vmatpush2.msra.mxu0 0.0
  %3118 = vmatprep.subr.mxu0 0.0
  %3119 = vmatpush2.msra.mxu0 0.0
  %3120 = vmatprep.subr.mxu0 0.0
  %3121 = vmatpush2.msra.mxu0 0.0
  %3122 = vmatprep.subr.mxu0 0.0
  %3123 = vmatpush2.msra.mxu0 0.0
  %3124 = vmatprep.subr.mxu0 0.0
  %3125 = vmatpush2.msra.mxu0 0.0
  %3126 = vmatprep.subr.mxu0 0.0
  %3127 = vmatpush2.msra.mxu0 0.0
  %3128 = vmatprep.subr.mxu0 0.0
  %3129 = vmatpush2.msra.mxu0 0.0
  %3130 = vmatprep.mubr.f32.mxu0 0.0
  %3131 = vmatmul.mubr.f32.gmra.mxu0 %v3055
  %v3132 = vpop.f32.mrf.mxu0
  %v3133 = vadd.f32 0.0, %v3132
  %v3134 = vpop.f32.mrf.mxu0
  %3135 = vmatprep.mubr.f32.mxu0 0.0
  %3136 = vmatmul.mubr.f32.gmra.mxu0 %v3058
  %v3137 = vpop.f32.mrf.mxu0
  %v3138 = vadd.f32 0.0, %v3137
  %v3139 = vpop.f32.mrf.mxu0
  %3140 = vmatprep.mubr.f32.mxu0 0.0
  %3141 = vmatmul.mubr.f32.gmra.mxu0 %v3061
  %v3142 = vpop.f32.mrf.mxu0
  %v3143 = vadd.f32 0.0, %v3142
  %v3144 = vpop.f32.mrf.mxu0
  %3145 = vmatprep.mubr.f32.mxu0 0.0
  %3146 = vmatmul.mubr.f32.gmra.mxu0 %v3064
  %v3147 = vpop.f32.mrf.mxu0
  %v3148 = vadd.f32 0.0, %v3147
  %v3149 = vpop.f32.mrf.mxu0
  %3150 = vdwg.mxu0
  %v3151 = vld [vmem:[%s10] sm:$0x1]
  %v3153 = vlaneseq
  %v3154 = vshrl.u32 %v3153, 7
  %v3155 = vsub.s32 0, %v3154
  %v3156 = vrot.slane %v3151, %v3155
  %v3159 = vsel %vm328, %v2568, 0
  %v3162 = vsel %vm328, %v2569, 0
  %v3165 = vsel %vm328, %v2570, 0
  %v3168 = vsel %vm328, %v2571, 0
  %3170 = vmatprep.subr.mxu0 0.0
  %3171 = vmatpush1.msra.mxu0 0.0
  %3172 = vmatprep.subr.mxu0 0.0
  %3173 = vmatpush1.msra.mxu0 0.0
  %3174 = vmatprep.subr.mxu0 0.0
  %3175 = vmatpush1.msra.mxu0 0.0
  %3176 = vmatprep.subr.mxu0 0.0
  %3177 = vmatpush1.msra.mxu0 0.0
  %3178 = vmatprep.subr.mxu0 0.0
  %3179 = vmatpush1.msra.mxu0 0.0
  %3180 = vmatprep.subr.mxu0 0.0
  %3181 = vmatpush1.msra.mxu0 0.0
  %3182 = vmatprep.subr.mxu0 0.0
  %3183 = vmatpush1.msra.mxu0 0.0
  %3184 = vmatprep.subr.mxu0 0.0
  %3185 = vmatpush1.msra.mxu0 0.0
  %3186 = vmatprep.subr.mxu0 0.0
  %3187 = vmatpush1.msra.mxu0 0.0
  %3188 = vmatprep.subr.mxu0 0.0
  %3189 = vmatpush1.msra.mxu0 0.0
  %3190 = vmatprep.subr.mxu0 0.0
  %3191 = vmatpush1.msra.mxu0 0.0
  %3192 = vmatprep.subr.mxu0 0.0
  %3193 = vmatpush1.msra.mxu0 0.0
  %3194 = vmatprep.subr.mxu0 0.0
  %3195 = vmatpush1.msra.mxu0 %v2348
  %3196 = vmatprep.subr.mxu0 0.0
  %3197 = vmatpush1.msra.mxu0 %v2343
  %3198 = vmatprep.subr.mxu0 0.0
  %3199 = vmatpush1.msra.mxu0 %v2338
  %3200 = vmatprep.subr.mxu0 0.0
  %3201 = vmatpush1.msra.mxu0 %v2333
  %3202 = vmatprep.subr.mxu0 0.0
  %3203 = vmatpush2.msra.mxu0 0.0
  %3204 = vmatprep.subr.mxu0 0.0
  %3205 = vmatpush2.msra.mxu0 0.0
  %3206 = vmatprep.subr.mxu0 0.0
  %3207 = vmatpush2.msra.mxu0 0.0
  %3208 = vmatprep.subr.mxu0 0.0
  %3209 = vmatpush2.msra.mxu0 0.0
  %3210 = vmatprep.subr.mxu0 0.0
  %3211 = vmatpush2.msra.mxu0 0.0
  %3212 = vmatprep.subr.mxu0 0.0
  %3213 = vmatpush2.msra.mxu0 0.0
  %3214 = vmatprep.subr.mxu0 0.0
  %3215 = vmatpush2.msra.mxu0 0.0
  %3216 = vmatprep.subr.mxu0 0.0
  %3217 = vmatpush2.msra.mxu0 0.0
  %3218 = vmatprep.subr.mxu0 0.0
  %3219 = vmatpush2.msra.mxu0 0.0
  %3220 = vmatprep.subr.mxu0 0.0
  %3221 = vmatpush2.msra.mxu0 0.0
  %3222 = vmatprep.subr.mxu0 0.0
  %3223 = vmatpush2.msra.mxu0 0.0
  %3224 = vmatprep.subr.mxu0 0.0
  %3225 = vmatpush2.msra.mxu0 0.0
  %3226 = vmatprep.subr.mxu0 0.0
  %3227 = vmatpush2.msra.mxu0 0.0
  %3228 = vmatprep.subr.mxu0 0.0
  %3229 = vmatpush2.msra.mxu0 0.0
  %3230 = vmatprep.subr.mxu0 0.0
  %3231 = vmatpush2.msra.mxu0 0.0
  %3232 = vmatprep.subr.mxu0 0.0
  %3233 = vmatpush2.msra.mxu0 0.0
  %3234 = vmatprep.mubr.f32.mxu0 0.0
  %3235 = vmatmul.mubr.f32.gmra.mxu0 %v3159
  %v3236 = vpop.f32.mrf.mxu0
  %v3237 = vadd.f32 %v3156, %v3236
  %v3238 = vpop.f32.mrf.mxu0
  %3239 = vmatprep.mubr.f32.mxu0 0.0
  %3240 = vmatmul.mubr.f32.gmra.mxu0 %v3162
  %v3241 = vpop.f32.mrf.mxu0
  %v3242 = vadd.f32 %v3156, %v3241
  %v3243 = vpop.f32.mrf.mxu0
  %3244 = vmatprep.mubr.f32.mxu0 0.0
  %3245 = vmatmul.mubr.f32.gmra.mxu0 %v3165
  %v3246 = vpop.f32.mrf.mxu0
  %v3247 = vadd.f32 %v3156, %v3246
  %v3248 = vpop.f32.mrf.mxu0
  %3249 = vmatprep.mubr.f32.mxu0 0.0
  %3250 = vmatmul.mubr.f32.gmra.mxu0 %v3168
  %v3251 = vpop.f32.mrf.mxu0
  %v3252 = vadd.f32 %v3156, %v3251
  %v3253 = vpop.f32.mrf.mxu0
  %3254 = vdwg.mxu0
  %v3255 = vadd.f32 %v3237, %v2747
  %v3256 = vadd.f32 %v3242, %v2752
  %v3257 = vadd.f32 %v3247, %v2757
  %v3258 = vadd.f32 %v3252, %v2762
  %3259 = vrot.lane.b32.xlu0 %v3156, 120
  %v3260 = vpop.permute.xlu0 %3259
  %v3262 = vadd.f32 %v3255, %v3260
  %v3263 = vadd.f32 %v3256, %v3260
  %v3264 = vadd.f32 %v3257, %v3260
  %v3265 = vadd.f32 %v3258, %v3260
  %v3266 = vadd.f32 %v3262, %v2940
  %v3267 = vadd.f32 %v3263, %v2945
  %v3268 = vadd.f32 %v3264, %v2950
  %v3269 = vadd.f32 %v3265, %v2955
  %3270 = vrot.lane.b32.xlu0 %v3156, 112
  %v3271 = vpop.permute.xlu0 %3270
  %v3273 = vadd.f32 %v3266, %v3271
  %v3274 = vadd.f32 %v3267, %v3271
  %v3275 = vadd.f32 %v3268, %v3271
  %v3276 = vadd.f32 %v3269, %v3271
  %v3277 = vadd.f32 %v3273, %v3133
  %v3278 = vadd.f32 %v3274, %v3138
  %v3279 = vadd.f32 %v3275, %v3143
  %v3280 = vadd.f32 %v3276, %v3148
  %3281 = vrot.lane.b32.xlu0 %v3156, 104
  %v3282 = vpop.permute.xlu0 %3281
  %v3284 = vadd.f32 %v3277, %v3282
  %v3285 = vadd.f32 %v3278, %v3282
  %v3286 = vadd.f32 %v3279, %v3282
  %v3287 = vadd.f32 %v3280, %v3282
  %v3288 = vmul.f32 %v3284, 0.25
  %v3289 = vmul.f32 %v3285, 0.25
  %v3290 = vmul.f32 %v3286, 0.25
  %v3291 = vmul.f32 %v3287, 0.25
  %vm3292 = vcmask 64512
  %3293 = vst.msk [vmem:[%s11] sm:$0xff] %vm3292, %v3288
  %3294 = vst.msk [vmem:[%s11 + $0x8] sm:$0xff] %vm3292, %v3289
  %3295 = vst.msk [vmem:[%s11 + $0x10] sm:$0xff] %vm3292, %v3290
  %3296 = vst.msk [vmem:[%s11 + $0x18] sm:$0xff] %vm3292, %v3291
  // Predicated region
  $region46: #{gat_forward.1} parent=0 // pred_check
    _
  $region47: #{gat_forward.1} parent=0 // pred_check_branch
    %3298 = sbr.rel (0) target = $region49
  $region48: #{gat_forward.1} parent=0 // pred_region
    _
  $region49: #{gat_forward.1} parent=0 // pred_fallthru
    _
  // Predicated region
  $region50: #{gat_forward.1} parent=0 // pred_check
    _
  $region51: #{gat_forward.1} parent=0 // pred_check_branch
    %3300 = sbr.rel (0) target = $region53
  $region52: #{gat_forward.1} parent=0 // pred_region
    _
  $region53: #{gat_forward.1} parent=0 // pred_fallthru
    _

</llo_original>
